<compile_context>
chip_gen: v5e
topology: v5e:2x2
jax: 0.10.0
libtpu: 0.0.40
codegen_flags: <defaults>
</compile_context>

<pallas_src>
import math

import jax
import jax.numpy as jnp
from jax.experimental import pallas as pl
from jax.experimental.pallas import tpu as pltpu

KSIZE = 11
PAD = 2
STRIDE = 2
OFF = 1          # one zero "head pad" lane at the start of every segment
BIG = 1 << 30    # sentinel segment position for head-pad lanes (never valid)


def conv_out_len(l):
    # PyTorch Conv1d: floor((L + 2*pad - K)/stride) + 1
    return (l + 2 * PAD - KSIZE) // STRIDE + 1


def _round_up(a, b):
    return (a + b - 1) // b * b


# --------------------------------------------------------------------------- #
# Kernel                                                                       #
# --------------------------------------------------------------------------- #
def prenet_kernel(x_ref, j_ref, nv1_ref, nv2_ref, w1_ref, w2_ref, w3_ref,
                  b1_ref, b2_ref, b3_ref, o_ref):
    c = o_ref.shape[0]
    m = o_ref.shape[1]
    jseg = j_ref[...]                     # (1, m) int32; BIG on head-pad lanes

    def pad_lr(t, left, right):
        rows = t.shape[0]
        return jnp.concatenate(
            [jnp.zeros((rows, left), t.dtype), t,
             jnp.zeros((rows, right), t.dtype)], axis=1)

    def act(acc, bias, nvalid):
        # bias-add + ReLU in f32; zero every lane that is not a true output
        # position of its row's phase (emulates the conv zero padding seen by
        # the next layer); cast to bf16 for the next MXU matmul.
        y = jnp.maximum(acc + bias, 0.0)
        return jnp.where(jseg < nvalid, y, 0.0).astype(jnp.bfloat16)

    # ---- layer 1: 1 -> c channels, 4 output phases fused into one matmul ----
    # 18-row superstack over absolute input-tap index A = -2..15:
    # row A+2 = input phase (A mod 8) shifted by floor(A/8) in {-1, 0, +1}.
    xp = pad_lr(x_ref[...], 1, 1)                              # (8, m+2)
    s1 = jnp.concatenate(
        [xp[6:8, 0:m],          # A = -2,-1  (phases 6,7 @ shift -1)
         xp[:, 1:1 + m],        # A =  0..7  (shift 0)
         xp[:, 2:2 + m]],       # A =  8..15 (shift +1)
        axis=0)                                                # (18, m)
    acc1 = jnp.dot(w1_ref[...], s1, preferred_element_type=jnp.float32)
    h1 = act(acc1, b1_ref[...], nv1_ref[...])                  # (4c, m) bf16

    # ---- layer 2: c -> c, 2 output phases fused over a shared superstack ----
    # 13c-row superstack over absolute layer-1-tap index A = -2..10:
    # row block A+2 = h1 phase (A mod 4) shifted by floor(A/4) in {-1..2}.
    h1p = pad_lr(h1, 1, 2)                                     # (4c, m+3)
    s2 = jnp.concatenate(
        [h1p[2 * c:4 * c, 0:m],     # A = -2,-1  (phases 2,3 @ shift -1)
         h1p[:, 1:1 + m],           # A =  0..3  (shift 0)
         h1p[:, 2:2 + m],           # A =  4..7  (shift +1)
         h1p[0:3 * c, 3:3 + m]],    # A =  8..10 (phases 0,1,2 @ shift +2)
        axis=0)                                                # (13c, m)
    acc2 = jnp.dot(w2_ref[...], s2, preferred_element_type=jnp.float32)
    h2 = act(acc2, b2_ref[...], nv2_ref[...])                  # (2c, m) bf16

    # ---- layer 3: c -> c, single output --------------------------------------
    # 11c-row stack over absolute layer-2-tap index A = -2..8:
    # row block A+2 = h2 phase (A mod 2) shifted by floor(A/2) in {-1..4}.
    h2p = pad_lr(h2, 1, 4)                                     # (2c, m+5)
    s3 = jnp.concatenate(
        [h2p[:, 0:m], h2p[:, 1:1 + m], h2p[:, 2:2 + m],
         h2p[:, 3:3 + m], h2p[:, 4:4 + m], h2p[0:c, 5:5 + m]],
        axis=0)                                                # (11c, m)
    acc3 = jnp.dot(w3_ref[...], s3, preferred_element_type=jnp.float32)
    # invalid lanes are sliced off by the wrapper; no masking needed here
    o_ref[...] = jnp.maximum(acc3 + b3_ref[...], 0.0).astype(o_ref.dtype)


# --------------------------------------------------------------------------- #
# Wrapper                                                                      #
# --------------------------------------------------------------------------- #
def _vmem_capacity_bytes():
    try:
        return int(pltpu.get_tpu_info().vmem_capacity_bytes)
    except Exception:
        return 64 * 1024 * 1024          # conservative (v7x-class) fallback


def _choose_block(N, S_min, lane_budget, prefer_two_steps):
    """Pick (signals per block, segment length, padded signal count).

    bn is kept a multiple of 32/64/128 so S needs at most a few lanes of
    rounding (block lane width stays a multiple of 128 with ~zero dead lanes)
    and the per-step working set stays inside the lane budget.  On
    two-TensorCore chips we prefer a >=2-step grid when it adds (almost) no
    padding.
    """
    n32 = _round_up(N, 32)
    cands = []
    for bn in (32, 64, 128, 256, 384, 512, 768, 1024):
        if bn > n32:
            continue
        lane_mult = 128 // math.gcd(bn, 128)
        S = _round_up(S_min, lane_mult)
        if bn * S > lane_budget and bn != 32:
            continue
        N_pad = _round_up(N, bn)
        cands.append((bn, S, N_pad, N_pad // bn))
    min_waste = min(S * N_pad for _, S, N_pad, _ in cands)

    def key(t):
        bn, S, N_pad, steps = t
        waste = S * N_pad
        if prefer_two_steps:
            near = waste <= min_waste + min_waste // 8
            return (0 if (steps >= 2 and near) else 1, waste, -bn)
        return (waste, -bn)

    bn, S, N_pad, _ = min(cands, key=key)
    return bn, S, N_pad


def prenet_forward(x, params, d_mel, block_n=None, out_dtype=jnp.bfloat16):
    # TODO(synk): output is bf16 (activations are bf16-quantised between layers
    # anyway); pass out_dtype=jnp.float32 to match the PyTorch dtype exactly.
    w1, b1, w2, b2, w3, b3 = params
    B, T, D3 = x.shape
    assert D3 == 3 * d_mel
    c = w1.shape[0]

    L1 = conv_out_len(T)
    L2 = conv_out_len(L1)
    L3 = conv_out_len(L2)
    assert L3 >= 1, "sequence too short for three stride-2 k=11 convs"

    N = B * 3 * d_mel
    # minimum segment length so every tap read of a *valid* output stays inside
    # its own segment or lands on the next segment's zero head-pad lane
    S_min = max((T + 7) // 8 + OFF,      # input phase samples + head pad
                (L1 - 1) // 4 + 2,       # layer-1 valid outputs + max shift 1
                (L2 - 1) // 2 + 3,       # layer-2 valid outputs + max shift 2
                L3 + 4)                  # layer-3 valid outputs + max shift 4

    # chip-aware sizing: 128-MiB-VMEM chips (v5e/v6e, 1 TC) get bigger blocks;
    # 64-MiB chips (v7x, 2 TCs) get smaller blocks and a >=2-step grid.
    vmem_cap = _vmem_capacity_bytes()
    big_vmem = vmem_cap >= 100 * 1024 * 1024
    lane_budget = 12288 if big_vmem else 6144
    vmem_limit = (96 if big_vmem else 48) * 1024 * 1024

    if block_n is None:
        bn, S, N_pad = _choose_block(N, S_min, lane_budget,
                                     prefer_two_steps=not big_vmem)
    else:
        bn = max(32, _round_up(min(block_n, _round_up(N, 32)), 32))
        S = _round_up(S_min, 128 // math.gcd(bn, 128))
        N_pad = _round_up(N, bn)
    grid = (N_pad // bn,)
    M_blk = bn * S
    M_all = N_pad * S

    # ---- wrapper-side layout plumbing (plain XLA, outside the kernel) -------
    # (B, T, 3*d_mel) -> (N, T), signal index n = ((b*3 + frame)*d_mel + mel)
    sig = x.reshape(B, T, 3, d_mel).transpose(0, 2, 3, 1).reshape(N, T)
    sig = jnp.pad(sig.astype(jnp.float32),
                  ((0, N_pad - N), (0, 8 * (S - OFF) - T)))
    ph = sig.reshape(N_pad, S - OFF, 8).transpose(2, 0, 1)     # (8, N_pad, S-OFF)
    ph = jnp.pad(ph, ((0, 0), (0, 0), (OFF, 0)))               # zero head pad
    x_in = ph.reshape(8, M_all).astype(jnp.bfloat16)           # lane = n*S+OFF+j

    # per-lane position inside its segment; head pads get BIG so one
    # `jseg < nvalid` compare implements the whole validity mask
    seg = jnp.arange(S, dtype=jnp.int32) - OFF
    seg = jnp.where(seg < 0, jnp.int32(BIG), seg)
    jseg = jnp.tile(seg, (bn,)).reshape(1, M_blk)

    # valid output counts per phase (row-block thresholds)
    nv1 = tuple((L1 - 1 - q) // 4 + 1 for q in range(4))
    nv2 = tuple((L2 - 1 - r) // 2 + 1 for r in range(2))
    nv1r = jnp.repeat(jnp.asarray(nv1, jnp.int32), c).reshape(4 * c, 1)
    nv2r = jnp.repeat(jnp.asarray(nv2, jnp.int32), c).reshape(2 * c, 1)

    # fused, lane-dense weights (built once, outside the kernel)
    # layer 1: (4c, 18) block-banded; row block q, column 2q+k = w1[:, 0, k]
    w1m = jnp.zeros((4 * c, 18), jnp.float32)
    for q in range(4):
        w1m = w1m.at[q * c:(q + 1) * c, 2 * q:2 * q + KSIZE].set(w1[:, 0, :])
    # layers 2/3: tap-major flat weight, column k*c + ci = w[:, ci, k]
    w2flat = jnp.transpose(w2, (0, 2, 1)).reshape(c, KSIZE * c)
    w2m = jnp.zeros((2 * c, 13 * c), jnp.float32)
    for r in range(2):
        w2m = w2m.at[r * c:(r + 1) * c,
                     2 * r * c:(2 * r + KSIZE) * c].set(w2flat)
    w3m = jnp.transpose(w3, (0, 2, 1)).reshape(c, KSIZE * c)
    w1m, w2m, w3m = (w.astype(jnp.bfloat16) for w in (w1m, w2m, w3m))

    b1s = jnp.tile(b1.reshape(c, 1), (4, 1)).astype(jnp.float32)
    b2s = jnp.tile(b2.reshape(c, 1), (2, 1)).astype(jnp.float32)
    b3s = b3.reshape(c, 1).astype(jnp.float32)

    out_isize = jnp.dtype(out_dtype).itemsize
    flops = 2 * M_all * (4 * c * 18 + 2 * c * 13 * c + c * KSIZE * c)
    bytes_accessed = (x_in.size * 2 + jseg.size * 4
                      + (nv1r.size + nv2r.size) * 4
                      + (w1m.size + w2m.size + w3m.size) * 2
                      + (b1s.size + b2s.size + b3s.size) * 4
                      + M_all * c * out_isize)

    out = pl.pallas_call(
        prenet_kernel,
        out_shape=jax.ShapeDtypeStruct((c, M_all), out_dtype),
        grid_spec=pltpu.PrefetchScalarGridSpec(
            num_scalar_prefetch=0,
            grid=grid,
            in_specs=[
                pl.BlockSpec((8, M_blk), lambda i: (0, i)),        # x phases
                pl.BlockSpec((1, M_blk), lambda i: (0, 0)),        # jseg
                pl.BlockSpec((4 * c, 1), lambda i: (0, 0)),        # nv1
                pl.BlockSpec((2 * c, 1), lambda i: (0, 0)),        # nv2
                pl.BlockSpec((4 * c, 18), lambda i: (0, 0)),       # w1 (fused)
                pl.BlockSpec((2 * c, 13 * c), lambda i: (0, 0)),   # w2 (fused)
                pl.BlockSpec((c, KSIZE * c), lambda i: (0, 0)),    # w3
                pl.BlockSpec((4 * c, 1), lambda i: (0, 0)),        # b1
                pl.BlockSpec((2 * c, 1), lambda i: (0, 0)),        # b2
                pl.BlockSpec((c, 1), lambda i: (0, 0)),            # b3
            ],
            out_specs=pl.BlockSpec((c, M_blk), lambda i: (0, i)),
        ),
        compiler_params=pltpu.CompilerParams(
            dimension_semantics=("parallel",),
            vmem_limit_bytes=vmem_limit),
        cost_estimate=pl.CostEstimate(
            flops=int(flops), transcendentals=0,
            bytes_accessed=int(bytes_accessed)),
    )(x_in, jseg, nv1r, nv2r, w1m, w2m, w3m, b1s, b2s, b3s)

    # (c, N_pad*S) -> (B, L3, c*3*d_mel), matching the original permute/view.
    out = out.reshape(c, N_pad, S)[:, :N, OFF:OFF + L3]        # (c, N, L3)
    out = (out.transpose(1, 0, 2)
              .reshape(B, 3, d_mel, c, L3)
              .transpose(0, 4, 3, 1, 2)
              .reshape(B, L3, c * 3 * d_mel))
    return out


# --------------------------------------------------------------------------- #
# Parameters & pure-JAX reference                                              #
# --------------------------------------------------------------------------- #
def init_params(key, d_mel, c=64):
    ks = jax.random.split(key, 6)

    def u(k, shape, fan_in):
        bound = 1.0 / (fan_in ** 0.5)
        return jax.random.uniform(k, shape, jnp.float32, -bound, bound)

    w1 = u(ks[0], (c, 1, KSIZE), 1 * KSIZE)
    b1 = u(ks[1], (c, 1), 1 * KSIZE)
    w2 = u(ks[2], (c, c, KSIZE), c * KSIZE)
    b2 = u(ks[3], (c, 1), c * KSIZE)
    w3 = u(ks[4], (c, c, KSIZE), c * KSIZE)
    b3 = u(ks[5], (c, 1), c * KSIZE)
    return (w1, b1, w2, b2, w3, b3)


def prenet_reference(x, params, d_mel):
    """Pure-JAX reference (lax.conv) with the same bf16-operand / f32-accum
    quantisation as the kernel."""
    w1, b1, w2, b2, w3, b3 = params
    B, T, _ = x.shape
    c = w1.shape[0]
    sig = (x.reshape(B, T, 3, d_mel).transpose(0, 2, 3, 1)
             .reshape(B * 3 * d_mel, 1, T))

    def conv(h, w, b):
        y = jax.lax.conv_general_dilated(
            h.astype(jnp.bfloat16), w.astype(jnp.bfloat16),
            window_strides=(STRIDE,), padding=[(PAD, PAD)],
            dimension_numbers=('NCH', 'OIH', 'NCH'),
            preferred_element_type=jnp.float32)
        return jnp.maximum(y + b[None, :, :].astype(jnp.float32), 0.0)

    h = conv(sig, w1, b1)
    h = conv(h, w2, b2)
    h = conv(h, w3, b3)
    t3 = h.shape[-1]
    return (h.reshape(B, 3, d_mel, c, t3)
              .transpose(0, 4, 3, 1, 2)
              .reshape(B, t3, c * 3 * d_mel))


if __name__ == "__main__":
    B, d_mel, T, c = 2, 4, 64, 64           # input features per frame = 3*d_mel
    key = jax.random.PRNGKey(0)
    kx, kp = jax.random.split(key)
    x = jax.random.normal(kx, (B, T, 3 * d_mel), jnp.float32)
    params = init_params(kp, d_mel, c)

    out = prenet_forward(x, params, d_mel)
    out = jax.block_until_ready(out)

    ref = prenet_reference(x, params, d_mel)
    ref_q = ref.astype(jnp.bfloat16).astype(jnp.float32)   # kernel output is bf16
    assert out.shape == ref.shape, (out.shape, ref.shape)
    max_err = float(jnp.max(jnp.abs(out.astype(jnp.float32) - ref_q)))
    if max_err > 3e-2:
        raise AssertionError(f"kernel mismatch vs reference, max_err={max_err}")

    print("KERNEL_OK")
</pallas_src>

<mosaic_0001>
module attributes {stable_mosaic.version = 11 : i64} {
  func.func @prenet_kernel(%arg0: i32, %arg1: memref<8x384xbf16, #tpu.memory_space<vmem>>, %arg2: memref<1x384xi32, #tpu.memory_space<vmem>>, %arg3: memref<256x1xi32, #tpu.memory_space<vmem>>, %arg4: memref<128x1xi32, #tpu.memory_space<vmem>>, %arg5: memref<256x18xbf16, #tpu.memory_space<vmem>>, %arg6: memref<128x832xbf16, #tpu.memory_space<vmem>>, %arg7: memref<64x704xbf16, #tpu.memory_space<vmem>>, %arg8: memref<256x1xf32, #tpu.memory_space<vmem>>, %arg9: memref<128x1xf32, #tpu.memory_space<vmem>>, %arg10: memref<64x1xf32, #tpu.memory_space<vmem>>, %arg11: memref<64x384xbf16, #tpu.memory_space<vmem>>) attributes {dimension_semantics = [#tpu.dimension_semantics<parallel>], iteration_bounds = array<i64: 1>, scalar_prefetch = 0 : i64, scratch_operands = 0 : i64, tpu.core_type = #tpu.core_type<tc>, window_params = [{transform_indices = @transform_0, window_bounds = array<i64: 8, 384>}, {pipeline_mode = #tpu.pipeline_mode<synchronous>, transform_indices = @transform_1, window_bounds = array<i64: 1, 384>}, {pipeline_mode = #tpu.pipeline_mode<synchronous>, transform_indices = @transform_2, window_bounds = array<i64: 256, 1>}, {pipeline_mode = #tpu.pipeline_mode<synchronous>, transform_indices = @transform_3, window_bounds = array<i64: 128, 1>}, {pipeline_mode = #tpu.pipeline_mode<synchronous>, transform_indices = @transform_4, window_bounds = array<i64: 256, 18>}, {pipeline_mode = #tpu.pipeline_mode<synchronous>, transform_indices = @transform_5, window_bounds = array<i64: 128, 832>}, {pipeline_mode = #tpu.pipeline_mode<synchronous>, transform_indices = @transform_6, window_bounds = array<i64: 64, 704>}, {pipeline_mode = #tpu.pipeline_mode<synchronous>, transform_indices = @transform_7, window_bounds = array<i64: 256, 1>}, {pipeline_mode = #tpu.pipeline_mode<synchronous>, transform_indices = @transform_8, window_bounds = array<i64: 128, 1>}, {pipeline_mode = #tpu.pipeline_mode<synchronous>, transform_indices = @transform_9, window_bounds = array<i64: 64, 1>}, {transform_indices = @transform_10, window_bounds = array<i64: 64, 384>}]} {
    %c0 = arith.constant 0 : index
    %c0_0 = arith.constant 0 : index
    %0 = vector.load %arg2[%c0, %c0_0] : memref<1x384xi32, #tpu.memory_space<vmem>>, vector<1x384xi32>
    %c0_1 = arith.constant 0 : index
    %c0_2 = arith.constant 0 : index
    %1 = vector.load %arg1[%c0_1, %c0_2] : memref<8x384xbf16, #tpu.memory_space<vmem>>, vector<8x384xbf16>
    %cst = arith.constant 0.000000e+00 : bf16
    %2 = vector.broadcast %cst : bf16 to vector<8x1xbf16>
    %cst_3 = arith.constant 0.000000e+00 : bf16
    %3 = vector.broadcast %cst_3 : bf16 to vector<8x1xbf16>
    %4 = tpu.concatenate %2, %1, %3 in 1 : vector<8x1xbf16>, vector<8x384xbf16>, vector<8x1xbf16> -> vector<8x386xbf16>
    %5 = vector.extract_strided_slice %4 {offsets = [6, 0], sizes = [2, 384], strides = [1, 1]} : vector<8x386xbf16> to vector<2x384xbf16>
    %6 = vector.extract_strided_slice %4 {offsets = [0, 1], sizes = [8, 384], strides = [1, 1]} : vector<8x386xbf16> to vector<8x384xbf16>
    %7 = vector.extract_strided_slice %4 {offsets = [0, 2], sizes = [8, 384], strides = [1, 1]} : vector<8x386xbf16> to vector<8x384xbf16>
    %8 = tpu.concatenate %5, %6, %7 in 0 : vector<2x384xbf16>, vector<8x384xbf16>, vector<8x384xbf16> -> vector<18x384xbf16>
    %c0_4 = arith.constant 0 : index
    %c0_5 = arith.constant 0 : index
    %9 = vector.load %arg5[%c0_4, %c0_5] : memref<256x18xbf16, #tpu.memory_space<vmem>>, vector<256x18xbf16>
    %cst_6 = arith.constant dense<0.000000e+00> : vector<256x384xf32>
    %10 = tpu.matmul %9, %8, %cst_6 {dimension_numbers = #tpu.dot_dimension_numbers<[1], [0], [0], [1], [0, 0, 1, 1], [], []>} : vector<256x18xbf16>, vector<18x384xbf16>, vector<256x384xf32> -> vector<256x384xf32>
    %c0_7 = arith.constant 0 : index
    %c0_8 = arith.constant 0 : index
    %11 = vector.load %arg8[%c0_7, %c0_8] : memref<256x1xf32, #tpu.memory_space<vmem>>, vector<256x1xf32>
    %c0_9 = arith.constant 0 : index
    %c0_10 = arith.constant 0 : index
    %12 = vector.load %arg3[%c0_9, %c0_10] : memref<256x1xi32, #tpu.memory_space<vmem>>, vector<256x1xi32>
    %13 = vector.broadcast %11 : vector<256x1xf32> to vector<256x384xf32>
    %14 = arith.addf %10, %13 : vector<256x384xf32>
    %cst_11 = arith.constant 0.000000e+00 : f32
    %15 = vector.broadcast %cst_11 : f32 to vector<256x384xf32>
    %16 = arith.maximumf %14, %15 : vector<256x384xf32>
    %17 = vector.broadcast %0 : vector<1x384xi32> to vector<256x384xi32>
    %18 = vector.broadcast %12 : vector<256x1xi32> to vector<256x384xi32>
    %19 = arith.cmpi slt, %17, %18 : vector<256x384xi32>
    %cst_12 = arith.constant 0.000000e+00 : f32
    %20 = vector.broadcast %cst_12 : f32 to vector<256x384xf32>
    %21 = arith.select %19, %16, %20 : vector<256x384xi1>, vector<256x384xf32>
    %22 = arith.truncf %21 : vector<256x384xf32> to vector<256x384xbf16>
    %cst_13 = arith.constant 0.000000e+00 : bf16
    %23 = vector.broadcast %cst_13 : bf16 to vector<256x1xbf16>
    %cst_14 = arith.constant 0.000000e+00 : bf16
    %24 = vector.broadcast %cst_14 : bf16 to vector<256x2xbf16>
    %25 = tpu.concatenate %23, %22, %24 in 1 : vector<256x1xbf16>, vector<256x384xbf16>, vector<256x2xbf16> -> vector<256x387xbf16>
    %26 = vector.extract_strided_slice %25 {offsets = [128, 0], sizes = [128, 384], strides = [1, 1]} : vector<256x387xbf16> to vector<128x384xbf16>
    %27 = vector.extract_strided_slice %25 {offsets = [0, 1], sizes = [256, 384], strides = [1, 1]} : vector<256x387xbf16> to vector<256x384xbf16>
    %28 = vector.extract_strided_slice %25 {offsets = [0, 2], sizes = [256, 384], strides = [1, 1]} : vector<256x387xbf16> to vector<256x384xbf16>
    %29 = vector.extract_strided_slice %25 {offsets = [0, 3], sizes = [192, 384], strides = [1, 1]} : vector<256x387xbf16> to vector<192x384xbf16>
    %30 = tpu.concatenate %26, %27, %28, %29 in 0 : vector<128x384xbf16>, vector<256x384xbf16>, vector<256x384xbf16>, vector<192x384xbf16> -> vector<832x384xbf16>
    %c0_15 = arith.constant 0 : index
    %c0_16 = arith.constant 0 : index
    %31 = vector.load %arg6[%c0_15, %c0_16] : memref<128x832xbf16, #tpu.memory_space<vmem>>, vector<128x832xbf16>
    %cst_17 = arith.constant dense<0.000000e+00> : vector<128x384xf32>
    %32 = tpu.matmul %31, %30, %cst_17 {dimension_numbers = #tpu.dot_dimension_numbers<[1], [0], [0], [1], [0, 0, 1, 1], [], []>} : vector<128x832xbf16>, vector<832x384xbf16>, vector<128x384xf32> -> vector<128x384xf32>
    %c0_18 = arith.constant 0 : index
    %c0_19 = arith.constant 0 : index
    %33 = vector.load %arg9[%c0_18, %c0_19] : memref<128x1xf32, #tpu.memory_space<vmem>>, vector<128x1xf32>
    %c0_20 = arith.constant 0 : index
    %c0_21 = arith.constant 0 : index
    %34 = vector.load %arg4[%c0_20, %c0_21] : memref<128x1xi32, #tpu.memory_space<vmem>>, vector<128x1xi32>
    %35 = vector.broadcast %33 : vector<128x1xf32> to vector<128x384xf32>
    %36 = arith.addf %32, %35 : vector<128x384xf32>
    %cst_22 = arith.constant 0.000000e+00 : f32
    %37 = vector.broadcast %cst_22 : f32 to vector<128x384xf32>
    %38 = arith.maximumf %36, %37 : vector<128x384xf32>
    %39 = vector.broadcast %0 : vector<1x384xi32> to vector<128x384xi32>
    %40 = vector.broadcast %34 : vector<128x1xi32> to vector<128x384xi32>
    %41 = arith.cmpi slt, %39, %40 : vector<128x384xi32>
    %cst_23 = arith.constant 0.000000e+00 : f32
    %42 = vector.broadcast %cst_23 : f32 to vector<128x384xf32>
    %43 = arith.select %41, %38, %42 : vector<128x384xi1>, vector<128x384xf32>
    %44 = arith.truncf %43 : vector<128x384xf32> to vector<128x384xbf16>
    %cst_24 = arith.constant 0.000000e+00 : bf16
    %45 = vector.broadcast %cst_24 : bf16 to vector<128x1xbf16>
    %cst_25 = arith.constant 0.000000e+00 : bf16
    %46 = vector.broadcast %cst_25 : bf16 to vector<128x4xbf16>
    %47 = tpu.concatenate %45, %44, %46 in 1 : vector<128x1xbf16>, vector<128x384xbf16>, vector<128x4xbf16> -> vector<128x389xbf16>
    %48 = vector.extract_strided_slice %47 {offsets = [0, 0], sizes = [128, 384], strides = [1, 1]} : vector<128x389xbf16> to vector<128x384xbf16>
    %49 = vector.extract_strided_slice %47 {offsets = [0, 1], sizes = [128, 384], strides = [1, 1]} : vector<128x389xbf16> to vector<128x384xbf16>
    %50 = vector.extract_strided_slice %47 {offsets = [0, 2], sizes = [128, 384], strides = [1, 1]} : vector<128x389xbf16> to vector<128x384xbf16>
    %51 = vector.extract_strided_slice %47 {offsets = [0, 3], sizes = [128, 384], strides = [1, 1]} : vector<128x389xbf16> to vector<128x384xbf16>
    %52 = vector.extract_strided_slice %47 {offsets = [0, 4], sizes = [128, 384], strides = [1, 1]} : vector<128x389xbf16> to vector<128x384xbf16>
    %53 = vector.extract_strided_slice %47 {offsets = [0, 5], sizes = [64, 384], strides = [1, 1]} : vector<128x389xbf16> to vector<64x384xbf16>
    %54 = tpu.concatenate %48, %49, %50, %51, %52, %53 in 0 : vector<128x384xbf16>, vector<128x384xbf16>, vector<128x384xbf16>, vector<128x384xbf16>, vector<128x384xbf16>, vector<64x384xbf16> -> vector<704x384xbf16>
    %c0_26 = arith.constant 0 : index
    %c0_27 = arith.constant 0 : index
    %55 = vector.load %arg7[%c0_26, %c0_27] : memref<64x704xbf16, #tpu.memory_space<vmem>>, vector<64x704xbf16>
    %cst_28 = arith.constant dense<0.000000e+00> : vector<64x384xf32>
    %56 = tpu.matmul %55, %54, %cst_28 {dimension_numbers = #tpu.dot_dimension_numbers<[1], [0], [0], [1], [0, 0, 1, 1], [], []>} : vector<64x704xbf16>, vector<704x384xbf16>, vector<64x384xf32> -> vector<64x384xf32>
    %c0_29 = arith.constant 0 : index
    %c0_30 = arith.constant 0 : index
    %57 = vector.load %arg10[%c0_29, %c0_30] : memref<64x1xf32, #tpu.memory_space<vmem>>, vector<64x1xf32>
    %58 = vector.broadcast %57 : vector<64x1xf32> to vector<64x384xf32>
    %59 = arith.addf %56, %58 : vector<64x384xf32>
    %cst_31 = arith.constant 0.000000e+00 : f32
    %60 = vector.broadcast %cst_31 : f32 to vector<64x384xf32>
    %61 = arith.maximumf %59, %60 : vector<64x384xf32>
    %62 = arith.truncf %61 : vector<64x384xf32> to vector<64x384xbf16>
    %c0_32 = arith.constant 0 : index
    %c0_33 = arith.constant 0 : index
    %63 = vector.load %arg11[%c0_32, %c0_33] : memref<64x384xbf16, #tpu.memory_space<vmem>>, vector<64x384xbf16>
    tpu.vector_store %arg11[%c0_32, %c0_33], %62 {strides = array<i32>} : memref<64x384xbf16, #tpu.memory_space<vmem>>, vector<64x384xbf16>,
    return
  }
  func.func @transform_0(%arg0: i32) -> (i32, i32) {
    %c0_i32 = arith.constant 0 : i32
    %c0_i32_0 = arith.constant 0 : i32
    return %c0_i32, %arg0 : i32, i32
  }
  func.func @transform_1(%arg0: i32) -> (i32, i32) {
    %c0_i32 = arith.constant 0 : i32
    %c0_i32_0 = arith.constant 0 : i32
    %c0_i32_1 = arith.constant 0 : i32
    return %c0_i32, %c0_i32_0 : i32, i32
  }
  func.func @transform_2(%arg0: i32) -> (i32, i32) {
    %c0_i32 = arith.constant 0 : i32
    %c0_i32_0 = arith.constant 0 : i32
    %c0_i32_1 = arith.constant 0 : i32
    return %c0_i32, %c0_i32_0 : i32, i32
  }
  func.func @transform_3(%arg0: i32) -> (i32, i32) {
    %c0_i32 = arith.constant 0 : i32
    %c0_i32_0 = arith.constant 0 : i32
    %c0_i32_1 = arith.constant 0 : i32
    return %c0_i32, %c0_i32_0 : i32, i32
  }
  func.func @transform_4(%arg0: i32) -> (i32, i32) {
    %c0_i32 = arith.constant 0 : i32
    %c0_i32_0 = arith.constant 0 : i32
    %c0_i32_1 = arith.constant 0 : i32
    return %c0_i32, %c0_i32_0 : i32, i32
  }
  func.func @transform_5(%arg0: i32) -> (i32, i32) {
    %c0_i32 = arith.constant 0 : i32
    %c0_i32_0 = arith.constant 0 : i32
    %c0_i32_1 = arith.constant 0 : i32
    return %c0_i32, %c0_i32_0 : i32, i32
  }
  func.func @transform_6(%arg0: i32) -> (i32, i32) {
    %c0_i32 = arith.constant 0 : i32
    %c0_i32_0 = arith.constant 0 : i32
    %c0_i32_1 = arith.constant 0 : i32
    return %c0_i32, %c0_i32_0 : i32, i32
  }
  func.func @transform_7(%arg0: i32) -> (i32, i32) {
    %c0_i32 = arith.constant 0 : i32
    %c0_i32_0 = arith.constant 0 : i32
    %c0_i32_1 = arith.constant 0 : i32
    return %c0_i32, %c0_i32_0 : i32, i32
  }
  func.func @transform_8(%arg0: i32) -> (i32, i32) {
    %c0_i32 = arith.constant 0 : i32
    %c0_i32_0 = arith.constant 0 : i32
    %c0_i32_1 = arith.constant 0 : i32
    return %c0_i32, %c0_i32_0 : i32, i32
  }
  func.func @transform_9(%arg0: i32) -> (i32, i32) {
    %c0_i32 = arith.constant 0 : i32
    %c0_i32_0 = arith.constant 0 : i32
    %c0_i32_1 = arith.constant 0 : i32
    return %c0_i32, %c0_i32_0 : i32, i32
  }
  func.func @transform_10(%arg0: i32) -> (i32, i32) {
    %c0_i32 = arith.constant 0 : i32
    %c0_i32_0 = arith.constant 0 : i32
    return %c0_i32, %arg0 : i32, i32
  }
}

</mosaic_0001>

<llo_original>
// kernel: tpu_custom_call.1
$region0: #{tpu_custom_call.1}
  #allocation0 [shape = 'u32[]', space=smem, size = 0x4, offset = 0x4, fixed_abs, tag = 'smem constant byte address 0x4 - core index']
  #allocation1 [shape = 'u32[72,128]{1,0:T(1,128)}', space=vmem, size = 0x9000, scoped, tag = 'internal scratch']
  %s0 = inlined_call_operand.vmem [shape: bf16[8,384], index: 0, kind: input, shape index: {}]
  %s1 = inlined_call_operand.vmem [shape: s32[1,384], index: 1, kind: input, shape index: {}]
  %s2 = inlined_call_operand.vmem [shape: s32[256,1], index: 2, kind: input, shape index: {}]
  %s3 = inlined_call_operand.vmem [shape: s32[128,1], index: 3, kind: input, shape index: {}]
  %s4 = inlined_call_operand.vmem [shape: bf16[256,18], index: 4, kind: input, shape index: {}]
  %s5 = inlined_call_operand.vmem [shape: bf16[128,832], index: 5, kind: input, shape index: {}]
  %s6 = inlined_call_operand.vmem [shape: bf16[64,704], index: 6, kind: input, shape index: {}]
  %s7 = inlined_call_operand.vmem [shape: f32[256,1], index: 7, kind: input, shape index: {}]
  %s8 = inlined_call_operand.vmem [shape: f32[128,1], index: 8, kind: input, shape index: {}]
  %s9 = inlined_call_operand.vmem [shape: f32[64,1], index: 9, kind: input, shape index: {}]
  %s10 = inlined_call_operand.hbm [shape: bf16[64,384], index: 10, kind: output, shape index: {}]
  %s11 = sld [smem:[#allocation0]]
  $region50: #{tpu_custom_call.1} parent=0
    _
  %s13 = ssub.s32 1, %s11
  %s14 = scalar_select 0, %s13, %s11
  $region1: #{tpu_custom_call.1} parent=0
    #allocation2 [shape = 'u8[49152]{0}', space=vmem, size = 0xc000, scoped, tag = 'output window, operand 0, single buffered']
    #allocation3 [shape = 's32[1]{0}', space=sflag, size = 0x4, scoped, tag = 'scoped memory for tpu_custom_call.1']
    %15 = vsyncpa [#allocation3], 0
    // Predicated region
    $region2: #{tpu_custom_call.1} parent=1 // pred_check
      _
    $region3: #{tpu_custom_call.1} parent=1 // pred_check_branch
      %17 = sbr.rel (0) target = $region5
    $region4: #{tpu_custom_call.1} parent=1 // pred_region
      _
    $region5: #{tpu_custom_call.1} parent=1 // pred_fallthru
      _
    // Predicated region
    $region6: #{tpu_custom_call.1} parent=1 // pred_check
      _
    $region7: #{tpu_custom_call.1} parent=1 // pred_check_branch
      %19 = sbr.rel (0) target = $region9
    $region8: #{tpu_custom_call.1} parent=1 // pred_region
      _
    $region9: #{tpu_custom_call.1} parent=1 // pred_fallthru
      _
    // Predicated region
    $region10: #{tpu_custom_call.1} parent=1 // pred_check
      _
    $region11: #{tpu_custom_call.1} parent=1 // pred_check_branch
      %21 = sbr.rel (0) target = $region13
    $region12: #{tpu_custom_call.1} parent=1 // pred_region
      _
    $region13: #{tpu_custom_call.1} parent=1 // pred_fallthru
      _
    // Predicated region
    $region14: #{tpu_custom_call.1} parent=1 // pred_check
      _
    $region15: #{tpu_custom_call.1} parent=1 // pred_check_branch
      %23 = sbr.rel (0) target = $region17
    $region16: #{tpu_custom_call.1} parent=1 // pred_region
      _
    $region17: #{tpu_custom_call.1} parent=1 // pred_fallthru
      _
    // Predicated region
    $region18: #{tpu_custom_call.1} parent=1 // pred_check
      _
    $region19: #{tpu_custom_call.1} parent=1 // pred_check_branch
      %25 = sbr.rel (0) target = $region21
    $region20: #{tpu_custom_call.1} parent=1 // pred_region
      _
    $region21: #{tpu_custom_call.1} parent=1 // pred_fallthru
      _
    // Predicated region
    $region22: #{tpu_custom_call.1} parent=1 // pred_check
      _
    $region23: #{tpu_custom_call.1} parent=1 // pred_check_branch
      %27 = sbr.rel (0) target = $region25
    $region24: #{tpu_custom_call.1} parent=1 // pred_region
      _
    $region25: #{tpu_custom_call.1} parent=1 // pred_fallthru
      _
    // Predicated region
    $region26: #{tpu_custom_call.1} parent=1 // pred_check
      _
    $region27: #{tpu_custom_call.1} parent=1 // pred_check_branch
      %29 = sbr.rel (0) target = $region29
    $region28: #{tpu_custom_call.1} parent=1 // pred_region
      _
    $region29: #{tpu_custom_call.1} parent=1 // pred_fallthru
      _
    // Predicated region
    $region30: #{tpu_custom_call.1} parent=1 // pred_check
      _
    $region31: #{tpu_custom_call.1} parent=1 // pred_check_branch
      %31 = sbr.rel (0) target = $region33
    $region32: #{tpu_custom_call.1} parent=1 // pred_region
      _
    $region33: #{tpu_custom_call.1} parent=1 // pred_fallthru
      _
    // Predicated region
    $region34: #{tpu_custom_call.1} parent=1 // pred_check
      _
    $region35: #{tpu_custom_call.1} parent=1 // pred_check_branch
      %33 = sbr.rel (0) target = $region37
    $region36: #{tpu_custom_call.1} parent=1 // pred_region
      _
    $region37: #{tpu_custom_call.1} parent=1 // pred_fallthru
      _
    // Predicated region
    $region38: #{tpu_custom_call.1} parent=1 // pred_check
      _
    $region39: #{tpu_custom_call.1} parent=1 // pred_check_branch
      %35 = sbr.rel (0) target = $region41
    $region40: #{tpu_custom_call.1} parent=1 // pred_region
      _
    $region41: #{tpu_custom_call.1} parent=1 // pred_fallthru
      _
    %v37 = vld [vmem:[%s1] sm:$0x7]
    %v38 = vld [vmem:[%s0] sm:$0xff]
    %v39 = vld [vmem:[%s0 + $0x8] sm:$0xf]
    %v42 = vunpack.c.l.b16 %v38
    %v43 = vunpack.c.h.b16 %v38
    %v44 = vunpack.c.l.b16 %v39
    %v45 = vpack.c.b16 %v42, %v42
    %v46 = vpack.c.b16 %v43, %v43
    %v47 = vpack.c.b16 %v44, %v44
    %48 = vrot.lane.b32.xlu0 %v45, 1
    %v49 = vpop.permute.xlu0 %48
    %50 = vrot.lane.b32.xlu0 %v46, 1
    %v51 = vpop.permute.xlu0 %50
    %52 = vrot.lane.b32.xlu0 %v47, 1
    %v53 = vpop.permute.xlu0 %52
    %vm54 = vcmask 7168
    %v55 = vsel %vm54, %v49, %v51
    %v56 = vsel %vm54, %v51, %v53
    %vm57 = vcmask 7168
    %v60 = vsel %vm57, 0, %v49
    %v62 = vsel %vm57, %v53, 0
    %v64 = vrot.slane %v60, 3
    %v65 = vrot.slane %v55, 3
    %v66 = vrot.slane %v56, 3
    %v68 = vrot.slane %v60, 7
    %v69 = vrot.slane %v55, 7
    %v70 = vrot.slane %v56, 7
    %v71 = vrot.slane %v62, 7
    %72 = vrot.lane.b32.xlu0 %v68, 127
    %v73 = vpop.permute.xlu0 %72
    %74 = vrot.lane.b32.xlu0 %v69, 127
    %v75 = vpop.permute.xlu0 %74
    %76 = vrot.lane.b32.xlu0 %v70, 127
    %v77 = vpop.permute.xlu0 %76
    %78 = vrot.lane.b32.xlu0 %v71, 127
    %v79 = vpop.permute.xlu0 %78
    %vm80 = vcmask 1039360
    %v81 = vsel %vm80, %v73, %v75
    %v82 = vsel %vm80, %v75, %v77
    %v83 = vsel %vm80, %v77, %v79
    %v84 = vrot.slane %v62, 3
    %85 = vrot.lane.b32.xlu0 %v64, 126
    %v86 = vpop.permute.xlu0 %85
    %87 = vrot.lane.b32.xlu0 %v65, 126
    %v88 = vpop.permute.xlu0 %87
    %89 = vrot.lane.b32.xlu0 %v66, 126
    %v90 = vpop.permute.xlu0 %89
    %91 = vrot.lane.b32.xlu0 %v84, 126
    %v92 = vpop.permute.xlu0 %91
    %vm93 = vcmask 1031168
    %v94 = vsel %vm93, %v86, %v88
    %v95 = vsel %vm93, %v88, %v90
    %v96 = vsel %vm93, %v90, %v92
    %vm97 = vcmask 1040384
    %v100 = vsel %vm97, %v64, %v81
    %v103 = vsel %vm97, %v65, %v82
    %v106 = vsel %vm97, %v66, %v83
    %vm107 = vcmask 1044480
    %v109 = vsel %vm107, %v100, %v94
    %v112 = vsel %vm107, %v103, %v95
    %v115 = vsel %vm107, %v106, %v96
    %v117 = vld [vmem:[%s4] sm:$0xf]
    %v118 = vld [vmem:[%s4 + $0x4] sm:$0xf]
    %v119 = vld [vmem:[%s4 + $0x8] sm:$0xf]
    %v120 = vld [vmem:[%s4 + $0xc] sm:$0xf]
    %v121 = vld [vmem:[%s4 + $0x10] sm:$0xf]
    %v122 = vld [vmem:[%s4 + $0x14] sm:$0xf]
    %v123 = vld [vmem:[%s4 + $0x18] sm:$0xf]
    %v124 = vld [vmem:[%s4 + $0x1c] sm:$0xf]
    %v125 = vld [vmem:[%s4 + $0x20] sm:$0xf]
    %v126 = vld [vmem:[%s4 + $0x24] sm:$0xf]
    %v127 = vld [vmem:[%s4 + $0x28] sm:$0xf]
    %v128 = vld [vmem:[%s4 + $0x2c] sm:$0xf]
    %v129 = vld [vmem:[%s4 + $0x30] sm:$0xf]
    %v130 = vld [vmem:[%s4 + $0x34] sm:$0xf]
    %v131 = vld [vmem:[%s4 + $0x38] sm:$0xf]
    %v132 = vld [vmem:[%s4 + $0x3c] sm:$0xf]
    %v133 = vld [vmem:[%s4 + $0x40] sm:$0xf]
    %v134 = vld [vmem:[%s4 + $0x44] sm:$0xf]
    %v135 = vld [vmem:[%s4 + $0x48] sm:$0xf]
    %v136 = vld [vmem:[%s4 + $0x4c] sm:$0xf]
    %v137 = vld [vmem:[%s4 + $0x50] sm:$0xf]
    %v138 = vld [vmem:[%s4 + $0x54] sm:$0xf]
    %v139 = vld [vmem:[%s4 + $0x58] sm:$0xf]
    %v140 = vld [vmem:[%s4 + $0x5c] sm:$0xf]
    %v141 = vld [vmem:[%s4 + $0x60] sm:$0xf]
    %v142 = vld [vmem:[%s4 + $0x64] sm:$0xf]
    %v143 = vld [vmem:[%s4 + $0x68] sm:$0xf]
    %v144 = vld [vmem:[%s4 + $0x6c] sm:$0xf]
    %v145 = vld [vmem:[%s4 + $0x70] sm:$0xf]
    %v146 = vld [vmem:[%s4 + $0x74] sm:$0xf]
    %v147 = vld [vmem:[%s4 + $0x78] sm:$0xf]
    %v148 = vld [vmem:[%s4 + $0x7c] sm:$0xf]
    %v149 = vld [vmem:[%s7] sm:$0xff]
    %v150 = vld [vmem:[%s7 + $0x8] sm:$0xff]
    %v151 = vld [vmem:[%s7 + $0x10] sm:$0xff]
    %v152 = vld [vmem:[%s7 + $0x18] sm:$0xff]
    %v153 = vld [vmem:[%s7 + $0x20] sm:$0xff]
    %v154 = vld [vmem:[%s7 + $0x28] sm:$0xff]
    %v155 = vld [vmem:[%s7 + $0x30] sm:$0xff]
    %v156 = vld [vmem:[%s7 + $0x38] sm:$0xff]
    %v157 = vld [vmem:[%s7 + $0x40] sm:$0xff]
    %v158 = vld [vmem:[%s7 + $0x48] sm:$0xff]
    %v159 = vld [vmem:[%s7 + $0x50] sm:$0xff]
    %v160 = vld [vmem:[%s7 + $0x58] sm:$0xff]
    %v161 = vld [vmem:[%s7 + $0x60] sm:$0xff]
    %v162 = vld [vmem:[%s7 + $0x68] sm:$0xff]
    %v163 = vld [vmem:[%s7 + $0x70] sm:$0xff]
    %v164 = vld [vmem:[%s7 + $0x78] sm:$0xff]
    %v165 = vld [vmem:[%s7 + $0x80] sm:$0xff]
    %v166 = vld [vmem:[%s7 + $0x88] sm:$0xff]
    %v167 = vld [vmem:[%s7 + $0x90] sm:$0xff]
    %v168 = vld [vmem:[%s7 + $0x98] sm:$0xff]
    %v169 = vld [vmem:[%s7 + $0xa0] sm:$0xff]
    %v170 = vld [vmem:[%s7 + $0xa8] sm:$0xff]
    %v171 = vld [vmem:[%s7 + $0xb0] sm:$0xff]
    %v172 = vld [vmem:[%s7 + $0xb8] sm:$0xff]
    %v173 = vld [vmem:[%s7 + $0xc0] sm:$0xff]
    %v174 = vld [vmem:[%s7 + $0xc8] sm:$0xff]
    %v175 = vld [vmem:[%s7 + $0xd0] sm:$0xff]
    %v176 = vld [vmem:[%s7 + $0xd8] sm:$0xff]
    %v177 = vld [vmem:[%s7 + $0xe0] sm:$0xff]
    %v178 = vld [vmem:[%s7 + $0xe8] sm:$0xff]
    %v179 = vld [vmem:[%s7 + $0xf0] sm:$0xff]
    %v180 = vld [vmem:[%s7 + $0xf8] sm:$0xff]
    %v181 = vld [vmem:[%s2] sm:$0xff]
    %v182 = vld [vmem:[%s2 + $0x8] sm:$0xff]
    %v183 = vld [vmem:[%s2 + $0x10] sm:$0xff]
    %v184 = vld [vmem:[%s2 + $0x18] sm:$0xff]
    %v185 = vld [vmem:[%s2 + $0x20] sm:$0xff]
    %v186 = vld [vmem:[%s2 + $0x28] sm:$0xff]
    %v187 = vld [vmem:[%s2 + $0x30] sm:$0xff]
    %v188 = vld [vmem:[%s2 + $0x38] sm:$0xff]
    %v189 = vld [vmem:[%s2 + $0x40] sm:$0xff]
    %v190 = vld [vmem:[%s2 + $0x48] sm:$0xff]
    %v191 = vld [vmem:[%s2 + $0x50] sm:$0xff]
    %v192 = vld [vmem:[%s2 + $0x58] sm:$0xff]
    %v193 = vld [vmem:[%s2 + $0x60] sm:$0xff]
    %v194 = vld [vmem:[%s2 + $0x68] sm:$0xff]
    %v195 = vld [vmem:[%s2 + $0x70] sm:$0xff]
    %v196 = vld [vmem:[%s2 + $0x78] sm:$0xff]
    %v197 = vld [vmem:[%s2 + $0x80] sm:$0xff]
    %v198 = vld [vmem:[%s2 + $0x88] sm:$0xff]
    %v199 = vld [vmem:[%s2 + $0x90] sm:$0xff]
    %v200 = vld [vmem:[%s2 + $0x98] sm:$0xff]
    %v201 = vld [vmem:[%s2 + $0xa0] sm:$0xff]
    %v202 = vld [vmem:[%s2 + $0xa8] sm:$0xff]
    %v203 = vld [vmem:[%s2 + $0xb0] sm:$0xff]
    %v204 = vld [vmem:[%s2 + $0xb8] sm:$0xff]
    %v205 = vld [vmem:[%s2 + $0xc0] sm:$0xff]
    %v206 = vld [vmem:[%s2 + $0xc8] sm:$0xff]
    %v207 = vld [vmem:[%s2 + $0xd0] sm:$0xff]
    %v208 = vld [vmem:[%s2 + $0xd8] sm:$0xff]
    %v209 = vld [vmem:[%s2 + $0xe0] sm:$0xff]
    %v210 = vld [vmem:[%s2 + $0xe8] sm:$0xff]
    %v211 = vld [vmem:[%s2 + $0xf0] sm:$0xff]
    %v212 = vld [vmem:[%s2 + $0xf8] sm:$0xff]
    %214 = vset.pattern.permute.xlu0 0
    %215 = vperm.xlu0 %214, %v149
    %v216 = vpop.permute.xlu0 %215
    %219 = vset.pattern.permute.xlu0 0
    %220 = vperm.xlu0 %219, %v150
    %v221 = vpop.permute.xlu0 %220
    %224 = vset.pattern.permute.xlu0 0
    %225 = vperm.xlu0 %224, %v151
    %v226 = vpop.permute.xlu0 %225
    %229 = vset.pattern.permute.xlu0 0
    %230 = vperm.xlu0 %229, %v152
    %v231 = vpop.permute.xlu0 %230
    %234 = vset.pattern.permute.xlu0 0
    %235 = vperm.xlu0 %234, %v153
    %v236 = vpop.permute.xlu0 %235
    %239 = vset.pattern.permute.xlu0 0
    %240 = vperm.xlu0 %239, %v154
    %v241 = vpop.permute.xlu0 %240
    %244 = vset.pattern.permute.xlu0 0
    %245 = vperm.xlu0 %244, %v155
    %v246 = vpop.permute.xlu0 %245
    %249 = vset.pattern.permute.xlu0 0
    %250 = vperm.xlu0 %249, %v156
    %v251 = vpop.permute.xlu0 %250
    %254 = vset.pattern.permute.xlu0 0
    %255 = vperm.xlu0 %254, %v157
    %v256 = vpop.permute.xlu0 %255
    %259 = vset.pattern.permute.xlu0 0
    %260 = vperm.xlu0 %259, %v158
    %v261 = vpop.permute.xlu0 %260
    %264 = vset.pattern.permute.xlu0 0
    %265 = vperm.xlu0 %264, %v159
    %v266 = vpop.permute.xlu0 %265
    %269 = vset.pattern.permute.xlu0 0
    %270 = vperm.xlu0 %269, %v160
    %v271 = vpop.permute.xlu0 %270
    %274 = vset.pattern.permute.xlu0 0
    %275 = vperm.xlu0 %274, %v161
    %v276 = vpop.permute.xlu0 %275
    %279 = vset.pattern.permute.xlu0 0
    %280 = vperm.xlu0 %279, %v162
    %v281 = vpop.permute.xlu0 %280
    %284 = vset.pattern.permute.xlu0 0
    %285 = vperm.xlu0 %284, %v163
    %v286 = vpop.permute.xlu0 %285
    %289 = vset.pattern.permute.xlu0 0
    %290 = vperm.xlu0 %289, %v164
    %v291 = vpop.permute.xlu0 %290
    %294 = vset.pattern.permute.xlu0 0
    %295 = vperm.xlu0 %294, %v165
    %v296 = vpop.permute.xlu0 %295
    %299 = vset.pattern.permute.xlu0 0
    %300 = vperm.xlu0 %299, %v166
    %v301 = vpop.permute.xlu0 %300
    %304 = vset.pattern.permute.xlu0 0
    %305 = vperm.xlu0 %304, %v167
    %v306 = vpop.permute.xlu0 %305
    %309 = vset.pattern.permute.xlu0 0
    %310 = vperm.xlu0 %309, %v168
    %v311 = vpop.permute.xlu0 %310
    %314 = vset.pattern.permute.xlu0 0
    %315 = vperm.xlu0 %314, %v169
    %v316 = vpop.permute.xlu0 %315
    %319 = vset.pattern.permute.xlu0 0
    %320 = vperm.xlu0 %319, %v170
    %v321 = vpop.permute.xlu0 %320
    %324 = vset.pattern.permute.xlu0 0
    %325 = vperm.xlu0 %324, %v171
    %v326 = vpop.permute.xlu0 %325
    %329 = vset.pattern.permute.xlu0 0
    %330 = vperm.xlu0 %329, %v172
    %v331 = vpop.permute.xlu0 %330
    %334 = vset.pattern.permute.xlu0 0
    %335 = vperm.xlu0 %334, %v173
    %v336 = vpop.permute.xlu0 %335
    %339 = vset.pattern.permute.xlu0 0
    %340 = vperm.xlu0 %339, %v174
    %v341 = vpop.permute.xlu0 %340
    %344 = vset.pattern.permute.xlu0 0
    %345 = vperm.xlu0 %344, %v175
    %v346 = vpop.permute.xlu0 %345
    %349 = vset.pattern.permute.xlu0 0
    %350 = vperm.xlu0 %349, %v176
    %v351 = vpop.permute.xlu0 %350
    %354 = vset.pattern.permute.xlu0 0
    %355 = vperm.xlu0 %354, %v177
    %v356 = vpop.permute.xlu0 %355
    %359 = vset.pattern.permute.xlu0 0
    %360 = vperm.xlu0 %359, %v178
    %v361 = vpop.permute.xlu0 %360
    %364 = vset.pattern.permute.xlu0 0
    %365 = vperm.xlu0 %364, %v179
    %v366 = vpop.permute.xlu0 %365
    %369 = vset.pattern.permute.xlu0 0
    %370 = vperm.xlu0 %369, %v180
    %v371 = vpop.permute.xlu0 %370
    %v405 = vunpack.c.l.b16 %v117
    %v406 = vunpack.c.l.b16 %v118
    %v407 = vunpack.c.l.b16 %v119
    %v408 = vunpack.c.l.b16 %v120
    %v409 = vunpack.c.l.b16 %v121
    %v410 = vunpack.c.l.b16 %v122
    %v411 = vunpack.c.l.b16 %v123
    %v412 = vunpack.c.l.b16 %v124
    %v413 = vunpack.c.l.b16 %v125
    %v414 = vunpack.c.l.b16 %v126
    %v415 = vunpack.c.l.b16 %v127
    %v416 = vunpack.c.l.b16 %v128
    %v417 = vunpack.c.l.b16 %v129
    %v418 = vunpack.c.l.b16 %v130
    %v419 = vunpack.c.l.b16 %v131
    %v420 = vunpack.c.l.b16 %v132
    %v421 = vunpack.c.l.b16 %v133
    %v422 = vunpack.c.l.b16 %v134
    %v423 = vunpack.c.l.b16 %v135
    %v424 = vunpack.c.l.b16 %v136
    %v425 = vunpack.c.l.b16 %v137
    %v426 = vunpack.c.l.b16 %v138
    %v427 = vunpack.c.l.b16 %v139
    %v428 = vunpack.c.l.b16 %v140
    %v429 = vunpack.c.l.b16 %v141
    %v430 = vunpack.c.l.b16 %v142
    %v431 = vunpack.c.l.b16 %v143
    %v432 = vunpack.c.l.b16 %v144
    %v433 = vunpack.c.l.b16 %v145
    %v434 = vunpack.c.l.b16 %v146
    %v435 = vunpack.c.l.b16 %v147
    %v436 = vunpack.c.l.b16 %v148
    %v437 = vpack.c.b16 %v406, %v405
    %v438 = vpack.c.b16 %v408, %v407
    %v439 = vpack.c.b16 %v410, %v409
    %v440 = vpack.c.b16 %v412, %v411
    %v441 = vpack.c.b16 %v414, %v413
    %v442 = vpack.c.b16 %v416, %v415
    %v443 = vpack.c.b16 %v418, %v417
    %v444 = vpack.c.b16 %v420, %v419
    %v445 = vpack.c.b16 %v422, %v421
    %v446 = vpack.c.b16 %v424, %v423
    %v447 = vpack.c.b16 %v426, %v425
    %v448 = vpack.c.b16 %v428, %v427
    %v449 = vpack.c.b16 %v430, %v429
    %v450 = vpack.c.b16 %v432, %v431
    %v451 = vpack.c.b16 %v434, %v433
    %v452 = vpack.c.b16 %v436, %v435
    %vm453 = vcmask 146432
    %v455 = vsel %vm453, %v437, 0
    %v458 = vsel %vm453, %v438, 0
    %v461 = vsel %vm453, %v439, 0
    %v464 = vsel %vm453, %v440, 0
    %v467 = vsel %vm453, %v441, 0
    %v470 = vsel %vm453, %v442, 0
    %v473 = vsel %vm453, %v443, 0
    %v476 = vsel %vm453, %v444, 0
    %v479 = vsel %vm453, %v445, 0
    %v482 = vsel %vm453, %v446, 0
    %v485 = vsel %vm453, %v447, 0
    %v488 = vsel %vm453, %v448, 0
    %v491 = vsel %vm453, %v449, 0
    %v494 = vsel %vm453, %v450, 0
    %v497 = vsel %vm453, %v451, 0
    %v500 = vsel %vm453, %v452, 0
    %v502 = vsel %vm97, %v94, 0
    %v504 = vsel %vm97, %v95, 0
    %v506 = vsel %vm97, %v96, 0
    %508 = vmatpush.bf16.msra.mxu0 0
    %509 = vmatpush.bf16.msra.mxu0 0
    %510 = vmatpush.bf16.msra.mxu0 0
    %511 = vmatpush.bf16.msra.mxu0 0
    %512 = vmatpush.bf16.msra.mxu0 0
    %513 = vmatpush.bf16.msra.mxu0 0
    %514 = vmatpush.bf16.msra.mxu0 %v502
    %515 = vmatpush.bf16.msra.mxu0 %v109
    %516 = vmatmul.bf16.gmra.mxu0 %v455
    %v517 = vpop.f32.mrf.mxu0
    %v518 = vadd.f32 %v216, %v517
    %v519 = vpop.f32.mrf.mxu0
    %v520 = vadd.f32 %v221, %v519
    %521 = vmatmul.bf16.gmra.mxu0 %v458
    %v522 = vpop.f32.mrf.mxu0
    %v523 = vadd.f32 %v226, %v522
    %v524 = vpop.f32.mrf.mxu0
    %v525 = vadd.f32 %v231, %v524
    %526 = vmatmul.bf16.gmra.mxu0 %v461
    %v527 = vpop.f32.mrf.mxu0
    %v528 = vadd.f32 %v236, %v527
    %v529 = vpop.f32.mrf.mxu0
    %v530 = vadd.f32 %v241, %v529
    %531 = vmatmul.bf16.gmra.mxu0 %v464
    %v532 = vpop.f32.mrf.mxu0
    %v533 = vadd.f32 %v246, %v532
    %v534 = vpop.f32.mrf.mxu0
    %v535 = vadd.f32 %v251, %v534
    %536 = vmatmul.bf16.gmra.mxu0 %v467
    %v537 = vpop.f32.mrf.mxu0
    %v538 = vadd.f32 %v256, %v537
    %v539 = vpop.f32.mrf.mxu0
    %v540 = vadd.f32 %v261, %v539
    %541 = vmatmul.bf16.gmra.mxu0 %v470
    %v542 = vpop.f32.mrf.mxu0
    %v543 = vadd.f32 %v266, %v542
    %v544 = vpop.f32.mrf.mxu0
    %v545 = vadd.f32 %v271, %v544
    %546 = vmatmul.bf16.gmra.mxu0 %v473
    %v547 = vpop.f32.mrf.mxu0
    %v548 = vadd.f32 %v276, %v547
    %v549 = vpop.f32.mrf.mxu0
    %v550 = vadd.f32 %v281, %v549
    %551 = vmatmul.bf16.gmra.mxu0 %v476
    %v552 = vpop.f32.mrf.mxu0
    %v553 = vadd.f32 %v286, %v552
    %v554 = vpop.f32.mrf.mxu0
    %v555 = vadd.f32 %v291, %v554
    %556 = vmatmul.bf16.gmra.mxu0 %v479
    %v557 = vpop.f32.mrf.mxu0
    %v558 = vadd.f32 %v296, %v557
    %v559 = vpop.f32.mrf.mxu0
    %v560 = vadd.f32 %v301, %v559
    %561 = vmatmul.bf16.gmra.mxu0 %v482
    %v562 = vpop.f32.mrf.mxu0
    %v563 = vadd.f32 %v306, %v562
    %v564 = vpop.f32.mrf.mxu0
    %v565 = vadd.f32 %v311, %v564
    %566 = vmatmul.bf16.gmra.mxu0 %v485
    %v567 = vpop.f32.mrf.mxu0
    %v568 = vadd.f32 %v316, %v567
    %v569 = vpop.f32.mrf.mxu0
    %v570 = vadd.f32 %v321, %v569
    %571 = vmatmul.bf16.gmra.mxu0 %v488
    %v572 = vpop.f32.mrf.mxu0
    %v573 = vadd.f32 %v326, %v572
    %v574 = vpop.f32.mrf.mxu0
    %v575 = vadd.f32 %v331, %v574
    %576 = vmatmul.bf16.gmra.mxu0 %v491
    %v577 = vpop.f32.mrf.mxu0
    %v578 = vadd.f32 %v336, %v577
    %v579 = vpop.f32.mrf.mxu0
    %v580 = vadd.f32 %v341, %v579
    %581 = vmatmul.bf16.gmra.mxu0 %v494
    %v582 = vpop.f32.mrf.mxu0
    %v583 = vadd.f32 %v346, %v582
    %v584 = vpop.f32.mrf.mxu0
    %v585 = vadd.f32 %v351, %v584
    %586 = vmatmul.bf16.gmra.mxu0 %v497
    %v587 = vpop.f32.mrf.mxu0
    %v588 = vadd.f32 %v356, %v587
    %v589 = vpop.f32.mrf.mxu0
    %v590 = vadd.f32 %v361, %v589
    %591 = vmatmul.bf16.gmra.mxu0 %v500
    %v592 = vpop.f32.mrf.mxu0
    %v593 = vadd.f32 %v366, %v592
    %v594 = vpop.f32.mrf.mxu0
    %v595 = vadd.f32 %v371, %v594
    %596 = vdwg.mxu0
    %597 = vmatpush.bf16.msra.mxu0 0
    %598 = vmatpush.bf16.msra.mxu0 0
    %599 = vmatpush.bf16.msra.mxu0 0
    %600 = vmatpush.bf16.msra.mxu0 0
    %601 = vmatpush.bf16.msra.mxu0 0
    %602 = vmatpush.bf16.msra.mxu0 0
    %603 = vmatpush.bf16.msra.mxu0 %v504
    %604 = vmatpush.bf16.msra.mxu0 %v112
    %605 = vmatmul.bf16.gmra.mxu0 %v455
    %v606 = vpop.f32.mrf.mxu0
    %v607 = vadd.f32 %v216, %v606
    %v608 = vpop.f32.mrf.mxu0
    %v609 = vadd.f32 %v221, %v608
    %610 = vmatmul.bf16.gmra.mxu0 %v458
    %v611 = vpop.f32.mrf.mxu0
    %v612 = vadd.f32 %v226, %v611
    %v613 = vpop.f32.mrf.mxu0
    %v614 = vadd.f32 %v231, %v613
    %615 = vmatmul.bf16.gmra.mxu0 %v461
    %v616 = vpop.f32.mrf.mxu0
    %v617 = vadd.f32 %v236, %v616
    %v618 = vpop.f32.mrf.mxu0
    %v619 = vadd.f32 %v241, %v618
    %620 = vmatmul.bf16.gmra.mxu0 %v464
    %v621 = vpop.f32.mrf.mxu0
    %v622 = vadd.f32 %v246, %v621
    %v623 = vpop.f32.mrf.mxu0
    %v624 = vadd.f32 %v251, %v623
    %625 = vmatmul.bf16.gmra.mxu0 %v467
    %v626 = vpop.f32.mrf.mxu0
    %v627 = vadd.f32 %v256, %v626
    %v628 = vpop.f32.mrf.mxu0
    %v629 = vadd.f32 %v261, %v628
    %630 = vmatmul.bf16.gmra.mxu0 %v470
    %v631 = vpop.f32.mrf.mxu0
    %v632 = vadd.f32 %v266, %v631
    %v633 = vpop.f32.mrf.mxu0
    %v634 = vadd.f32 %v271, %v633
    %635 = vmatmul.bf16.gmra.mxu0 %v473
    %v636 = vpop.f32.mrf.mxu0
    %v637 = vadd.f32 %v276, %v636
    %v638 = vpop.f32.mrf.mxu0
    %v639 = vadd.f32 %v281, %v638
    %640 = vmatmul.bf16.gmra.mxu0 %v476
    %v641 = vpop.f32.mrf.mxu0
    %v642 = vadd.f32 %v286, %v641
    %v643 = vpop.f32.mrf.mxu0
    %v644 = vadd.f32 %v291, %v643
    %645 = vmatmul.bf16.gmra.mxu0 %v479
    %v646 = vpop.f32.mrf.mxu0
    %v647 = vadd.f32 %v296, %v646
    %v648 = vpop.f32.mrf.mxu0
    %v649 = vadd.f32 %v301, %v648
    %650 = vmatmul.bf16.gmra.mxu0 %v482
    %v651 = vpop.f32.mrf.mxu0
    %v652 = vadd.f32 %v306, %v651
    %v653 = vpop.f32.mrf.mxu0
    %v654 = vadd.f32 %v311, %v653
    %655 = vmatmul.bf16.gmra.mxu0 %v485
    %v656 = vpop.f32.mrf.mxu0
    %v657 = vadd.f32 %v316, %v656
    %v658 = vpop.f32.mrf.mxu0
    %v659 = vadd.f32 %v321, %v658
    %660 = vmatmul.bf16.gmra.mxu0 %v488
    %v661 = vpop.f32.mrf.mxu0
    %v662 = vadd.f32 %v326, %v661
    %v663 = vpop.f32.mrf.mxu0
    %v664 = vadd.f32 %v331, %v663
    %665 = vmatmul.bf16.gmra.mxu0 %v491
    %v666 = vpop.f32.mrf.mxu0
    %v667 = vadd.f32 %v336, %v666
    %v668 = vpop.f32.mrf.mxu0
    %v669 = vadd.f32 %v341, %v668
    %670 = vmatmul.bf16.gmra.mxu0 %v494
    %v671 = vpop.f32.mrf.mxu0
    %v672 = vadd.f32 %v346, %v671
    %v673 = vpop.f32.mrf.mxu0
    %v674 = vadd.f32 %v351, %v673
    %675 = vmatmul.bf16.gmra.mxu0 %v497
    %v676 = vpop.f32.mrf.mxu0
    %v677 = vadd.f32 %v356, %v676
    %v678 = vpop.f32.mrf.mxu0
    %v679 = vadd.f32 %v361, %v678
    %680 = vmatmul.bf16.gmra.mxu0 %v500
    %v681 = vpop.f32.mrf.mxu0
    %v682 = vadd.f32 %v366, %v681
    %v683 = vpop.f32.mrf.mxu0
    %v684 = vadd.f32 %v371, %v683
    %685 = vdwg.mxu0
    %686 = vmatpush.bf16.msra.mxu0 0
    %687 = vmatpush.bf16.msra.mxu0 0
    %688 = vmatpush.bf16.msra.mxu0 0
    %689 = vmatpush.bf16.msra.mxu0 0
    %690 = vmatpush.bf16.msra.mxu0 0
    %691 = vmatpush.bf16.msra.mxu0 0
    %692 = vmatpush.bf16.msra.mxu0 %v506
    %693 = vmatpush.bf16.msra.mxu0 %v115
    %694 = vmatmul.bf16.gmra.mxu0 %v455
    %v695 = vpop.f32.mrf.mxu0
    %v696 = vadd.f32 %v216, %v695
    %v697 = vpop.f32.mrf.mxu0
    %v698 = vadd.f32 %v221, %v697
    %699 = vmatmul.bf16.gmra.mxu0 %v458
    %v700 = vpop.f32.mrf.mxu0
    %v701 = vadd.f32 %v226, %v700
    %v702 = vpop.f32.mrf.mxu0
    %v703 = vadd.f32 %v231, %v702
    %704 = vmatmul.bf16.gmra.mxu0 %v461
    %v705 = vpop.f32.mrf.mxu0
    %v706 = vadd.f32 %v236, %v705
    %v707 = vpop.f32.mrf.mxu0
    %v708 = vadd.f32 %v241, %v707
    %709 = vmatmul.bf16.gmra.mxu0 %v464
    %v710 = vpop.f32.mrf.mxu0
    %v711 = vadd.f32 %v246, %v710
    %v712 = vpop.f32.mrf.mxu0
    %v713 = vadd.f32 %v251, %v712
    %714 = vmatmul.bf16.gmra.mxu0 %v467
    %v715 = vpop.f32.mrf.mxu0
    %v716 = vadd.f32 %v256, %v715
    %v717 = vpop.f32.mrf.mxu0
    %v718 = vadd.f32 %v261, %v717
    %719 = vmatmul.bf16.gmra.mxu0 %v470
    %v720 = vpop.f32.mrf.mxu0
    %v721 = vadd.f32 %v266, %v720
    %v722 = vpop.f32.mrf.mxu0
    %v723 = vadd.f32 %v271, %v722
    %724 = vmatmul.bf16.gmra.mxu0 %v473
    %v725 = vpop.f32.mrf.mxu0
    %v726 = vadd.f32 %v276, %v725
    %v727 = vpop.f32.mrf.mxu0
    %v728 = vadd.f32 %v281, %v727
    %729 = vmatmul.bf16.gmra.mxu0 %v476
    %v730 = vpop.f32.mrf.mxu0
    %v731 = vadd.f32 %v286, %v730
    %v732 = vpop.f32.mrf.mxu0
    %v733 = vadd.f32 %v291, %v732
    %734 = vmatmul.bf16.gmra.mxu0 %v479
    %v735 = vpop.f32.mrf.mxu0
    %v736 = vadd.f32 %v296, %v735
    %v737 = vpop.f32.mrf.mxu0
    %v738 = vadd.f32 %v301, %v737
    %739 = vmatmul.bf16.gmra.mxu0 %v482
    %v740 = vpop.f32.mrf.mxu0
    %v741 = vadd.f32 %v306, %v740
    %v742 = vpop.f32.mrf.mxu0
    %v743 = vadd.f32 %v311, %v742
    %744 = vmatmul.bf16.gmra.mxu0 %v485
    %v745 = vpop.f32.mrf.mxu0
    %v746 = vadd.f32 %v316, %v745
    %v747 = vpop.f32.mrf.mxu0
    %v748 = vadd.f32 %v321, %v747
    %749 = vmatmul.bf16.gmra.mxu0 %v488
    %v750 = vpop.f32.mrf.mxu0
    %v751 = vadd.f32 %v326, %v750
    %v752 = vpop.f32.mrf.mxu0
    %v753 = vadd.f32 %v331, %v752
    %754 = vmatmul.bf16.gmra.mxu0 %v491
    %v755 = vpop.f32.mrf.mxu0
    %v756 = vadd.f32 %v336, %v755
    %v757 = vpop.f32.mrf.mxu0
    %v758 = vadd.f32 %v341, %v757
    %759 = vmatmul.bf16.gmra.mxu0 %v494
    %v760 = vpop.f32.mrf.mxu0
    %v761 = vadd.f32 %v346, %v760
    %v762 = vpop.f32.mrf.mxu0
    %v763 = vadd.f32 %v351, %v762
    %764 = vmatmul.bf16.gmra.mxu0 %v497
    %v765 = vpop.f32.mrf.mxu0
    %v766 = vadd.f32 %v356, %v765
    %v767 = vpop.f32.mrf.mxu0
    %v768 = vadd.f32 %v361, %v767
    %769 = vmatmul.bf16.gmra.mxu0 %v500
    %v770 = vpop.f32.mrf.mxu0
    %v771 = vadd.f32 %v366, %v770
    %v772 = vpop.f32.mrf.mxu0
    %v773 = vadd.f32 %v371, %v772
    %774 = vdwg.mxu0
    %v775 = vmax.f32 %v518, 0.0
    %v776 = vmax.f32 %v607, 0.0
    %v777 = vmax.f32 %v696, 0.0
    %v778 = vmax.f32 %v520, 0.0
    %v779 = vmax.f32 %v609, 0.0
    %v780 = vmax.f32 %v698, 0.0
    %v781 = vmax.f32 %v523, 0.0
    %v782 = vmax.f32 %v612, 0.0
    %v783 = vmax.f32 %v701, 0.0
    %v784 = vmax.f32 %v525, 0.0
    %v785 = vmax.f32 %v614, 0.0
    %v786 = vmax.f32 %v703, 0.0
    %v787 = vmax.f32 %v528, 0.0
    %v788 = vmax.f32 %v617, 0.0
    %v789 = vmax.f32 %v706, 0.0
    %v790 = vmax.f32 %v530, 0.0
    %v791 = vmax.f32 %v619, 0.0
    %v792 = vmax.f32 %v708, 0.0
    %v793 = vmax.f32 %v533, 0.0
    %v794 = vmax.f32 %v622, 0.0
    %v795 = vmax.f32 %v711, 0.0
    %v796 = vmax.f32 %v535, 0.0
    %v797 = vmax.f32 %v624, 0.0
    %v798 = vmax.f32 %v713, 0.0
    %v799 = vmax.f32 %v538, 0.0
    %v800 = vmax.f32 %v627, 0.0
    %v801 = vmax.f32 %v716, 0.0
    %v802 = vmax.f32 %v540, 0.0
    %v803 = vmax.f32 %v629, 0.0
    %v804 = vmax.f32 %v718, 0.0
    %v805 = vmax.f32 %v543, 0.0
    %v806 = vmax.f32 %v632, 0.0
    %v807 = vmax.f32 %v721, 0.0
    %v808 = vmax.f32 %v545, 0.0
    %v809 = vmax.f32 %v634, 0.0
    %v810 = vmax.f32 %v723, 0.0
    %v811 = vmax.f32 %v548, 0.0
    %v812 = vmax.f32 %v637, 0.0
    %v813 = vmax.f32 %v726, 0.0
    %v814 = vmax.f32 %v550, 0.0
    %v815 = vmax.f32 %v639, 0.0
    %v816 = vmax.f32 %v728, 0.0
    %v817 = vmax.f32 %v553, 0.0
    %v818 = vmax.f32 %v642, 0.0
    %v819 = vmax.f32 %v731, 0.0
    %v820 = vmax.f32 %v555, 0.0
    %v821 = vmax.f32 %v644, 0.0
    %v822 = vmax.f32 %v733, 0.0
    %v823 = vmax.f32 %v558, 0.0
    %v824 = vmax.f32 %v647, 0.0
    %v825 = vmax.f32 %v736, 0.0
    %v826 = vmax.f32 %v560, 0.0
    %v827 = vmax.f32 %v649, 0.0
    %v828 = vmax.f32 %v738, 0.0
    %v829 = vmax.f32 %v563, 0.0
    %v830 = vmax.f32 %v652, 0.0
    %v831 = vmax.f32 %v741, 0.0
    %v832 = vmax.f32 %v565, 0.0
    %v833 = vmax.f32 %v654, 0.0
    %v834 = vmax.f32 %v743, 0.0
    %v835 = vmax.f32 %v568, 0.0
    %v836 = vmax.f32 %v657, 0.0
    %v837 = vmax.f32 %v746, 0.0
    %v838 = vmax.f32 %v570, 0.0
    %v839 = vmax.f32 %v659, 0.0
    %v840 = vmax.f32 %v748, 0.0
    %v841 = vmax.f32 %v573, 0.0
    %v842 = vmax.f32 %v662, 0.0
    %v843 = vmax.f32 %v751, 0.0
    %v844 = vmax.f32 %v575, 0.0
    %v845 = vmax.f32 %v664, 0.0
    %v846 = vmax.f32 %v753, 0.0
    %v847 = vmax.f32 %v578, 0.0
    %v848 = vmax.f32 %v667, 0.0
    %v849 = vmax.f32 %v756, 0.0
    %v850 = vmax.f32 %v580, 0.0
    %v851 = vmax.f32 %v669, 0.0
    %v852 = vmax.f32 %v758, 0.0
    %v853 = vmax.f32 %v583, 0.0
    %v854 = vmax.f32 %v672, 0.0
    %v855 = vmax.f32 %v761, 0.0
    %v856 = vmax.f32 %v585, 0.0
    %v857 = vmax.f32 %v674, 0.0
    %v858 = vmax.f32 %v763, 0.0
    %v859 = vmax.f32 %v588, 0.0
    %v860 = vmax.f32 %v677, 0.0
    %v861 = vmax.f32 %v766, 0.0
    %v862 = vmax.f32 %v590, 0.0
    %v863 = vmax.f32 %v679, 0.0
    %v864 = vmax.f32 %v768, 0.0
    %v865 = vmax.f32 %v593, 0.0
    %v866 = vmax.f32 %v682, 0.0
    %v867 = vmax.f32 %v771, 0.0
    %v868 = vmax.f32 %v595, 0.0
    %v869 = vmax.f32 %v684, 0.0
    %v870 = vmax.f32 %v773, 0.0
    %v871 = vperm.slane %v37, 0
    %v872 = vperm.slane %v37, 1
    %v873 = vperm.slane %v37, 2
    %874 = vset.pattern.permute.xlu0 0
    %875 = vperm.xlu0 %874, %v181
    %v876 = vpop.permute.xlu0 %875
    %877 = vset.pattern.permute.xlu0 0
    %878 = vperm.xlu0 %877, %v182
    %v879 = vpop.permute.xlu0 %878
    %880 = vset.pattern.permute.xlu0 0
    %881 = vperm.xlu0 %880, %v183
    %v882 = vpop.permute.xlu0 %881
    %883 = vset.pattern.permute.xlu0 0
    %884 = vperm.xlu0 %883, %v184
    %v885 = vpop.permute.xlu0 %884
    %886 = vset.pattern.permute.xlu0 0
    %887 = vperm.xlu0 %886, %v185
    %v888 = vpop.permute.xlu0 %887
    %889 = vset.pattern.permute.xlu0 0
    %890 = vperm.xlu0 %889, %v186
    %v891 = vpop.permute.xlu0 %890
    %892 = vset.pattern.permute.xlu0 0
    %893 = vperm.xlu0 %892, %v187
    %v894 = vpop.permute.xlu0 %893
    %895 = vset.pattern.permute.xlu0 0
    %896 = vperm.xlu0 %895, %v188
    %v897 = vpop.permute.xlu0 %896
    %898 = vset.pattern.permute.xlu0 0
    %899 = vperm.xlu0 %898, %v189
    %v900 = vpop.permute.xlu0 %899
    %901 = vset.pattern.permute.xlu0 0
    %902 = vperm.xlu0 %901, %v190
    %v903 = vpop.permute.xlu0 %902
    %904 = vset.pattern.permute.xlu0 0
    %905 = vperm.xlu0 %904, %v191
    %v906 = vpop.permute.xlu0 %905
    %907 = vset.pattern.permute.xlu0 0
    %908 = vperm.xlu0 %907, %v192
    %v909 = vpop.permute.xlu0 %908
    %910 = vset.pattern.permute.xlu0 0
    %911 = vperm.xlu0 %910, %v193
    %v912 = vpop.permute.xlu0 %911
    %913 = vset.pattern.permute.xlu0 0
    %914 = vperm.xlu0 %913, %v194
    %v915 = vpop.permute.xlu0 %914
    %916 = vset.pattern.permute.xlu0 0
    %917 = vperm.xlu0 %916, %v195
    %v918 = vpop.permute.xlu0 %917
    %919 = vset.pattern.permute.xlu0 0
    %920 = vperm.xlu0 %919, %v196
    %v921 = vpop.permute.xlu0 %920
    %922 = vset.pattern.permute.xlu0 0
    %923 = vperm.xlu0 %922, %v197
    %v924 = vpop.permute.xlu0 %923
    %925 = vset.pattern.permute.xlu0 0
    %926 = vperm.xlu0 %925, %v198
    %v927 = vpop.permute.xlu0 %926
    %928 = vset.pattern.permute.xlu0 0
    %929 = vperm.xlu0 %928, %v199
    %v930 = vpop.permute.xlu0 %929
    %931 = vset.pattern.permute.xlu0 0
    %932 = vperm.xlu0 %931, %v200
    %v933 = vpop.permute.xlu0 %932
    %934 = vset.pattern.permute.xlu0 0
    %935 = vperm.xlu0 %934, %v201
    %v936 = vpop.permute.xlu0 %935
    %937 = vset.pattern.permute.xlu0 0
    %938 = vperm.xlu0 %937, %v202
    %v939 = vpop.permute.xlu0 %938
    %940 = vset.pattern.permute.xlu0 0
    %941 = vperm.xlu0 %940, %v203
    %v942 = vpop.permute.xlu0 %941
    %943 = vset.pattern.permute.xlu0 0
    %944 = vperm.xlu0 %943, %v204
    %v945 = vpop.permute.xlu0 %944
    %946 = vset.pattern.permute.xlu0 0
    %947 = vperm.xlu0 %946, %v205
    %v948 = vpop.permute.xlu0 %947
    %949 = vset.pattern.permute.xlu0 0
    %950 = vperm.xlu0 %949, %v206
    %v951 = vpop.permute.xlu0 %950
    %952 = vset.pattern.permute.xlu0 0
    %953 = vperm.xlu0 %952, %v207
    %v954 = vpop.permute.xlu0 %953
    %955 = vset.pattern.permute.xlu0 0
    %956 = vperm.xlu0 %955, %v208
    %v957 = vpop.permute.xlu0 %956
    %958 = vset.pattern.permute.xlu0 0
    %959 = vperm.xlu0 %958, %v209
    %v960 = vpop.permute.xlu0 %959
    %961 = vset.pattern.permute.xlu0 0
    %962 = vperm.xlu0 %961, %v210
    %v963 = vpop.permute.xlu0 %962
    %964 = vset.pattern.permute.xlu0 0
    %965 = vperm.xlu0 %964, %v211
    %v966 = vpop.permute.xlu0 %965
    %967 = vset.pattern.permute.xlu0 0
    %968 = vperm.xlu0 %967, %v212
    %v969 = vpop.permute.xlu0 %968
    %vm970 = vcmp.lt.s32.totalorder %v871, %v876
    %vm971 = vcmp.lt.s32.totalorder %v872, %v876
    %vm972 = vcmp.lt.s32.totalorder %v873, %v876
    %vm973 = vcmp.lt.s32.totalorder %v871, %v879
    %vm974 = vcmp.lt.s32.totalorder %v872, %v879
    %vm975 = vcmp.lt.s32.totalorder %v873, %v879
    %vm976 = vcmp.lt.s32.totalorder %v871, %v882
    %vm977 = vcmp.lt.s32.totalorder %v872, %v882
    %vm978 = vcmp.lt.s32.totalorder %v873, %v882
    %vm979 = vcmp.lt.s32.totalorder %v871, %v885
    %vm980 = vcmp.lt.s32.totalorder %v872, %v885
    %vm981 = vcmp.lt.s32.totalorder %v873, %v885
    %vm982 = vcmp.lt.s32.totalorder %v871, %v888
    %vm983 = vcmp.lt.s32.totalorder %v872, %v888
    %vm984 = vcmp.lt.s32.totalorder %v873, %v888
    %vm985 = vcmp.lt.s32.totalorder %v871, %v891
    %vm986 = vcmp.lt.s32.totalorder %v872, %v891
    %vm987 = vcmp.lt.s32.totalorder %v873, %v891
    %vm988 = vcmp.lt.s32.totalorder %v871, %v894
    %vm989 = vcmp.lt.s32.totalorder %v872, %v894
    %vm990 = vcmp.lt.s32.totalorder %v873, %v894
    %vm991 = vcmp.lt.s32.totalorder %v871, %v897
    %vm992 = vcmp.lt.s32.totalorder %v872, %v897
    %vm993 = vcmp.lt.s32.totalorder %v873, %v897
    %vm994 = vcmp.lt.s32.totalorder %v871, %v900
    %vm995 = vcmp.lt.s32.totalorder %v872, %v900
    %vm996 = vcmp.lt.s32.totalorder %v873, %v900
    %vm997 = vcmp.lt.s32.totalorder %v871, %v903
    %vm998 = vcmp.lt.s32.totalorder %v872, %v903
    %vm999 = vcmp.lt.s32.totalorder %v873, %v903
    %vm1000 = vcmp.lt.s32.totalorder %v871, %v906
    %vm1001 = vcmp.lt.s32.totalorder %v872, %v906
    %vm1002 = vcmp.lt.s32.totalorder %v873, %v906
    %vm1003 = vcmp.lt.s32.totalorder %v871, %v909
    %vm1004 = vcmp.lt.s32.totalorder %v872, %v909
    %vm1005 = vcmp.lt.s32.totalorder %v873, %v909
    %vm1006 = vcmp.lt.s32.totalorder %v871, %v912
    %vm1007 = vcmp.lt.s32.totalorder %v872, %v912
    %vm1008 = vcmp.lt.s32.totalorder %v873, %v912
    %vm1009 = vcmp.lt.s32.totalorder %v871, %v915
    %vm1010 = vcmp.lt.s32.totalorder %v872, %v915
    %vm1011 = vcmp.lt.s32.totalorder %v873, %v915
    %vm1012 = vcmp.lt.s32.totalorder %v871, %v918
    %vm1013 = vcmp.lt.s32.totalorder %v872, %v918
    %vm1014 = vcmp.lt.s32.totalorder %v873, %v918
    %vm1015 = vcmp.lt.s32.totalorder %v871, %v921
    %vm1016 = vcmp.lt.s32.totalorder %v872, %v921
    %vm1017 = vcmp.lt.s32.totalorder %v873, %v921
    %vm1018 = vcmp.lt.s32.totalorder %v871, %v924
    %vm1019 = vcmp.lt.s32.totalorder %v872, %v924
    %vm1020 = vcmp.lt.s32.totalorder %v873, %v924
    %vm1021 = vcmp.lt.s32.totalorder %v871, %v927
    %vm1022 = vcmp.lt.s32.totalorder %v872, %v927
    %vm1023 = vcmp.lt.s32.totalorder %v873, %v927
    %vm1024 = vcmp.lt.s32.totalorder %v871, %v930
    %vm1025 = vcmp.lt.s32.totalorder %v872, %v930
    %vm1026 = vcmp.lt.s32.totalorder %v873, %v930
    %vm1027 = vcmp.lt.s32.totalorder %v871, %v933
    %vm1028 = vcmp.lt.s32.totalorder %v872, %v933
    %vm1029 = vcmp.lt.s32.totalorder %v873, %v933
    %vm1030 = vcmp.lt.s32.totalorder %v871, %v936
    %vm1031 = vcmp.lt.s32.totalorder %v872, %v936
    %vm1032 = vcmp.lt.s32.totalorder %v873, %v936
    %vm1033 = vcmp.lt.s32.totalorder %v871, %v939
    %vm1034 = vcmp.lt.s32.totalorder %v872, %v939
    %vm1035 = vcmp.lt.s32.totalorder %v873, %v939
    %vm1036 = vcmp.lt.s32.totalorder %v871, %v942
    %vm1037 = vcmp.lt.s32.totalorder %v872, %v942
    %vm1038 = vcmp.lt.s32.totalorder %v873, %v942
    %vm1039 = vcmp.lt.s32.totalorder %v871, %v945
    %vm1040 = vcmp.lt.s32.totalorder %v872, %v945
    %vm1041 = vcmp.lt.s32.totalorder %v873, %v945
    %vm1042 = vcmp.lt.s32.totalorder %v871, %v948
    %vm1043 = vcmp.lt.s32.totalorder %v872, %v948
    %vm1044 = vcmp.lt.s32.totalorder %v873, %v948
    %vm1045 = vcmp.lt.s32.totalorder %v871, %v951
    %vm1046 = vcmp.lt.s32.totalorder %v872, %v951
    %vm1047 = vcmp.lt.s32.totalorder %v873, %v951
    %vm1048 = vcmp.lt.s32.totalorder %v871, %v954
    %vm1049 = vcmp.lt.s32.totalorder %v872, %v954
    %vm1050 = vcmp.lt.s32.totalorder %v873, %v954
    %vm1051 = vcmp.lt.s32.totalorder %v871, %v957
    %vm1052 = vcmp.lt.s32.totalorder %v872, %v957
    %vm1053 = vcmp.lt.s32.totalorder %v873, %v957
    %vm1054 = vcmp.lt.s32.totalorder %v871, %v960
    %vm1055 = vcmp.lt.s32.totalorder %v872, %v960
    %vm1056 = vcmp.lt.s32.totalorder %v873, %v960
    %vm1057 = vcmp.lt.s32.totalorder %v871, %v963
    %vm1058 = vcmp.lt.s32.totalorder %v872, %v963
    %vm1059 = vcmp.lt.s32.totalorder %v873, %v963
    %vm1060 = vcmp.lt.s32.totalorder %v871, %v966
    %vm1061 = vcmp.lt.s32.totalorder %v872, %v966
    %vm1062 = vcmp.lt.s32.totalorder %v873, %v966
    %vm1063 = vcmp.lt.s32.totalorder %v871, %v969
    %vm1064 = vcmp.lt.s32.totalorder %v872, %v969
    %vm1065 = vcmp.lt.s32.totalorder %v873, %v969
    %v1066 = vsel %vm970, %v775, 0.0
    %v1067 = vsel %vm971, %v776, 0.0
    %v1068 = vsel %vm972, %v777, 0.0
    %v1069 = vsel %vm973, %v778, 0.0
    %v1070 = vsel %vm974, %v779, 0.0
    %v1071 = vsel %vm975, %v780, 0.0
    %v1072 = vsel %vm976, %v781, 0.0
    %v1073 = vsel %vm977, %v782, 0.0
    %v1074 = vsel %vm978, %v783, 0.0
    %v1075 = vsel %vm979, %v784, 0.0
    %v1076 = vsel %vm980, %v785, 0.0
    %v1077 = vsel %vm981, %v786, 0.0
    %v1078 = vsel %vm982, %v787, 0.0
    %v1079 = vsel %vm983, %v788, 0.0
    %v1080 = vsel %vm984, %v789, 0.0
    %v1081 = vsel %vm985, %v790, 0.0
    %v1082 = vsel %vm986, %v791, 0.0
    %v1083 = vsel %vm987, %v792, 0.0
    %v1084 = vsel %vm988, %v793, 0.0
    %v1085 = vsel %vm989, %v794, 0.0
    %v1086 = vsel %vm990, %v795, 0.0
    %v1087 = vsel %vm991, %v796, 0.0
    %v1088 = vsel %vm992, %v797, 0.0
    %v1089 = vsel %vm993, %v798, 0.0
    %v1090 = vsel %vm994, %v799, 0.0
    %v1091 = vsel %vm995, %v800, 0.0
    %v1092 = vsel %vm996, %v801, 0.0
    %v1093 = vsel %vm997, %v802, 0.0
    %v1094 = vsel %vm998, %v803, 0.0
    %v1095 = vsel %vm999, %v804, 0.0
    %v1096 = vsel %vm1000, %v805, 0.0
    %v1097 = vsel %vm1001, %v806, 0.0
    %v1098 = vsel %vm1002, %v807, 0.0
    %v1099 = vsel %vm1003, %v808, 0.0
    %v1100 = vsel %vm1004, %v809, 0.0
    %v1101 = vsel %vm1005, %v810, 0.0
    %v1102 = vsel %vm1006, %v811, 0.0
    %v1103 = vsel %vm1007, %v812, 0.0
    %v1104 = vsel %vm1008, %v813, 0.0
    %v1105 = vsel %vm1009, %v814, 0.0
    %v1106 = vsel %vm1010, %v815, 0.0
    %v1107 = vsel %vm1011, %v816, 0.0
    %v1108 = vsel %vm1012, %v817, 0.0
    %v1109 = vsel %vm1013, %v818, 0.0
    %v1110 = vsel %vm1014, %v819, 0.0
    %v1111 = vsel %vm1015, %v820, 0.0
    %v1112 = vsel %vm1016, %v821, 0.0
    %v1113 = vsel %vm1017, %v822, 0.0
    %v1114 = vsel %vm1018, %v823, 0.0
    %v1115 = vsel %vm1019, %v824, 0.0
    %v1116 = vsel %vm1020, %v825, 0.0
    %v1117 = vsel %vm1021, %v826, 0.0
    %v1118 = vsel %vm1022, %v827, 0.0
    %v1119 = vsel %vm1023, %v828, 0.0
    %v1120 = vsel %vm1024, %v829, 0.0
    %v1121 = vsel %vm1025, %v830, 0.0
    %v1122 = vsel %vm1026, %v831, 0.0
    %v1123 = vsel %vm1027, %v832, 0.0
    %v1124 = vsel %vm1028, %v833, 0.0
    %v1125 = vsel %vm1029, %v834, 0.0
    %v1126 = vsel %vm1030, %v835, 0.0
    %v1127 = vsel %vm1031, %v836, 0.0
    %v1128 = vsel %vm1032, %v837, 0.0
    %v1129 = vsel %vm1033, %v838, 0.0
    %v1130 = vsel %vm1034, %v839, 0.0
    %v1131 = vsel %vm1035, %v840, 0.0
    %v1132 = vsel %vm1036, %v841, 0.0
    %v1133 = vsel %vm1037, %v842, 0.0
    %v1134 = vsel %vm1038, %v843, 0.0
    %v1135 = vsel %vm1039, %v844, 0.0
    %v1136 = vsel %vm1040, %v845, 0.0
    %v1137 = vsel %vm1041, %v846, 0.0
    %v1138 = vsel %vm1042, %v847, 0.0
    %v1139 = vsel %vm1043, %v848, 0.0
    %v1140 = vsel %vm1044, %v849, 0.0
    %v1141 = vsel %vm1045, %v850, 0.0
    %v1142 = vsel %vm1046, %v851, 0.0
    %v1143 = vsel %vm1047, %v852, 0.0
    %v1144 = vsel %vm1048, %v853, 0.0
    %v1145 = vsel %vm1049, %v854, 0.0
    %v1146 = vsel %vm1050, %v855, 0.0
    %v1147 = vsel %vm1051, %v856, 0.0
    %v1148 = vsel %vm1052, %v857, 0.0
    %v1149 = vsel %vm1053, %v858, 0.0
    %v1150 = vsel %vm1054, %v859, 0.0
    %v1151 = vsel %vm1055, %v860, 0.0
    %v1152 = vsel %vm1056, %v861, 0.0
    %v1153 = vsel %vm1057, %v862, 0.0
    %v1154 = vsel %vm1058, %v863, 0.0
    %v1155 = vsel %vm1059, %v864, 0.0
    %v1156 = vsel %vm1060, %v865, 0.0
    %v1157 = vsel %vm1061, %v866, 0.0
    %v1158 = vsel %vm1062, %v867, 0.0
    %v1159 = vsel %vm1063, %v868, 0.0
    %v1160 = vsel %vm1064, %v869, 0.0
    %v1161 = vsel %vm1065, %v870, 0.0
    %v1162 = vpack.c.bf16 %v1067, %v1066
    %v1163 = vpack.c.bf16 %v1068, %v1068
    %v1164 = vpack.c.bf16 %v1070, %v1069
    %v1165 = vpack.c.bf16 %v1071, %v1071
    %v1166 = vpack.c.bf16 %v1073, %v1072
    %v1167 = vpack.c.bf16 %v1074, %v1074
    %v1168 = vpack.c.bf16 %v1076, %v1075
    %v1169 = vpack.c.bf16 %v1077, %v1077
    %v1170 = vpack.c.bf16 %v1079, %v1078
    %v1171 = vpack.c.bf16 %v1080, %v1080
    %v1172 = vpack.c.bf16 %v1082, %v1081
    %v1173 = vpack.c.bf16 %v1083, %v1083
    %v1174 = vpack.c.bf16 %v1085, %v1084
    %v1175 = vpack.c.bf16 %v1086, %v1086
    %v1176 = vpack.c.bf16 %v1088, %v1087
    %v1177 = vpack.c.bf16 %v1089, %v1089
    %v1178 = vpack.c.bf16 %v1091, %v1090
    %v1179 = vpack.c.bf16 %v1092, %v1092
    %v1180 = vpack.c.bf16 %v1094, %v1093
    %v1181 = vpack.c.bf16 %v1095, %v1095
    %v1182 = vpack.c.bf16 %v1097, %v1096
    %v1183 = vpack.c.bf16 %v1098, %v1098
    %v1184 = vpack.c.bf16 %v1100, %v1099
    %v1185 = vpack.c.bf16 %v1101, %v1101
    %v1186 = vpack.c.bf16 %v1103, %v1102
    %v1187 = vpack.c.bf16 %v1104, %v1104
    %v1188 = vpack.c.bf16 %v1106, %v1105
    %v1189 = vpack.c.bf16 %v1107, %v1107
    %v1190 = vpack.c.bf16 %v1109, %v1108
    %v1191 = vpack.c.bf16 %v1110, %v1110
    %v1192 = vpack.c.bf16 %v1112, %v1111
    %v1193 = vpack.c.bf16 %v1113, %v1113
    %v1194 = vpack.c.bf16 %v1115, %v1114
    %v1195 = vpack.c.bf16 %v1116, %v1116
    %v1196 = vpack.c.bf16 %v1118, %v1117
    %v1197 = vpack.c.bf16 %v1119, %v1119
    %v1198 = vpack.c.bf16 %v1121, %v1120
    %v1199 = vpack.c.bf16 %v1122, %v1122
    %v1200 = vpack.c.bf16 %v1124, %v1123
    %v1201 = vpack.c.bf16 %v1125, %v1125
    %v1202 = vpack.c.bf16 %v1127, %v1126
    %v1203 = vpack.c.bf16 %v1128, %v1128
    %v1204 = vpack.c.bf16 %v1130, %v1129
    %v1205 = vpack.c.bf16 %v1131, %v1131
    %v1206 = vpack.c.bf16 %v1133, %v1132
    %v1207 = vpack.c.bf16 %v1134, %v1134
    %v1208 = vpack.c.bf16 %v1136, %v1135
    %v1209 = vpack.c.bf16 %v1137, %v1137
    %v1210 = vpack.c.bf16 %v1139, %v1138
    %v1211 = vpack.c.bf16 %v1140, %v1140
    %v1212 = vpack.c.bf16 %v1142, %v1141
    %v1213 = vpack.c.bf16 %v1143, %v1143
    %v1214 = vpack.c.bf16 %v1145, %v1144
    %v1215 = vpack.c.bf16 %v1146, %v1146
    %v1216 = vpack.c.bf16 %v1148, %v1147
    %v1217 = vpack.c.bf16 %v1149, %v1149
    %v1218 = vpack.c.bf16 %v1151, %v1150
    %v1219 = vpack.c.bf16 %v1152, %v1152
    %v1220 = vpack.c.bf16 %v1154, %v1153
    %v1221 = vpack.c.bf16 %v1155, %v1155
    %v1222 = vpack.c.bf16 %v1157, %v1156
    %v1223 = vpack.c.bf16 %v1158, %v1158
    %v1224 = vpack.c.bf16 %v1160, %v1159
    %v1225 = vpack.c.bf16 %v1161, %v1161
    %v1290 = vunpack.c.l.b16 %v1162
    %v1291 = vunpack.c.h.b16 %v1162
    %v1292 = vunpack.c.l.b16 %v1163
    %v1293 = vunpack.c.l.b16 %v1164
    %v1294 = vunpack.c.h.b16 %v1164
    %v1295 = vunpack.c.l.b16 %v1165
    %v1296 = vunpack.c.l.b16 %v1166
    %v1297 = vunpack.c.h.b16 %v1166
    %v1298 = vunpack.c.l.b16 %v1167
    %v1299 = vunpack.c.l.b16 %v1168
    %v1300 = vunpack.c.h.b16 %v1168
    %v1301 = vunpack.c.l.b16 %v1169
    %v1302 = vunpack.c.l.b16 %v1170
    %v1303 = vunpack.c.h.b16 %v1170
    %v1304 = vunpack.c.l.b16 %v1171
    %v1305 = vunpack.c.l.b16 %v1172
    %v1306 = vunpack.c.h.b16 %v1172
    %v1307 = vunpack.c.l.b16 %v1173
    %v1308 = vunpack.c.l.b16 %v1174
    %v1309 = vunpack.c.h.b16 %v1174
    %v1310 = vunpack.c.l.b16 %v1175
    %v1311 = vunpack.c.l.b16 %v1176
    %v1312 = vunpack.c.h.b16 %v1176
    %v1313 = vunpack.c.l.b16 %v1177
    %v1314 = vunpack.c.l.b16 %v1178
    %v1315 = vunpack.c.h.b16 %v1178
    %v1316 = vunpack.c.l.b16 %v1179
    %v1317 = vunpack.c.l.b16 %v1180
    %v1318 = vunpack.c.h.b16 %v1180
    %v1319 = vunpack.c.l.b16 %v1181
    %v1320 = vunpack.c.l.b16 %v1182
    %v1321 = vunpack.c.h.b16 %v1182
    %v1322 = vunpack.c.l.b16 %v1183
    %v1323 = vunpack.c.l.b16 %v1184
    %v1324 = vunpack.c.h.b16 %v1184
    %v1325 = vunpack.c.l.b16 %v1185
    %v1326 = vunpack.c.l.b16 %v1186
    %v1327 = vunpack.c.h.b16 %v1186
    %v1328 = vunpack.c.l.b16 %v1187
    %v1329 = vunpack.c.l.b16 %v1188
    %v1330 = vunpack.c.h.b16 %v1188
    %v1331 = vunpack.c.l.b16 %v1189
    %v1332 = vunpack.c.l.b16 %v1190
    %v1333 = vunpack.c.h.b16 %v1190
    %v1334 = vunpack.c.l.b16 %v1191
    %v1335 = vunpack.c.l.b16 %v1192
    %v1336 = vunpack.c.h.b16 %v1192
    %v1337 = vunpack.c.l.b16 %v1193
    %v1338 = vunpack.c.l.b16 %v1194
    %v1339 = vunpack.c.h.b16 %v1194
    %v1340 = vunpack.c.l.b16 %v1195
    %v1341 = vunpack.c.l.b16 %v1196
    %v1342 = vunpack.c.h.b16 %v1196
    %v1343 = vunpack.c.l.b16 %v1197
    %v1344 = vunpack.c.l.b16 %v1198
    %v1345 = vunpack.c.h.b16 %v1198
    %v1346 = vunpack.c.l.b16 %v1199
    %v1347 = vunpack.c.l.b16 %v1200
    %v1348 = vunpack.c.h.b16 %v1200
    %v1349 = vunpack.c.l.b16 %v1201
    %v1350 = vunpack.c.l.b16 %v1202
    %v1351 = vunpack.c.h.b16 %v1202
    %v1352 = vunpack.c.l.b16 %v1203
    %v1353 = vunpack.c.l.b16 %v1204
    %v1354 = vunpack.c.h.b16 %v1204
    %v1355 = vunpack.c.l.b16 %v1205
    %v1356 = vunpack.c.l.b16 %v1206
    %v1357 = vunpack.c.h.b16 %v1206
    %v1358 = vunpack.c.l.b16 %v1207
    %v1359 = vunpack.c.l.b16 %v1208
    %v1360 = vunpack.c.h.b16 %v1208
    %v1361 = vunpack.c.l.b16 %v1209
    %v1362 = vunpack.c.l.b16 %v1210
    %v1363 = vunpack.c.h.b16 %v1210
    %v1364 = vunpack.c.l.b16 %v1211
    %v1365 = vunpack.c.l.b16 %v1212
    %v1366 = vunpack.c.h.b16 %v1212
    %v1367 = vunpack.c.l.b16 %v1213
    %v1368 = vunpack.c.l.b16 %v1214
    %v1369 = vunpack.c.h.b16 %v1214
    %v1370 = vunpack.c.l.b16 %v1215
    %v1371 = vunpack.c.l.b16 %v1216
    %v1372 = vunpack.c.h.b16 %v1216
    %v1373 = vunpack.c.l.b16 %v1217
    %v1374 = vunpack.c.l.b16 %v1218
    %v1375 = vunpack.c.h.b16 %v1218
    %v1376 = vunpack.c.l.b16 %v1219
    %v1377 = vunpack.c.l.b16 %v1220
    %v1378 = vunpack.c.h.b16 %v1220
    %v1379 = vunpack.c.l.b16 %v1221
    %v1380 = vunpack.c.l.b16 %v1222
    %v1381 = vunpack.c.h.b16 %v1222
    %v1382 = vunpack.c.l.b16 %v1223
    %v1383 = vunpack.c.l.b16 %v1224
    %v1384 = vunpack.c.h.b16 %v1224
    %v1385 = vunpack.c.l.b16 %v1225
    %v1386 = vpack.c.b16 %v1293, %v1290
    %v1387 = vpack.c.b16 %v1294, %v1291
    %v1388 = vpack.c.b16 %v1295, %v1292
    %v1389 = vpack.c.b16 %v1299, %v1296
    %v1390 = vpack.c.b16 %v1300, %v1297
    %v1391 = vpack.c.b16 %v1301, %v1298
    %v1392 = vpack.c.b16 %v1305, %v1302
    %v1393 = vpack.c.b16 %v1306, %v1303
    %v1394 = vpack.c.b16 %v1307, %v1304
    %v1395 = vpack.c.b16 %v1311, %v1308
    %v1396 = vpack.c.b16 %v1312, %v1309
    %v1397 = vpack.c.b16 %v1313, %v1310
    %v1398 = vpack.c.b16 %v1317, %v1314
    %v1399 = vpack.c.b16 %v1318, %v1315
    %v1400 = vpack.c.b16 %v1319, %v1316
    %v1401 = vpack.c.b16 %v1323, %v1320
    %v1402 = vpack.c.b16 %v1324, %v1321
    %v1403 = vpack.c.b16 %v1325, %v1322
    %v1404 = vpack.c.b16 %v1329, %v1326
    %v1405 = vpack.c.b16 %v1330, %v1327
    %v1406 = vpack.c.b16 %v1331, %v1328
    %v1407 = vpack.c.b16 %v1335, %v1332
    %v1408 = vpack.c.b16 %v1336, %v1333
    %v1409 = vpack.c.b16 %v1337, %v1334
    %v1410 = vpack.c.b16 %v1341, %v1338
    %v1411 = vpack.c.b16 %v1342, %v1339
    %v1412 = vpack.c.b16 %v1343, %v1340
    %v1413 = vpack.c.b16 %v1347, %v1344
    %v1414 = vpack.c.b16 %v1348, %v1345
    %v1415 = vpack.c.b16 %v1349, %v1346
    %v1416 = vpack.c.b16 %v1353, %v1350
    %v1417 = vpack.c.b16 %v1354, %v1351
    %v1418 = vpack.c.b16 %v1355, %v1352
    %v1419 = vpack.c.b16 %v1359, %v1356
    %v1420 = vpack.c.b16 %v1360, %v1357
    %v1421 = vpack.c.b16 %v1361, %v1358
    %v1422 = vpack.c.b16 %v1365, %v1362
    %v1423 = vpack.c.b16 %v1366, %v1363
    %v1424 = vpack.c.b16 %v1367, %v1364
    %v1425 = vpack.c.b16 %v1371, %v1368
    %v1426 = vpack.c.b16 %v1372, %v1369
    %v1427 = vpack.c.b16 %v1373, %v1370
    %v1428 = vpack.c.b16 %v1377, %v1374
    %v1429 = vpack.c.b16 %v1378, %v1375
    %v1430 = vpack.c.b16 %v1379, %v1376
    %v1431 = vpack.c.b16 %v1383, %v1380
    %v1432 = vpack.c.b16 %v1384, %v1381
    %v1433 = vpack.c.b16 %v1385, %v1382
    %1434 = vrot.lane.b32.xlu0 %v1386, 1
    %v1435 = vpop.permute.xlu0 %1434
    %1436 = vrot.lane.b32.xlu0 %v1387, 1
    %v1437 = vpop.permute.xlu0 %1436
    %1438 = vrot.lane.b32.xlu0 %v1388, 1
    %v1439 = vpop.permute.xlu0 %1438
    %1440 = vrot.lane.b32.xlu0 %v1389, 1
    %v1441 = vpop.permute.xlu0 %1440
    %1442 = vrot.lane.b32.xlu0 %v1390, 1
    %v1443 = vpop.permute.xlu0 %1442
    %1444 = vrot.lane.b32.xlu0 %v1391, 1
    %v1445 = vpop.permute.xlu0 %1444
    %1446 = vrot.lane.b32.xlu0 %v1392, 1
    %v1447 = vpop.permute.xlu0 %1446
    %1448 = vrot.lane.b32.xlu0 %v1393, 1
    %v1449 = vpop.permute.xlu0 %1448
    %1450 = vrot.lane.b32.xlu0 %v1394, 1
    %v1451 = vpop.permute.xlu0 %1450
    %1452 = vrot.lane.b32.xlu0 %v1395, 1
    %v1453 = vpop.permute.xlu0 %1452
    %1454 = vrot.lane.b32.xlu0 %v1396, 1
    %v1455 = vpop.permute.xlu0 %1454
    %1456 = vrot.lane.b32.xlu0 %v1397, 1
    %v1457 = vpop.permute.xlu0 %1456
    %1458 = vrot.lane.b32.xlu0 %v1398, 1
    %v1459 = vpop.permute.xlu0 %1458
    %1460 = vrot.lane.b32.xlu0 %v1399, 1
    %v1461 = vpop.permute.xlu0 %1460
    %1462 = vrot.lane.b32.xlu0 %v1400, 1
    %v1463 = vpop.permute.xlu0 %1462
    %1464 = vrot.lane.b32.xlu0 %v1401, 1
    %v1465 = vpop.permute.xlu0 %1464
    %1466 = vrot.lane.b32.xlu0 %v1402, 1
    %v1467 = vpop.permute.xlu0 %1466
    %1468 = vrot.lane.b32.xlu0 %v1403, 1
    %v1469 = vpop.permute.xlu0 %1468
    %1470 = vrot.lane.b32.xlu0 %v1404, 1
    %v1471 = vpop.permute.xlu0 %1470
    %1472 = vrot.lane.b32.xlu0 %v1405, 1
    %v1473 = vpop.permute.xlu0 %1472
    %1474 = vrot.lane.b32.xlu0 %v1406, 1
    %v1475 = vpop.permute.xlu0 %1474
    %1476 = vrot.lane.b32.xlu0 %v1407, 1
    %v1477 = vpop.permute.xlu0 %1476
    %1478 = vrot.lane.b32.xlu0 %v1408, 1
    %v1479 = vpop.permute.xlu0 %1478
    %1480 = vrot.lane.b32.xlu0 %v1409, 1
    %v1481 = vpop.permute.xlu0 %1480
    %1482 = vrot.lane.b32.xlu0 %v1410, 1
    %v1483 = vpop.permute.xlu0 %1482
    %1484 = vrot.lane.b32.xlu0 %v1411, 1
    %v1485 = vpop.permute.xlu0 %1484
    %1486 = vrot.lane.b32.xlu0 %v1412, 1
    %v1487 = vpop.permute.xlu0 %1486
    %1488 = vrot.lane.b32.xlu0 %v1413, 1
    %v1489 = vpop.permute.xlu0 %1488
    %1490 = vrot.lane.b32.xlu0 %v1414, 1
    %v1491 = vpop.permute.xlu0 %1490
    %1492 = vrot.lane.b32.xlu0 %v1415, 1
    %v1493 = vpop.permute.xlu0 %1492
    %1494 = vrot.lane.b32.xlu0 %v1416, 1
    %v1495 = vpop.permute.xlu0 %1494
    %1496 = vrot.lane.b32.xlu0 %v1417, 1
    %v1497 = vpop.permute.xlu0 %1496
    %1498 = vrot.lane.b32.xlu0 %v1418, 1
    %v1499 = vpop.permute.xlu0 %1498
    %1500 = vrot.lane.b32.xlu0 %v1419, 1
    %v1501 = vpop.permute.xlu0 %1500
    %1502 = vrot.lane.b32.xlu0 %v1420, 1
    %v1503 = vpop.permute.xlu0 %1502
    %1504 = vrot.lane.b32.xlu0 %v1421, 1
    %v1505 = vpop.permute.xlu0 %1504
    %1506 = vrot.lane.b32.xlu0 %v1422, 1
    %v1507 = vpop.permute.xlu0 %1506
    %1508 = vrot.lane.b32.xlu0 %v1423, 1
    %v1509 = vpop.permute.xlu0 %1508
    %1510 = vrot.lane.b32.xlu0 %v1424, 1
    %v1511 = vpop.permute.xlu0 %1510
    %1512 = vrot.lane.b32.xlu0 %v1425, 1
    %v1513 = vpop.permute.xlu0 %1512
    %1514 = vrot.lane.b32.xlu0 %v1426, 1
    %v1515 = vpop.permute.xlu0 %1514
    %1516 = vrot.lane.b32.xlu0 %v1427, 1
    %v1517 = vpop.permute.xlu0 %1516
    %1518 = vrot.lane.b32.xlu0 %v1428, 1
    %v1519 = vpop.permute.xlu0 %1518
    %1520 = vrot.lane.b32.xlu0 %v1429, 1
    %v1521 = vpop.permute.xlu0 %1520
    %1522 = vrot.lane.b32.xlu0 %v1430, 1
    %v1523 = vpop.permute.xlu0 %1522
    %1524 = vrot.lane.b32.xlu0 %v1431, 1
    %v1525 = vpop.permute.xlu0 %1524
    %1526 = vrot.lane.b32.xlu0 %v1432, 1
    %v1527 = vpop.permute.xlu0 %1526
    %1528 = vrot.lane.b32.xlu0 %v1433, 1
    %v1529 = vpop.permute.xlu0 %1528
    %v1530 = vsel %vm54, %v1435, %v1437
    %v1531 = vsel %vm54, %v1437, %v1439
    %v1532 = vsel %vm54, %v1441, %v1443
    %v1533 = vsel %vm54, %v1443, %v1445
    %v1534 = vsel %vm54, %v1447, %v1449
    %v1535 = vsel %vm54, %v1449, %v1451
    %v1536 = vsel %vm54, %v1453, %v1455
    %v1537 = vsel %vm54, %v1455, %v1457
    %v1538 = vsel %vm54, %v1459, %v1461
    %v1539 = vsel %vm54, %v1461, %v1463
    %v1540 = vsel %vm54, %v1465, %v1467
    %v1541 = vsel %vm54, %v1467, %v1469
    %v1542 = vsel %vm54, %v1471, %v1473
    %v1543 = vsel %vm54, %v1473, %v1475
    %v1544 = vsel %vm54, %v1477, %v1479
    %v1545 = vsel %vm54, %v1479, %v1481
    %v1546 = vsel %vm54, %v1483, %v1485
    %v1547 = vsel %vm54, %v1485, %v1487
    %v1548 = vsel %vm54, %v1489, %v1491
    %v1549 = vsel %vm54, %v1491, %v1493
    %v1550 = vsel %vm54, %v1495, %v1497
    %v1551 = vsel %vm54, %v1497, %v1499
    %v1552 = vsel %vm54, %v1501, %v1503
    %v1553 = vsel %vm54, %v1503, %v1505
    %v1554 = vsel %vm54, %v1507, %v1509
    %v1555 = vsel %vm54, %v1509, %v1511
    %v1556 = vsel %vm54, %v1513, %v1515
    %v1557 = vsel %vm54, %v1515, %v1517
    %v1558 = vsel %vm54, %v1519, %v1521
    %v1559 = vsel %vm54, %v1521, %v1523
    %v1560 = vsel %vm54, %v1525, %v1527
    %v1561 = vsel %vm54, %v1527, %v1529
    %v1579 = vsel %vm57, 0, %v1435
    %v1581 = vsel %vm57, 0, %v1441
    %v1583 = vsel %vm57, 0, %v1447
    %v1585 = vsel %vm57, 0, %v1453
    %v1587 = vsel %vm57, 0, %v1459
    %v1589 = vsel %vm57, 0, %v1465
    %v1591 = vsel %vm57, 0, %v1471
    %v1593 = vsel %vm57, 0, %v1477
    %v1595 = vsel %vm57, 0, %v1483
    %v1598 = vsel %vm57, 0, %v1489
    %v1601 = vsel %vm57, 0, %v1495
    %v1604 = vsel %vm57, 0, %v1501
    %v1607 = vsel %vm57, 0, %v1507
    %v1610 = vsel %vm57, 0, %v1513
    %v1613 = vsel %vm57, 0, %v1519
    %v1616 = vsel %vm57, 0, %v1525
    %v1619 = vsel %vm57, %v1439, 0
    %v1621 = vsel %vm57, %v1445, 0
    %v1623 = vsel %vm57, %v1451, 0
    %v1625 = vsel %vm57, %v1457, 0
    %v1627 = vsel %vm57, %v1463, 0
    %v1629 = vsel %vm57, %v1469, 0
    %v1631 = vsel %vm57, %v1475, 0
    %v1633 = vsel %vm57, %v1481, 0
    %v1635 = vsel %vm57, %v1487, 0
    %v1637 = vsel %vm57, %v1493, 0
    %v1639 = vsel %vm57, %v1499, 0
    %v1641 = vsel %vm57, %v1505, 0
    %v1643 = vsel %vm57, %v1511, 0
    %v1645 = vsel %vm57, %v1517, 0
    %v1647 = vsel %vm57, %v1523, 0
    %v1649 = vsel %vm57, %v1529, 0
    %1682 = vrot.lane.b32.xlu0 %v1579, 127
    %v1683 = vpop.permute.xlu0 %1682
    %1684 = vrot.lane.b32.xlu0 %v1530, 127
    %v1685 = vpop.permute.xlu0 %1684
    %1686 = vrot.lane.b32.xlu0 %v1531, 127
    %v1687 = vpop.permute.xlu0 %1686
    %1688 = vrot.lane.b32.xlu0 %v1619, 127
    %v1689 = vpop.permute.xlu0 %1688
    %1690 = vrot.lane.b32.xlu0 %v1581, 127
    %v1691 = vpop.permute.xlu0 %1690
    %1692 = vrot.lane.b32.xlu0 %v1532, 127
    %v1693 = vpop.permute.xlu0 %1692
    %1694 = vrot.lane.b32.xlu0 %v1533, 127
    %v1695 = vpop.permute.xlu0 %1694
    %1696 = vrot.lane.b32.xlu0 %v1621, 127
    %v1697 = vpop.permute.xlu0 %1696
    %1698 = vrot.lane.b32.xlu0 %v1583, 127
    %v1699 = vpop.permute.xlu0 %1698
    %1700 = vrot.lane.b32.xlu0 %v1534, 127
    %v1701 = vpop.permute.xlu0 %1700
    %1702 = vrot.lane.b32.xlu0 %v1535, 127
    %v1703 = vpop.permute.xlu0 %1702
    %1704 = vrot.lane.b32.xlu0 %v1623, 127
    %v1705 = vpop.permute.xlu0 %1704
    %1706 = vrot.lane.b32.xlu0 %v1585, 127
    %v1707 = vpop.permute.xlu0 %1706
    %1708 = vrot.lane.b32.xlu0 %v1536, 127
    %v1709 = vpop.permute.xlu0 %1708
    %1710 = vrot.lane.b32.xlu0 %v1537, 127
    %v1711 = vpop.permute.xlu0 %1710
    %1712 = vrot.lane.b32.xlu0 %v1625, 127
    %v1713 = vpop.permute.xlu0 %1712
    %1714 = vrot.lane.b32.xlu0 %v1587, 127
    %v1715 = vpop.permute.xlu0 %1714
    %1716 = vrot.lane.b32.xlu0 %v1538, 127
    %v1717 = vpop.permute.xlu0 %1716
    %1718 = vrot.lane.b32.xlu0 %v1539, 127
    %v1719 = vpop.permute.xlu0 %1718
    %1720 = vrot.lane.b32.xlu0 %v1627, 127
    %v1721 = vpop.permute.xlu0 %1720
    %1722 = vrot.lane.b32.xlu0 %v1589, 127
    %v1723 = vpop.permute.xlu0 %1722
    %1724 = vrot.lane.b32.xlu0 %v1540, 127
    %v1725 = vpop.permute.xlu0 %1724
    %1726 = vrot.lane.b32.xlu0 %v1541, 127
    %v1727 = vpop.permute.xlu0 %1726
    %1728 = vrot.lane.b32.xlu0 %v1629, 127
    %v1729 = vpop.permute.xlu0 %1728
    %1730 = vrot.lane.b32.xlu0 %v1591, 127
    %v1731 = vpop.permute.xlu0 %1730
    %1732 = vrot.lane.b32.xlu0 %v1542, 127
    %v1733 = vpop.permute.xlu0 %1732
    %1734 = vrot.lane.b32.xlu0 %v1543, 127
    %v1735 = vpop.permute.xlu0 %1734
    %1736 = vrot.lane.b32.xlu0 %v1631, 127
    %v1737 = vpop.permute.xlu0 %1736
    %1738 = vrot.lane.b32.xlu0 %v1593, 127
    %v1739 = vpop.permute.xlu0 %1738
    %1740 = vrot.lane.b32.xlu0 %v1544, 127
    %v1741 = vpop.permute.xlu0 %1740
    %1742 = vrot.lane.b32.xlu0 %v1545, 127
    %v1743 = vpop.permute.xlu0 %1742
    %1744 = vrot.lane.b32.xlu0 %v1633, 127
    %v1745 = vpop.permute.xlu0 %1744
    %1746 = vrot.lane.b32.xlu0 %v1595, 127
    %v1747 = vpop.permute.xlu0 %1746
    %1748 = vrot.lane.b32.xlu0 %v1546, 127
    %v1749 = vpop.permute.xlu0 %1748
    %1750 = vrot.lane.b32.xlu0 %v1547, 127
    %v1751 = vpop.permute.xlu0 %1750
    %1752 = vrot.lane.b32.xlu0 %v1635, 127
    %v1753 = vpop.permute.xlu0 %1752
    %1754 = vrot.lane.b32.xlu0 %v1598, 127
    %v1755 = vpop.permute.xlu0 %1754
    %1756 = vrot.lane.b32.xlu0 %v1548, 127
    %v1757 = vpop.permute.xlu0 %1756
    %1758 = vrot.lane.b32.xlu0 %v1549, 127
    %v1759 = vpop.permute.xlu0 %1758
    %1760 = vrot.lane.b32.xlu0 %v1637, 127
    %v1761 = vpop.permute.xlu0 %1760
    %1762 = vrot.lane.b32.xlu0 %v1601, 127
    %v1763 = vpop.permute.xlu0 %1762
    %1764 = vrot.lane.b32.xlu0 %v1550, 127
    %v1765 = vpop.permute.xlu0 %1764
    %1766 = vrot.lane.b32.xlu0 %v1551, 127
    %v1767 = vpop.permute.xlu0 %1766
    %1768 = vrot.lane.b32.xlu0 %v1639, 127
    %v1769 = vpop.permute.xlu0 %1768
    %1770 = vrot.lane.b32.xlu0 %v1604, 127
    %v1771 = vpop.permute.xlu0 %1770
    %1772 = vrot.lane.b32.xlu0 %v1552, 127
    %v1773 = vpop.permute.xlu0 %1772
    %1774 = vrot.lane.b32.xlu0 %v1553, 127
    %v1775 = vpop.permute.xlu0 %1774
    %1776 = vrot.lane.b32.xlu0 %v1641, 127
    %v1777 = vpop.permute.xlu0 %1776
    %1778 = vrot.lane.b32.xlu0 %v1607, 127
    %v1779 = vpop.permute.xlu0 %1778
    %1780 = vrot.lane.b32.xlu0 %v1554, 127
    %v1781 = vpop.permute.xlu0 %1780
    %1782 = vrot.lane.b32.xlu0 %v1555, 127
    %v1783 = vpop.permute.xlu0 %1782
    %1784 = vrot.lane.b32.xlu0 %v1643, 127
    %v1785 = vpop.permute.xlu0 %1784
    %1786 = vrot.lane.b32.xlu0 %v1610, 127
    %v1787 = vpop.permute.xlu0 %1786
    %1788 = vrot.lane.b32.xlu0 %v1556, 127
    %v1789 = vpop.permute.xlu0 %1788
    %1790 = vrot.lane.b32.xlu0 %v1557, 127
    %v1791 = vpop.permute.xlu0 %1790
    %1792 = vrot.lane.b32.xlu0 %v1645, 127
    %v1793 = vpop.permute.xlu0 %1792
    %1794 = vrot.lane.b32.xlu0 %v1613, 127
    %v1795 = vpop.permute.xlu0 %1794
    %1796 = vrot.lane.b32.xlu0 %v1558, 127
    %v1797 = vpop.permute.xlu0 %1796
    %1798 = vrot.lane.b32.xlu0 %v1559, 127
    %v1799 = vpop.permute.xlu0 %1798
    %1800 = vrot.lane.b32.xlu0 %v1647, 127
    %v1801 = vpop.permute.xlu0 %1800
    %1802 = vrot.lane.b32.xlu0 %v1616, 127
    %v1803 = vpop.permute.xlu0 %1802
    %1804 = vrot.lane.b32.xlu0 %v1560, 127
    %v1805 = vpop.permute.xlu0 %1804
    %1806 = vrot.lane.b32.xlu0 %v1561, 127
    %v1807 = vpop.permute.xlu0 %1806
    %1808 = vrot.lane.b32.xlu0 %v1649, 127
    %v1809 = vpop.permute.xlu0 %1808
    %v1810 = vsel %vm80, %v1683, %v1685
    %v1811 = vsel %vm80, %v1685, %v1687
    %v1812 = vsel %vm80, %v1687, %v1689
    %v1813 = vsel %vm80, %v1691, %v1693
    %v1814 = vsel %vm80, %v1693, %v1695
    %v1815 = vsel %vm80, %v1695, %v1697
    %v1816 = vsel %vm80, %v1699, %v1701
    %v1817 = vsel %vm80, %v1701, %v1703
    %v1818 = vsel %vm80, %v1703, %v1705
    %v1819 = vsel %vm80, %v1707, %v1709
    %v1820 = vsel %vm80, %v1709, %v1711
    %v1821 = vsel %vm80, %v1711, %v1713
    %v1822 = vsel %vm80, %v1715, %v1717
    %v1823 = vsel %vm80, %v1717, %v1719
    %v1824 = vsel %vm80, %v1719, %v1721
    %v1825 = vsel %vm80, %v1723, %v1725
    %v1826 = vsel %vm80, %v1725, %v1727
    %v1827 = vsel %vm80, %v1727, %v1729
    %v1828 = vsel %vm80, %v1731, %v1733
    %v1829 = vsel %vm80, %v1733, %v1735
    %v1830 = vsel %vm80, %v1735, %v1737
    %v1831 = vsel %vm80, %v1739, %v1741
    %v1832 = vsel %vm80, %v1741, %v1743
    %v1833 = vsel %vm80, %v1743, %v1745
    %v1834 = vsel %vm80, %v1747, %v1749
    %v1835 = vsel %vm80, %v1749, %v1751
    %v1836 = vsel %vm80, %v1751, %v1753
    %v1837 = vsel %vm80, %v1755, %v1757
    %v1838 = vsel %vm80, %v1757, %v1759
    %v1839 = vsel %vm80, %v1759, %v1761
    %v1840 = vsel %vm80, %v1763, %v1765
    %v1841 = vsel %vm80, %v1765, %v1767
    %v1842 = vsel %vm80, %v1767, %v1769
    %v1843 = vsel %vm80, %v1771, %v1773
    %v1844 = vsel %vm80, %v1773, %v1775
    %v1845 = vsel %vm80, %v1775, %v1777
    %v1846 = vsel %vm80, %v1779, %v1781
    %v1847 = vsel %vm80, %v1781, %v1783
    %v1848 = vsel %vm80, %v1783, %v1785
    %v1849 = vsel %vm80, %v1787, %v1789
    %v1850 = vsel %vm80, %v1789, %v1791
    %v1851 = vsel %vm80, %v1791, %v1793
    %v1852 = vsel %vm80, %v1795, %v1797
    %v1853 = vsel %vm80, %v1797, %v1799
    %v1854 = vsel %vm80, %v1799, %v1801
    %v1855 = vsel %vm80, %v1803, %v1805
    %v1856 = vsel %vm80, %v1805, %v1807
    %v1857 = vsel %vm80, %v1807, %v1809
    %1906 = vrot.lane.b32.xlu0 %v1579, 126
    %v1907 = vpop.permute.xlu0 %1906
    %1908 = vrot.lane.b32.xlu0 %v1530, 126
    %v1909 = vpop.permute.xlu0 %1908
    %1910 = vrot.lane.b32.xlu0 %v1531, 126
    %v1911 = vpop.permute.xlu0 %1910
    %1912 = vrot.lane.b32.xlu0 %v1619, 126
    %v1913 = vpop.permute.xlu0 %1912
    %1914 = vrot.lane.b32.xlu0 %v1581, 126
    %v1915 = vpop.permute.xlu0 %1914
    %1916 = vrot.lane.b32.xlu0 %v1532, 126
    %v1917 = vpop.permute.xlu0 %1916
    %1918 = vrot.lane.b32.xlu0 %v1533, 126
    %v1919 = vpop.permute.xlu0 %1918
    %1920 = vrot.lane.b32.xlu0 %v1621, 126
    %v1921 = vpop.permute.xlu0 %1920
    %1922 = vrot.lane.b32.xlu0 %v1583, 126
    %v1923 = vpop.permute.xlu0 %1922
    %1924 = vrot.lane.b32.xlu0 %v1534, 126
    %v1925 = vpop.permute.xlu0 %1924
    %1926 = vrot.lane.b32.xlu0 %v1535, 126
    %v1927 = vpop.permute.xlu0 %1926
    %1928 = vrot.lane.b32.xlu0 %v1623, 126
    %v1929 = vpop.permute.xlu0 %1928
    %1930 = vrot.lane.b32.xlu0 %v1585, 126
    %v1931 = vpop.permute.xlu0 %1930
    %1932 = vrot.lane.b32.xlu0 %v1536, 126
    %v1933 = vpop.permute.xlu0 %1932
    %1934 = vrot.lane.b32.xlu0 %v1537, 126
    %v1935 = vpop.permute.xlu0 %1934
    %1936 = vrot.lane.b32.xlu0 %v1625, 126
    %v1937 = vpop.permute.xlu0 %1936
    %1938 = vrot.lane.b32.xlu0 %v1587, 126
    %v1939 = vpop.permute.xlu0 %1938
    %1940 = vrot.lane.b32.xlu0 %v1538, 126
    %v1941 = vpop.permute.xlu0 %1940
    %1942 = vrot.lane.b32.xlu0 %v1539, 126
    %v1943 = vpop.permute.xlu0 %1942
    %1944 = vrot.lane.b32.xlu0 %v1627, 126
    %v1945 = vpop.permute.xlu0 %1944
    %1946 = vrot.lane.b32.xlu0 %v1589, 126
    %v1947 = vpop.permute.xlu0 %1946
    %1948 = vrot.lane.b32.xlu0 %v1540, 126
    %v1949 = vpop.permute.xlu0 %1948
    %1950 = vrot.lane.b32.xlu0 %v1541, 126
    %v1951 = vpop.permute.xlu0 %1950
    %1952 = vrot.lane.b32.xlu0 %v1629, 126
    %v1953 = vpop.permute.xlu0 %1952
    %1954 = vrot.lane.b32.xlu0 %v1591, 126
    %v1955 = vpop.permute.xlu0 %1954
    %1956 = vrot.lane.b32.xlu0 %v1542, 126
    %v1957 = vpop.permute.xlu0 %1956
    %1958 = vrot.lane.b32.xlu0 %v1543, 126
    %v1959 = vpop.permute.xlu0 %1958
    %1960 = vrot.lane.b32.xlu0 %v1631, 126
    %v1961 = vpop.permute.xlu0 %1960
    %1962 = vrot.lane.b32.xlu0 %v1593, 126
    %v1963 = vpop.permute.xlu0 %1962
    %1964 = vrot.lane.b32.xlu0 %v1544, 126
    %v1965 = vpop.permute.xlu0 %1964
    %1966 = vrot.lane.b32.xlu0 %v1545, 126
    %v1967 = vpop.permute.xlu0 %1966
    %1968 = vrot.lane.b32.xlu0 %v1633, 126
    %v1969 = vpop.permute.xlu0 %1968
    %1970 = vrot.lane.b32.xlu0 %v1595, 126
    %v1971 = vpop.permute.xlu0 %1970
    %1972 = vrot.lane.b32.xlu0 %v1546, 126
    %v1973 = vpop.permute.xlu0 %1972
    %1974 = vrot.lane.b32.xlu0 %v1547, 126
    %v1975 = vpop.permute.xlu0 %1974
    %1976 = vrot.lane.b32.xlu0 %v1635, 126
    %v1977 = vpop.permute.xlu0 %1976
    %1978 = vrot.lane.b32.xlu0 %v1598, 126
    %v1979 = vpop.permute.xlu0 %1978
    %1980 = vrot.lane.b32.xlu0 %v1548, 126
    %v1981 = vpop.permute.xlu0 %1980
    %1982 = vrot.lane.b32.xlu0 %v1549, 126
    %v1983 = vpop.permute.xlu0 %1982
    %1984 = vrot.lane.b32.xlu0 %v1637, 126
    %v1985 = vpop.permute.xlu0 %1984
    %1986 = vrot.lane.b32.xlu0 %v1601, 126
    %v1987 = vpop.permute.xlu0 %1986
    %1988 = vrot.lane.b32.xlu0 %v1550, 126
    %v1989 = vpop.permute.xlu0 %1988
    %1990 = vrot.lane.b32.xlu0 %v1551, 126
    %v1991 = vpop.permute.xlu0 %1990
    %1992 = vrot.lane.b32.xlu0 %v1639, 126
    %v1993 = vpop.permute.xlu0 %1992
    %1994 = vrot.lane.b32.xlu0 %v1604, 126
    %v1995 = vpop.permute.xlu0 %1994
    %1996 = vrot.lane.b32.xlu0 %v1552, 126
    %v1997 = vpop.permute.xlu0 %1996
    %1998 = vrot.lane.b32.xlu0 %v1553, 126
    %v1999 = vpop.permute.xlu0 %1998
    %2000 = vrot.lane.b32.xlu0 %v1641, 126
    %v2001 = vpop.permute.xlu0 %2000
    %2002 = vrot.lane.b32.xlu0 %v1607, 126
    %v2003 = vpop.permute.xlu0 %2002
    %2004 = vrot.lane.b32.xlu0 %v1554, 126
    %v2005 = vpop.permute.xlu0 %2004
    %2006 = vrot.lane.b32.xlu0 %v1555, 126
    %v2007 = vpop.permute.xlu0 %2006
    %2008 = vrot.lane.b32.xlu0 %v1643, 126
    %v2009 = vpop.permute.xlu0 %2008
    %2010 = vrot.lane.b32.xlu0 %v1610, 126
    %v2011 = vpop.permute.xlu0 %2010
    %2012 = vrot.lane.b32.xlu0 %v1556, 126
    %v2013 = vpop.permute.xlu0 %2012
    %2014 = vrot.lane.b32.xlu0 %v1557, 126
    %v2015 = vpop.permute.xlu0 %2014
    %2016 = vrot.lane.b32.xlu0 %v1645, 126
    %v2017 = vpop.permute.xlu0 %2016
    %2018 = vrot.lane.b32.xlu0 %v1613, 126
    %v2019 = vpop.permute.xlu0 %2018
    %2020 = vrot.lane.b32.xlu0 %v1558, 126
    %v2021 = vpop.permute.xlu0 %2020
    %2022 = vrot.lane.b32.xlu0 %v1559, 126
    %v2023 = vpop.permute.xlu0 %2022
    %2024 = vrot.lane.b32.xlu0 %v1647, 126
    %v2025 = vpop.permute.xlu0 %2024
    %2026 = vrot.lane.b32.xlu0 %v1616, 126
    %v2027 = vpop.permute.xlu0 %2026
    %2028 = vrot.lane.b32.xlu0 %v1560, 126
    %v2029 = vpop.permute.xlu0 %2028
    %2030 = vrot.lane.b32.xlu0 %v1561, 126
    %v2031 = vpop.permute.xlu0 %2030
    %2032 = vrot.lane.b32.xlu0 %v1649, 126
    %v2033 = vpop.permute.xlu0 %2032
    %v2034 = vsel %vm93, %v1907, %v1909
    %v2035 = vsel %vm93, %v1909, %v1911
    %v2036 = vsel %vm93, %v1911, %v1913
    %v2037 = vsel %vm93, %v1915, %v1917
    %v2038 = vsel %vm93, %v1917, %v1919
    %v2039 = vsel %vm93, %v1919, %v1921
    %v2040 = vsel %vm93, %v1923, %v1925
    %v2041 = vsel %vm93, %v1925, %v1927
    %v2042 = vsel %vm93, %v1927, %v1929
    %v2043 = vsel %vm93, %v1931, %v1933
    %v2044 = vsel %vm93, %v1933, %v1935
    %v2045 = vsel %vm93, %v1935, %v1937
    %v2046 = vsel %vm93, %v1939, %v1941
    %v2047 = vsel %vm93, %v1941, %v1943
    %v2048 = vsel %vm93, %v1943, %v1945
    %v2049 = vsel %vm93, %v1947, %v1949
    %v2050 = vsel %vm93, %v1949, %v1951
    %v2051 = vsel %vm93, %v1951, %v1953
    %v2052 = vsel %vm93, %v1955, %v1957
    %v2053 = vsel %vm93, %v1957, %v1959
    %v2054 = vsel %vm93, %v1959, %v1961
    %v2055 = vsel %vm93, %v1963, %v1965
    %v2056 = vsel %vm93, %v1965, %v1967
    %v2057 = vsel %vm93, %v1967, %v1969
    %v2058 = vsel %vm93, %v1971, %v1973
    %v2059 = vsel %vm93, %v1973, %v1975
    %v2060 = vsel %vm93, %v1975, %v1977
    %v2061 = vsel %vm93, %v1979, %v1981
    %v2062 = vsel %vm93, %v1981, %v1983
    %v2063 = vsel %vm93, %v1983, %v1985
    %v2064 = vsel %vm93, %v1987, %v1989
    %v2065 = vsel %vm93, %v1989, %v1991
    %v2066 = vsel %vm93, %v1991, %v1993
    %v2067 = vsel %vm93, %v1995, %v1997
    %v2068 = vsel %vm93, %v1997, %v1999
    %v2069 = vsel %vm93, %v1999, %v2001
    %v2070 = vsel %vm93, %v2003, %v2005
    %v2071 = vsel %vm93, %v2005, %v2007
    %v2072 = vsel %vm93, %v2007, %v2009
    %v2073 = vsel %vm93, %v2011, %v2013
    %v2074 = vsel %vm93, %v2013, %v2015
    %v2075 = vsel %vm93, %v2015, %v2017
    %v2076 = vsel %vm93, %v2019, %v2021
    %v2077 = vsel %vm93, %v2021, %v2023
    %v2078 = vsel %vm93, %v2023, %v2025
    %v2079 = vsel %vm93, %v2027, %v2029
    %v2080 = vsel %vm93, %v2029, %v2031
    %v2081 = vsel %vm93, %v2031, %v2033
    %2130 = vrot.lane.b32.xlu0 %v1579, 125
    %v2131 = vpop.permute.xlu0 %2130
    %2132 = vrot.lane.b32.xlu0 %v1530, 125
    %v2133 = vpop.permute.xlu0 %2132
    %2134 = vrot.lane.b32.xlu0 %v1531, 125
    %v2135 = vpop.permute.xlu0 %2134
    %2136 = vrot.lane.b32.xlu0 %v1619, 125
    %v2137 = vpop.permute.xlu0 %2136
    %2138 = vrot.lane.b32.xlu0 %v1581, 125
    %v2139 = vpop.permute.xlu0 %2138
    %2140 = vrot.lane.b32.xlu0 %v1532, 125
    %v2141 = vpop.permute.xlu0 %2140
    %2142 = vrot.lane.b32.xlu0 %v1533, 125
    %v2143 = vpop.permute.xlu0 %2142
    %2144 = vrot.lane.b32.xlu0 %v1621, 125
    %v2145 = vpop.permute.xlu0 %2144
    %2146 = vrot.lane.b32.xlu0 %v1583, 125
    %v2147 = vpop.permute.xlu0 %2146
    %2148 = vrot.lane.b32.xlu0 %v1534, 125
    %v2149 = vpop.permute.xlu0 %2148
    %2150 = vrot.lane.b32.xlu0 %v1535, 125
    %v2151 = vpop.permute.xlu0 %2150
    %2152 = vrot.lane.b32.xlu0 %v1623, 125
    %v2153 = vpop.permute.xlu0 %2152
    %2154 = vrot.lane.b32.xlu0 %v1585, 125
    %v2155 = vpop.permute.xlu0 %2154
    %2156 = vrot.lane.b32.xlu0 %v1536, 125
    %v2157 = vpop.permute.xlu0 %2156
    %2158 = vrot.lane.b32.xlu0 %v1537, 125
    %v2159 = vpop.permute.xlu0 %2158
    %2160 = vrot.lane.b32.xlu0 %v1625, 125
    %v2161 = vpop.permute.xlu0 %2160
    %2162 = vrot.lane.b32.xlu0 %v1587, 125
    %v2163 = vpop.permute.xlu0 %2162
    %2164 = vrot.lane.b32.xlu0 %v1538, 125
    %v2165 = vpop.permute.xlu0 %2164
    %2166 = vrot.lane.b32.xlu0 %v1539, 125
    %v2167 = vpop.permute.xlu0 %2166
    %2168 = vrot.lane.b32.xlu0 %v1627, 125
    %v2169 = vpop.permute.xlu0 %2168
    %2170 = vrot.lane.b32.xlu0 %v1589, 125
    %v2171 = vpop.permute.xlu0 %2170
    %2172 = vrot.lane.b32.xlu0 %v1540, 125
    %v2173 = vpop.permute.xlu0 %2172
    %2174 = vrot.lane.b32.xlu0 %v1541, 125
    %v2175 = vpop.permute.xlu0 %2174
    %2176 = vrot.lane.b32.xlu0 %v1629, 125
    %v2177 = vpop.permute.xlu0 %2176
    %2178 = vrot.lane.b32.xlu0 %v1591, 125
    %v2179 = vpop.permute.xlu0 %2178
    %2180 = vrot.lane.b32.xlu0 %v1542, 125
    %v2181 = vpop.permute.xlu0 %2180
    %2182 = vrot.lane.b32.xlu0 %v1543, 125
    %v2183 = vpop.permute.xlu0 %2182
    %2184 = vrot.lane.b32.xlu0 %v1631, 125
    %v2185 = vpop.permute.xlu0 %2184
    %2186 = vrot.lane.b32.xlu0 %v1593, 125
    %v2187 = vpop.permute.xlu0 %2186
    %2188 = vrot.lane.b32.xlu0 %v1544, 125
    %v2189 = vpop.permute.xlu0 %2188
    %2190 = vrot.lane.b32.xlu0 %v1545, 125
    %v2191 = vpop.permute.xlu0 %2190
    %2192 = vrot.lane.b32.xlu0 %v1633, 125
    %v2193 = vpop.permute.xlu0 %2192
    %2194 = vrot.lane.b32.xlu0 %v1595, 125
    %v2195 = vpop.permute.xlu0 %2194
    %2196 = vrot.lane.b32.xlu0 %v1546, 125
    %v2197 = vpop.permute.xlu0 %2196
    %2198 = vrot.lane.b32.xlu0 %v1547, 125
    %v2199 = vpop.permute.xlu0 %2198
    %2200 = vrot.lane.b32.xlu0 %v1635, 125
    %v2201 = vpop.permute.xlu0 %2200
    %2202 = vrot.lane.b32.xlu0 %v1598, 125
    %v2203 = vpop.permute.xlu0 %2202
    %2204 = vrot.lane.b32.xlu0 %v1548, 125
    %v2205 = vpop.permute.xlu0 %2204
    %2206 = vrot.lane.b32.xlu0 %v1549, 125
    %v2207 = vpop.permute.xlu0 %2206
    %2208 = vrot.lane.b32.xlu0 %v1637, 125
    %v2209 = vpop.permute.xlu0 %2208
    %2210 = vrot.lane.b32.xlu0 %v1601, 125
    %v2211 = vpop.permute.xlu0 %2210
    %2212 = vrot.lane.b32.xlu0 %v1550, 125
    %v2213 = vpop.permute.xlu0 %2212
    %2214 = vrot.lane.b32.xlu0 %v1551, 125
    %v2215 = vpop.permute.xlu0 %2214
    %2216 = vrot.lane.b32.xlu0 %v1639, 125
    %v2217 = vpop.permute.xlu0 %2216
    %2218 = vrot.lane.b32.xlu0 %v1604, 125
    %v2219 = vpop.permute.xlu0 %2218
    %2220 = vrot.lane.b32.xlu0 %v1552, 125
    %v2221 = vpop.permute.xlu0 %2220
    %2222 = vrot.lane.b32.xlu0 %v1553, 125
    %v2223 = vpop.permute.xlu0 %2222
    %2224 = vrot.lane.b32.xlu0 %v1641, 125
    %v2225 = vpop.permute.xlu0 %2224
    %vm2226 = vcmask 1022976
    %v2227 = vsel %vm2226, %v2131, %v2133
    %v2228 = vsel %vm2226, %v2133, %v2135
    %v2229 = vsel %vm2226, %v2135, %v2137
    %v2230 = vsel %vm2226, %v2139, %v2141
    %v2231 = vsel %vm2226, %v2141, %v2143
    %v2232 = vsel %vm2226, %v2143, %v2145
    %v2233 = vsel %vm2226, %v2147, %v2149
    %v2234 = vsel %vm2226, %v2149, %v2151
    %v2235 = vsel %vm2226, %v2151, %v2153
    %v2236 = vsel %vm2226, %v2155, %v2157
    %v2237 = vsel %vm2226, %v2157, %v2159
    %v2238 = vsel %vm2226, %v2159, %v2161
    %v2239 = vsel %vm2226, %v2163, %v2165
    %v2240 = vsel %vm2226, %v2165, %v2167
    %v2241 = vsel %vm2226, %v2167, %v2169
    %v2242 = vsel %vm2226, %v2171, %v2173
    %v2243 = vsel %vm2226, %v2173, %v2175
    %v2244 = vsel %vm2226, %v2175, %v2177
    %v2245 = vsel %vm2226, %v2179, %v2181
    %v2246 = vsel %vm2226, %v2181, %v2183
    %v2247 = vsel %vm2226, %v2183, %v2185
    %v2248 = vsel %vm2226, %v2187, %v2189
    %v2249 = vsel %vm2226, %v2189, %v2191
    %v2250 = vsel %vm2226, %v2191, %v2193
    %v2251 = vsel %vm2226, %v2195, %v2197
    %v2252 = vsel %vm2226, %v2197, %v2199
    %v2253 = vsel %vm2226, %v2199, %v2201
    %v2254 = vsel %vm2226, %v2203, %v2205
    %v2255 = vsel %vm2226, %v2205, %v2207
    %v2256 = vsel %vm2226, %v2207, %v2209
    %v2257 = vsel %vm2226, %v2211, %v2213
    %v2258 = vsel %vm2226, %v2213, %v2215
    %v2259 = vsel %vm2226, %v2215, %v2217
    %v2260 = vsel %vm2226, %v2219, %v2221
    %v2261 = vsel %vm2226, %v2221, %v2223
    %v2262 = vsel %vm2226, %v2223, %v2225
    %v2299 = vld [vmem:[%s5] sm:$0xff]
    %v2300 = vld [vmem:[%s5 + $0x8] sm:$0xff]
    %v2301 = vld [vmem:[%s5 + $0x10] sm:$0xff]
    %v2302 = vld [vmem:[%s5 + $0x18] sm:$0xf]
    %v2303 = vld [vmem:[%s5 + $0x1c] sm:$0xff]
    %v2304 = vld [vmem:[%s5 + $0x24] sm:$0xff]
    %v2305 = vld [vmem:[%s5 + $0x2c] sm:$0xff]
    %v2306 = vld [vmem:[%s5 + $0x34] sm:$0xf]
    %v2307 = vld [vmem:[%s5 + $0x38] sm:$0xff]
    %v2308 = vld [vmem:[%s5 + $0x40] sm:$0xff]
    %v2309 = vld [vmem:[%s5 + $0x48] sm:$0xff]
    %v2310 = vld [vmem:[%s5 + $0x50] sm:$0xf]
    %v2311 = vld [vmem:[%s5 + $0x54] sm:$0xff]
    %v2312 = vld [vmem:[%s5 + $0x5c] sm:$0xff]
    %v2313 = vld [vmem:[%s5 + $0x64] sm:$0xff]
    %v2314 = vld [vmem:[%s5 + $0x6c] sm:$0xf]
    %v2315 = vld [vmem:[%s5 + $0x70] sm:$0xff]
    %v2316 = vld [vmem:[%s5 + $0x78] sm:$0xff]
    %v2317 = vld [vmem:[%s5 + $0x80] sm:$0xff]
    %v2318 = vld [vmem:[%s5 + $0x88] sm:$0xf]
    %v2319 = vld [vmem:[%s5 + $0x8c] sm:$0xff]
    %v2320 = vld [vmem:[%s5 + $0x94] sm:$0xff]
    %v2321 = vld [vmem:[%s5 + $0x9c] sm:$0xff]
    %v2322 = vld [vmem:[%s5 + $0xa4] sm:$0xf]
    %v2323 = vld [vmem:[%s5 + $0xa8] sm:$0xff]
    %v2324 = vld [vmem:[%s5 + $0xb0] sm:$0xff]
    %v2325 = vld [vmem:[%s5 + $0xb8] sm:$0xff]
    %v2326 = vld [vmem:[%s5 + $0xc0] sm:$0xf]
    %v2327 = vld [vmem:[%s5 + $0xc4] sm:$0xff]
    %v2328 = vld [vmem:[%s5 + $0xcc] sm:$0xff]
    %v2329 = vld [vmem:[%s5 + $0xd4] sm:$0xff]
    %v2330 = vld [vmem:[%s5 + $0xdc] sm:$0xf]
    %v2331 = vld [vmem:[%s5 + $0xe0] sm:$0xff]
    %v2332 = vld [vmem:[%s5 + $0xe8] sm:$0xff]
    %v2333 = vld [vmem:[%s5 + $0xf0] sm:$0xff]
    %v2334 = vld [vmem:[%s5 + $0xf8] sm:$0xf]
    %v2335 = vld [vmem:[%s5 + $0xfc] sm:$0xff]
    %v2336 = vld [vmem:[%s5 + $0x104] sm:$0xff]
    %v2337 = vld [vmem:[%s5 + $0x10c] sm:$0xff]
    %v2338 = vld [vmem:[%s5 + $0x114] sm:$0xf]
    %v2339 = vld [vmem:[%s5 + $0x118] sm:$0xff]
    %v2340 = vld [vmem:[%s5 + $0x120] sm:$0xff]
    %v2341 = vld [vmem:[%s5 + $0x128] sm:$0xff]
    %v2342 = vld [vmem:[%s5 + $0x130] sm:$0xf]
    %v2343 = vld [vmem:[%s5 + $0x134] sm:$0xff]
    %v2344 = vld [vmem:[%s5 + $0x13c] sm:$0xff]
    %v2345 = vld [vmem:[%s5 + $0x144] sm:$0xff]
    %v2346 = vld [vmem:[%s5 + $0x14c] sm:$0xf]
    %v2347 = vld [vmem:[%s5 + $0x150] sm:$0xff]
    %v2348 = vld [vmem:[%s5 + $0x158] sm:$0xff]
    %v2349 = vld [vmem:[%s5 + $0x160] sm:$0xff]
    %v2350 = vld [vmem:[%s5 + $0x168] sm:$0xf]
    %v2351 = vld [vmem:[%s5 + $0x16c] sm:$0xff]
    %v2352 = vld [vmem:[%s5 + $0x174] sm:$0xff]
    %v2353 = vld [vmem:[%s5 + $0x17c] sm:$0xff]
    %v2354 = vld [vmem:[%s5 + $0x184] sm:$0xf]
    %v2355 = vld [vmem:[%s5 + $0x188] sm:$0xff]
    %v2356 = vld [vmem:[%s5 + $0x190] sm:$0xff]
    %v2357 = vld [vmem:[%s5 + $0x198] sm:$0xff]
    %v2358 = vld [vmem:[%s5 + $0x1a0] sm:$0xf]
    %v2359 = vld [vmem:[%s5 + $0x1a4] sm:$0xff]
    %v2360 = vld [vmem:[%s5 + $0x1ac] sm:$0xff]
    %v2361 = vld [vmem:[%s5 + $0x1b4] sm:$0xff]
    %v2362 = vld [vmem:[%s5 + $0x1bc] sm:$0xf]
    %v2363 = vld [vmem:[%s8] sm:$0xff]
    %v2364 = vld [vmem:[%s8 + $0x8] sm:$0xff]
    %v2365 = vld [vmem:[%s8 + $0x10] sm:$0xff]
    %v2366 = vld [vmem:[%s8 + $0x18] sm:$0xff]
    %v2367 = vld [vmem:[%s8 + $0x20] sm:$0xff]
    %v2368 = vld [vmem:[%s8 + $0x28] sm:$0xff]
    %v2369 = vld [vmem:[%s8 + $0x30] sm:$0xff]
    %v2370 = vld [vmem:[%s8 + $0x38] sm:$0xff]
    %v2371 = vld [vmem:[%s8 + $0x40] sm:$0xff]
    %v2372 = vld [vmem:[%s8 + $0x48] sm:$0xff]
    %v2373 = vld [vmem:[%s8 + $0x50] sm:$0xff]
    %v2374 = vld [vmem:[%s8 + $0x58] sm:$0xff]
    %v2375 = vld [vmem:[%s8 + $0x60] sm:$0xff]
    %v2376 = vld [vmem:[%s8 + $0x68] sm:$0xff]
    %v2377 = vld [vmem:[%s8 + $0x70] sm:$0xff]
    %v2378 = vld [vmem:[%s8 + $0x78] sm:$0xff]
    %v2379 = vld [vmem:[%s3] sm:$0xff]
    %v2380 = vld [vmem:[%s3 + $0x8] sm:$0xff]
    %v2381 = vld [vmem:[%s3 + $0x10] sm:$0xff]
    %v2382 = vld [vmem:[%s3 + $0x18] sm:$0xff]
    %v2383 = vld [vmem:[%s3 + $0x20] sm:$0xff]
    %v2384 = vld [vmem:[%s3 + $0x28] sm:$0xff]
    %v2385 = vld [vmem:[%s3 + $0x30] sm:$0xff]
    %v2386 = vld [vmem:[%s3 + $0x38] sm:$0xff]
    %v2387 = vld [vmem:[%s3 + $0x40] sm:$0xff]
    %v2388 = vld [vmem:[%s3 + $0x48] sm:$0xff]
    %v2389 = vld [vmem:[%s3 + $0x50] sm:$0xff]
    %v2390 = vld [vmem:[%s3 + $0x58] sm:$0xff]
    %v2391 = vld [vmem:[%s3 + $0x60] sm:$0xff]
    %v2392 = vld [vmem:[%s3 + $0x68] sm:$0xff]
    %v2393 = vld [vmem:[%s3 + $0x70] sm:$0xff]
    %v2394 = vld [vmem:[%s3 + $0x78] sm:$0xff]
    %2396 = vset.pattern.permute.xlu0 0
    %2397 = vperm.xlu0 %2396, %v2363
    %v2398 = vpop.permute.xlu0 %2397
    %2401 = vset.pattern.permute.xlu0 0
    %2402 = vperm.xlu0 %2401, %v2364
    %v2403 = vpop.permute.xlu0 %2402
    %2406 = vset.pattern.permute.xlu0 0
    %2407 = vperm.xlu0 %2406, %v2365
    %v2408 = vpop.permute.xlu0 %2407
    %2411 = vset.pattern.permute.xlu0 0
    %2412 = vperm.xlu0 %2411, %v2366
    %v2413 = vpop.permute.xlu0 %2412
    %2416 = vset.pattern.permute.xlu0 0
    %2417 = vperm.xlu0 %2416, %v2367
    %v2418 = vpop.permute.xlu0 %2417
    %2421 = vset.pattern.permute.xlu0 0
    %2422 = vperm.xlu0 %2421, %v2368
    %v2423 = vpop.permute.xlu0 %2422
    %2426 = vset.pattern.permute.xlu0 0
    %2427 = vperm.xlu0 %2426, %v2369
    %v2428 = vpop.permute.xlu0 %2427
    %2431 = vset.pattern.permute.xlu0 0
    %2432 = vperm.xlu0 %2431, %v2370
    %v2433 = vpop.permute.xlu0 %2432
    %2436 = vset.pattern.permute.xlu0 0
    %2437 = vperm.xlu0 %2436, %v2371
    %v2438 = vpop.permute.xlu0 %2437
    %2441 = vset.pattern.permute.xlu0 0
    %2442 = vperm.xlu0 %2441, %v2372
    %v2443 = vpop.permute.xlu0 %2442
    %2446 = vset.pattern.permute.xlu0 0
    %2447 = vperm.xlu0 %2446, %v2373
    %v2448 = vpop.permute.xlu0 %2447
    %2451 = vset.pattern.permute.xlu0 0
    %2452 = vperm.xlu0 %2451, %v2374
    %v2453 = vpop.permute.xlu0 %2452
    %2456 = vset.pattern.permute.xlu0 0
    %2457 = vperm.xlu0 %2456, %v2375
    %v2458 = vpop.permute.xlu0 %2457
    %2461 = vset.pattern.permute.xlu0 0
    %2462 = vperm.xlu0 %2461, %v2376
    %v2463 = vpop.permute.xlu0 %2462
    %2466 = vset.pattern.permute.xlu0 0
    %2467 = vperm.xlu0 %2466, %v2377
    %v2468 = vpop.permute.xlu0 %2467
    %2471 = vset.pattern.permute.xlu0 0
    %2472 = vperm.xlu0 %2471, %v2378
    %v2473 = vpop.permute.xlu0 %2472
    %v2539 = vunpack.c.l.b16 %v2299
    %v2540 = vunpack.c.h.b16 %v2299
    %v2541 = vunpack.c.l.b16 %v2300
    %v2542 = vunpack.c.h.b16 %v2300
    %v2543 = vunpack.c.l.b16 %v2301
    %v2544 = vunpack.c.h.b16 %v2301
    %v2545 = vunpack.c.l.b16 %v2302
    %v2546 = vunpack.c.l.b16 %v2303
    %v2547 = vunpack.c.h.b16 %v2303
    %v2548 = vunpack.c.l.b16 %v2304
    %v2549 = vunpack.c.h.b16 %v2304
    %v2550 = vunpack.c.l.b16 %v2305
    %v2551 = vunpack.c.h.b16 %v2305
    %v2552 = vunpack.c.l.b16 %v2306
    %v2553 = vunpack.c.l.b16 %v2307
    %v2554 = vunpack.c.h.b16 %v2307
    %v2555 = vunpack.c.l.b16 %v2308
    %v2556 = vunpack.c.h.b16 %v2308
    %v2557 = vunpack.c.l.b16 %v2309
    %v2558 = vunpack.c.h.b16 %v2309
    %v2559 = vunpack.c.l.b16 %v2310
    %v2560 = vunpack.c.l.b16 %v2311
    %v2561 = vunpack.c.h.b16 %v2311
    %v2562 = vunpack.c.l.b16 %v2312
    %v2563 = vunpack.c.h.b16 %v2312
    %v2564 = vunpack.c.l.b16 %v2313
    %v2565 = vunpack.c.h.b16 %v2313
    %v2566 = vunpack.c.l.b16 %v2314
    %v2567 = vunpack.c.l.b16 %v2315
    %v2568 = vunpack.c.h.b16 %v2315
    %v2569 = vunpack.c.l.b16 %v2316
    %v2570 = vunpack.c.h.b16 %v2316
    %v2571 = vunpack.c.l.b16 %v2317
    %v2572 = vunpack.c.h.b16 %v2317
    %v2573 = vunpack.c.l.b16 %v2318
    %v2574 = vunpack.c.l.b16 %v2319
    %v2575 = vunpack.c.h.b16 %v2319
    %v2576 = vunpack.c.l.b16 %v2320
    %v2577 = vunpack.c.h.b16 %v2320
    %v2578 = vunpack.c.l.b16 %v2321
    %v2579 = vunpack.c.h.b16 %v2321
    %v2580 = vunpack.c.l.b16 %v2322
    %v2581 = vunpack.c.l.b16 %v2323
    %v2582 = vunpack.c.h.b16 %v2323
    %v2583 = vunpack.c.l.b16 %v2324
    %v2584 = vunpack.c.h.b16 %v2324
    %v2585 = vunpack.c.l.b16 %v2325
    %v2586 = vunpack.c.h.b16 %v2325
    %v2587 = vunpack.c.l.b16 %v2326
    %v2588 = vunpack.c.l.b16 %v2327
    %v2589 = vunpack.c.h.b16 %v2327
    %v2590 = vunpack.c.l.b16 %v2328
    %v2591 = vunpack.c.h.b16 %v2328
    %v2592 = vunpack.c.l.b16 %v2329
    %v2593 = vunpack.c.h.b16 %v2329
    %v2594 = vunpack.c.l.b16 %v2330
    %v2595 = vunpack.c.l.b16 %v2331
    %v2596 = vunpack.c.h.b16 %v2331
    %v2597 = vunpack.c.l.b16 %v2332
    %v2598 = vunpack.c.h.b16 %v2332
    %v2599 = vunpack.c.l.b16 %v2333
    %v2600 = vunpack.c.h.b16 %v2333
    %v2601 = vunpack.c.l.b16 %v2334
    %v2602 = vunpack.c.l.b16 %v2335
    %v2603 = vunpack.c.h.b16 %v2335
    %v2604 = vunpack.c.l.b16 %v2336
    %v2605 = vunpack.c.h.b16 %v2336
    %v2606 = vunpack.c.l.b16 %v2337
    %v2607 = vunpack.c.h.b16 %v2337
    %v2608 = vunpack.c.l.b16 %v2338
    %v2609 = vunpack.c.l.b16 %v2339
    %v2610 = vunpack.c.h.b16 %v2339
    %v2611 = vunpack.c.l.b16 %v2340
    %v2612 = vunpack.c.h.b16 %v2340
    %v2613 = vunpack.c.l.b16 %v2341
    %v2614 = vunpack.c.h.b16 %v2341
    %v2615 = vunpack.c.l.b16 %v2342
    %v2616 = vunpack.c.l.b16 %v2343
    %v2617 = vunpack.c.h.b16 %v2343
    %v2618 = vunpack.c.l.b16 %v2344
    %v2619 = vunpack.c.h.b16 %v2344
    %v2620 = vunpack.c.l.b16 %v2345
    %v2621 = vunpack.c.h.b16 %v2345
    %v2622 = vunpack.c.l.b16 %v2346
    %v2623 = vunpack.c.l.b16 %v2347
    %v2624 = vunpack.c.h.b16 %v2347
    %v2625 = vunpack.c.l.b16 %v2348
    %v2626 = vunpack.c.h.b16 %v2348
    %v2627 = vunpack.c.l.b16 %v2349
    %v2628 = vunpack.c.h.b16 %v2349
    %v2629 = vunpack.c.l.b16 %v2350
    %v2630 = vunpack.c.l.b16 %v2351
    %v2631 = vunpack.c.h.b16 %v2351
    %v2632 = vunpack.c.l.b16 %v2352
    %v2633 = vunpack.c.h.b16 %v2352
    %v2634 = vunpack.c.l.b16 %v2353
    %v2635 = vunpack.c.h.b16 %v2353
    %v2636 = vunpack.c.l.b16 %v2354
    %v2637 = vunpack.c.l.b16 %v2355
    %v2638 = vunpack.c.h.b16 %v2355
    %v2639 = vunpack.c.l.b16 %v2356
    %v2640 = vunpack.c.h.b16 %v2356
    %v2641 = vunpack.c.l.b16 %v2357
    %v2642 = vunpack.c.h.b16 %v2357
    %v2643 = vunpack.c.l.b16 %v2358
    %v2644 = vunpack.c.l.b16 %v2359
    %v2645 = vunpack.c.h.b16 %v2359
    %v2646 = vunpack.c.l.b16 %v2360
    %v2647 = vunpack.c.h.b16 %v2360
    %v2648 = vunpack.c.l.b16 %v2361
    %v2649 = vunpack.c.h.b16 %v2361
    %v2650 = vunpack.c.l.b16 %v2362
    %v2651 = vpack.c.b16 %v2546, %v2539
    %v2652 = vpack.c.b16 %v2547, %v2540
    %v2653 = vpack.c.b16 %v2548, %v2541
    %v2654 = vpack.c.b16 %v2549, %v2542
    %v2655 = vpack.c.b16 %v2550, %v2543
    %v2656 = vpack.c.b16 %v2551, %v2544
    %v2657 = vpack.c.b16 %v2552, %v2545
    %v2658 = vpack.c.b16 %v2560, %v2553
    %v2659 = vpack.c.b16 %v2561, %v2554
    %v2660 = vpack.c.b16 %v2562, %v2555
    %v2661 = vpack.c.b16 %v2563, %v2556
    %v2662 = vpack.c.b16 %v2564, %v2557
    %v2663 = vpack.c.b16 %v2565, %v2558
    %v2664 = vpack.c.b16 %v2566, %v2559
    %v2665 = vpack.c.b16 %v2574, %v2567
    %v2666 = vpack.c.b16 %v2575, %v2568
    %v2667 = vpack.c.b16 %v2576, %v2569
    %v2668 = vpack.c.b16 %v2577, %v2570
    %v2669 = vpack.c.b16 %v2578, %v2571
    %v2670 = vpack.c.b16 %v2579, %v2572
    %v2671 = vpack.c.b16 %v2580, %v2573
    %v2672 = vpack.c.b16 %v2588, %v2581
    %v2673 = vpack.c.b16 %v2589, %v2582
    %v2674 = vpack.c.b16 %v2590, %v2583
    %v2675 = vpack.c.b16 %v2591, %v2584
    %v2676 = vpack.c.b16 %v2592, %v2585
    %v2677 = vpack.c.b16 %v2593, %v2586
    %v2678 = vpack.c.b16 %v2594, %v2587
    %v2679 = vpack.c.b16 %v2602, %v2595
    %v2680 = vpack.c.b16 %v2603, %v2596
    %v2681 = vpack.c.b16 %v2604, %v2597
    %v2682 = vpack.c.b16 %v2605, %v2598
    %v2683 = vpack.c.b16 %v2606, %v2599
    %v2684 = vpack.c.b16 %v2607, %v2600
    %v2685 = vpack.c.b16 %v2608, %v2601
    %v2686 = vpack.c.b16 %v2616, %v2609
    %v2687 = vpack.c.b16 %v2617, %v2610
    %v2688 = vpack.c.b16 %v2618, %v2611
    %v2689 = vpack.c.b16 %v2619, %v2612
    %v2690 = vpack.c.b16 %v2620, %v2613
    %v2691 = vpack.c.b16 %v2621, %v2614
    %v2692 = vpack.c.b16 %v2622, %v2615
    %v2693 = vpack.c.b16 %v2630, %v2623
    %v2694 = vpack.c.b16 %v2631, %v2624
    %v2695 = vpack.c.b16 %v2632, %v2625
    %v2696 = vpack.c.b16 %v2633, %v2626
    %v2697 = vpack.c.b16 %v2634, %v2627
    %v2698 = vpack.c.b16 %v2635, %v2628
    %v2699 = vpack.c.b16 %v2636, %v2629
    %v2700 = vpack.c.b16 %v2644, %v2637
    %v2701 = vpack.c.b16 %v2645, %v2638
    %v2702 = vpack.c.b16 %v2646, %v2639
    %v2703 = vpack.c.b16 %v2647, %v2640
    %v2704 = vpack.c.b16 %v2648, %v2641
    %v2705 = vpack.c.b16 %v2649, %v2642
    %v2706 = vpack.c.b16 %v2650, %v2643
    %vm2755 = vcmask 523264
    %v2757 = vsel %vm2755, %v2657, 0
    %v2760 = vsel %vm2755, %v2664, 0
    %v2763 = vsel %vm2755, %v2671, 0
    %v2766 = vsel %vm2755, %v2678, 0
    %v2769 = vsel %vm2755, %v2685, 0
    %v2772 = vsel %vm2755, %v2692, 0
    %v2775 = vsel %vm2755, %v2699, 0
    %v2778 = vsel %vm2755, %v2706, 0
    %2780 = vmatpush.bf16.msra.mxu0 %v1616
    %2781 = vmatpush.bf16.msra.mxu0 %v1613
    %2782 = vmatpush.bf16.msra.mxu0 %v1610
    %2783 = vmatpush.bf16.msra.mxu0 %v1607
    %2784 = vmatpush.bf16.msra.mxu0 %v1604
    %2785 = vmatpush.bf16.msra.mxu0 %v1601
    %2786 = vmatpush.bf16.msra.mxu0 %v1598
    %2787 = vmatpush.bf16.msra.mxu0 %v1595
    %2788 = vmatmul.bf16.gmra.mxu0 %v2651
    %v2789 = vpop.f32.mrf.mxu0
    %v2790 = vadd.f32 %v2398, %v2789
    %v2791 = vpop.f32.mrf.mxu0
    %v2792 = vadd.f32 %v2403, %v2791
    %2793 = vmatmul.bf16.gmra.mxu0 %v2658
    %v2794 = vpop.f32.mrf.mxu0
    %v2795 = vadd.f32 %v2408, %v2794
    %v2796 = vpop.f32.mrf.mxu0
    %v2797 = vadd.f32 %v2413, %v2796
    %2798 = vmatmul.bf16.gmra.mxu0 %v2665
    %v2799 = vpop.f32.mrf.mxu0
    %v2800 = vadd.f32 %v2418, %v2799
    %v2801 = vpop.f32.mrf.mxu0
    %v2802 = vadd.f32 %v2423, %v2801
    %2803 = vmatmul.bf16.gmra.mxu0 %v2672
    %v2804 = vpop.f32.mrf.mxu0
    %v2805 = vadd.f32 %v2428, %v2804
    %v2806 = vpop.f32.mrf.mxu0
    %v2807 = vadd.f32 %v2433, %v2806
    %2808 = vmatmul.bf16.gmra.mxu0 %v2679
    %v2809 = vpop.f32.mrf.mxu0
    %v2810 = vadd.f32 %v2438, %v2809
    %v2811 = vpop.f32.mrf.mxu0
    %v2812 = vadd.f32 %v2443, %v2811
    %2813 = vmatmul.bf16.gmra.mxu0 %v2686
    %v2814 = vpop.f32.mrf.mxu0
    %v2815 = vadd.f32 %v2448, %v2814
    %v2816 = vpop.f32.mrf.mxu0
    %v2817 = vadd.f32 %v2453, %v2816
    %2818 = vmatmul.bf16.gmra.mxu0 %v2693
    %v2819 = vpop.f32.mrf.mxu0
    %v2820 = vadd.f32 %v2458, %v2819
    %v2821 = vpop.f32.mrf.mxu0
    %v2822 = vadd.f32 %v2463, %v2821
    %2823 = vmatmul.bf16.gmra.mxu0 %v2700
    %v2824 = vpop.f32.mrf.mxu0
    %v2825 = vadd.f32 %v2468, %v2824
    %v2826 = vpop.f32.mrf.mxu0
    %v2827 = vadd.f32 %v2473, %v2826
    %2828 = vdwg.mxu0
    %2829 = vmatpush.bf16.msra.mxu0 %v1831
    %2830 = vmatpush.bf16.msra.mxu0 %v1828
    %2831 = vmatpush.bf16.msra.mxu0 %v1825
    %2832 = vmatpush.bf16.msra.mxu0 %v1822
    %2833 = vmatpush.bf16.msra.mxu0 %v1819
    %2834 = vmatpush.bf16.msra.mxu0 %v1816
    %2835 = vmatpush.bf16.msra.mxu0 %v1813
    %2836 = vmatpush.bf16.msra.mxu0 %v1810
    %2837 = vmatmul.bf16.gmra.mxu0 %v2652
    %v2838 = vpop.f32.mrf.mxu0
    %v2839 = vadd.f32 %v2790, %v2838
    %v2840 = vpop.f32.mrf.mxu0
    %v2841 = vadd.f32 %v2792, %v2840
    %2842 = vmatmul.bf16.gmra.mxu0 %v2659
    %v2843 = vpop.f32.mrf.mxu0
    %v2844 = vadd.f32 %v2795, %v2843
    %v2845 = vpop.f32.mrf.mxu0
    %v2846 = vadd.f32 %v2797, %v2845
    %2847 = vmatmul.bf16.gmra.mxu0 %v2666
    %v2848 = vpop.f32.mrf.mxu0
    %v2849 = vadd.f32 %v2800, %v2848
    %v2850 = vpop.f32.mrf.mxu0
    %v2851 = vadd.f32 %v2802, %v2850
    %2852 = vmatmul.bf16.gmra.mxu0 %v2673
    %v2853 = vpop.f32.mrf.mxu0
    %v2854 = vadd.f32 %v2805, %v2853
    %v2855 = vpop.f32.mrf.mxu0
    %v2856 = vadd.f32 %v2807, %v2855
    %2857 = vmatmul.bf16.gmra.mxu0 %v2680
    %v2858 = vpop.f32.mrf.mxu0
    %v2859 = vadd.f32 %v2810, %v2858
    %v2860 = vpop.f32.mrf.mxu0
    %v2861 = vadd.f32 %v2812, %v2860
    %2862 = vmatmul.bf16.gmra.mxu0 %v2687
    %v2863 = vpop.f32.mrf.mxu0
    %v2864 = vadd.f32 %v2815, %v2863
    %v2865 = vpop.f32.mrf.mxu0
    %v2866 = vadd.f32 %v2817, %v2865
    %2867 = vmatmul.bf16.gmra.mxu0 %v2694
    %v2868 = vpop.f32.mrf.mxu0
    %v2869 = vadd.f32 %v2820, %v2868
    %v2870 = vpop.f32.mrf.mxu0
    %v2871 = vadd.f32 %v2822, %v2870
    %2872 = vmatmul.bf16.gmra.mxu0 %v2701
    %v2873 = vpop.f32.mrf.mxu0
    %v2874 = vadd.f32 %v2825, %v2873
    %v2875 = vpop.f32.mrf.mxu0
    %v2876 = vadd.f32 %v2827, %v2875
    %2877 = vdwg.mxu0
    %2878 = vmatpush.bf16.msra.mxu0 %v1855
    %2879 = vmatpush.bf16.msra.mxu0 %v1852
    %2880 = vmatpush.bf16.msra.mxu0 %v1849
    %2881 = vmatpush.bf16.msra.mxu0 %v1846
    %2882 = vmatpush.bf16.msra.mxu0 %v1843
    %2883 = vmatpush.bf16.msra.mxu0 %v1840
    %2884 = vmatpush.bf16.msra.mxu0 %v1837
    %2885 = vmatpush.bf16.msra.mxu0 %v1834
    %2886 = vmatmul.bf16.gmra.mxu0 %v2653
    %v2887 = vpop.f32.mrf.mxu0
    %v2888 = vadd.f32 %v2839, %v2887
    %v2889 = vpop.f32.mrf.mxu0
    %v2890 = vadd.f32 %v2841, %v2889
    %2891 = vmatmul.bf16.gmra.mxu0 %v2660
    %v2892 = vpop.f32.mrf.mxu0
    %v2893 = vadd.f32 %v2844, %v2892
    %v2894 = vpop.f32.mrf.mxu0
    %v2895 = vadd.f32 %v2846, %v2894
    %2896 = vmatmul.bf16.gmra.mxu0 %v2667
    %v2897 = vpop.f32.mrf.mxu0
    %v2898 = vadd.f32 %v2849, %v2897
    %v2899 = vpop.f32.mrf.mxu0
    %v2900 = vadd.f32 %v2851, %v2899
    %2901 = vmatmul.bf16.gmra.mxu0 %v2674
    %v2902 = vpop.f32.mrf.mxu0
    %v2903 = vadd.f32 %v2854, %v2902
    %v2904 = vpop.f32.mrf.mxu0
    %v2905 = vadd.f32 %v2856, %v2904
    %2906 = vmatmul.bf16.gmra.mxu0 %v2681
    %v2907 = vpop.f32.mrf.mxu0
    %v2908 = vadd.f32 %v2859, %v2907
    %v2909 = vpop.f32.mrf.mxu0
    %v2910 = vadd.f32 %v2861, %v2909
    %2911 = vmatmul.bf16.gmra.mxu0 %v2688
    %v2912 = vpop.f32.mrf.mxu0
    %v2913 = vadd.f32 %v2864, %v2912
    %v2914 = vpop.f32.mrf.mxu0
    %v2915 = vadd.f32 %v2866, %v2914
    %2916 = vmatmul.bf16.gmra.mxu0 %v2695
    %v2917 = vpop.f32.mrf.mxu0
    %v2918 = vadd.f32 %v2869, %v2917
    %v2919 = vpop.f32.mrf.mxu0
    %v2920 = vadd.f32 %v2871, %v2919
    %2921 = vmatmul.bf16.gmra.mxu0 %v2702
    %v2922 = vpop.f32.mrf.mxu0
    %v2923 = vadd.f32 %v2874, %v2922
    %v2924 = vpop.f32.mrf.mxu0
    %v2925 = vadd.f32 %v2876, %v2924
    %2926 = vdwg.mxu0
    %2927 = vmatpush.bf16.msra.mxu0 %v2055
    %2928 = vmatpush.bf16.msra.mxu0 %v2052
    %2929 = vmatpush.bf16.msra.mxu0 %v2049
    %2930 = vmatpush.bf16.msra.mxu0 %v2046
    %2931 = vmatpush.bf16.msra.mxu0 %v2043
    %2932 = vmatpush.bf16.msra.mxu0 %v2040
    %2933 = vmatpush.bf16.msra.mxu0 %v2037
    %2934 = vmatpush.bf16.msra.mxu0 %v2034
    %2935 = vmatmul.bf16.gmra.mxu0 %v2654
    %v2936 = vpop.f32.mrf.mxu0
    %v2937 = vadd.f32 %v2888, %v2936
    %v2938 = vpop.f32.mrf.mxu0
    %v2939 = vadd.f32 %v2890, %v2938
    %2940 = vmatmul.bf16.gmra.mxu0 %v2661
    %v2941 = vpop.f32.mrf.mxu0
    %v2942 = vadd.f32 %v2893, %v2941
    %v2943 = vpop.f32.mrf.mxu0
    %v2944 = vadd.f32 %v2895, %v2943
    %2945 = vmatmul.bf16.gmra.mxu0 %v2668
    %v2946 = vpop.f32.mrf.mxu0
    %v2947 = vadd.f32 %v2898, %v2946
    %v2948 = vpop.f32.mrf.mxu0
    %v2949 = vadd.f32 %v2900, %v2948
    %2950 = vmatmul.bf16.gmra.mxu0 %v2675
    %v2951 = vpop.f32.mrf.mxu0
    %v2952 = vadd.f32 %v2903, %v2951
    %v2953 = vpop.f32.mrf.mxu0
    %v2954 = vadd.f32 %v2905, %v2953
    %2955 = vmatmul.bf16.gmra.mxu0 %v2682
    %v2956 = vpop.f32.mrf.mxu0
    %v2957 = vadd.f32 %v2908, %v2956
    %v2958 = vpop.f32.mrf.mxu0
    %v2959 = vadd.f32 %v2910, %v2958
    %2960 = vmatmul.bf16.gmra.mxu0 %v2689
    %v2961 = vpop.f32.mrf.mxu0
    %v2962 = vadd.f32 %v2913, %v2961
    %v2963 = vpop.f32.mrf.mxu0
    %v2964 = vadd.f32 %v2915, %v2963
    %2965 = vmatmul.bf16.gmra.mxu0 %v2696
    %v2966 = vpop.f32.mrf.mxu0
    %v2967 = vadd.f32 %v2918, %v2966
    %v2968 = vpop.f32.mrf.mxu0
    %v2969 = vadd.f32 %v2920, %v2968
    %2970 = vmatmul.bf16.gmra.mxu0 %v2703
    %v2971 = vpop.f32.mrf.mxu0
    %v2972 = vadd.f32 %v2923, %v2971
    %v2973 = vpop.f32.mrf.mxu0
    %v2974 = vadd.f32 %v2925, %v2973
    %2975 = vdwg.mxu0
    %2976 = vmatpush.bf16.msra.mxu0 %v2079
    %2977 = vmatpush.bf16.msra.mxu0 %v2076
    %2978 = vmatpush.bf16.msra.mxu0 %v2073
    %2979 = vmatpush.bf16.msra.mxu0 %v2070
    %2980 = vmatpush.bf16.msra.mxu0 %v2067
    %2981 = vmatpush.bf16.msra.mxu0 %v2064
    %2982 = vmatpush.bf16.msra.mxu0 %v2061
    %2983 = vmatpush.bf16.msra.mxu0 %v2058
    %2984 = vmatmul.bf16.gmra.mxu0 %v2655
    %v2985 = vpop.f32.mrf.mxu0
    %v2986 = vadd.f32 %v2937, %v2985
    %v2987 = vpop.f32.mrf.mxu0
    %v2988 = vadd.f32 %v2939, %v2987
    %2989 = vmatmul.bf16.gmra.mxu0 %v2662
    %v2990 = vpop.f32.mrf.mxu0
    %v2991 = vadd.f32 %v2942, %v2990
    %v2992 = vpop.f32.mrf.mxu0
    %v2993 = vadd.f32 %v2944, %v2992
    %2994 = vmatmul.bf16.gmra.mxu0 %v2669
    %v2995 = vpop.f32.mrf.mxu0
    %v2996 = vadd.f32 %v2947, %v2995
    %v2997 = vpop.f32.mrf.mxu0
    %v2998 = vadd.f32 %v2949, %v2997
    %2999 = vmatmul.bf16.gmra.mxu0 %v2676
    %v3000 = vpop.f32.mrf.mxu0
    %v3001 = vadd.f32 %v2952, %v3000
    %v3002 = vpop.f32.mrf.mxu0
    %v3003 = vadd.f32 %v2954, %v3002
    %3004 = vmatmul.bf16.gmra.mxu0 %v2683
    %v3005 = vpop.f32.mrf.mxu0
    %v3006 = vadd.f32 %v2957, %v3005
    %v3007 = vpop.f32.mrf.mxu0
    %v3008 = vadd.f32 %v2959, %v3007
    %3009 = vmatmul.bf16.gmra.mxu0 %v2690
    %v3010 = vpop.f32.mrf.mxu0
    %v3011 = vadd.f32 %v2962, %v3010
    %v3012 = vpop.f32.mrf.mxu0
    %v3013 = vadd.f32 %v2964, %v3012
    %3014 = vmatmul.bf16.gmra.mxu0 %v2697
    %v3015 = vpop.f32.mrf.mxu0
    %v3016 = vadd.f32 %v2967, %v3015
    %v3017 = vpop.f32.mrf.mxu0
    %v3018 = vadd.f32 %v2969, %v3017
    %3019 = vmatmul.bf16.gmra.mxu0 %v2704
    %v3020 = vpop.f32.mrf.mxu0
    %v3021 = vadd.f32 %v2972, %v3020
    %v3022 = vpop.f32.mrf.mxu0
    %v3023 = vadd.f32 %v2974, %v3022
    %3024 = vdwg.mxu0
    %3025 = vmatpush.bf16.msra.mxu0 %v2248
    %3026 = vmatpush.bf16.msra.mxu0 %v2245
    %3027 = vmatpush.bf16.msra.mxu0 %v2242
    %3028 = vmatpush.bf16.msra.mxu0 %v2239
    %3029 = vmatpush.bf16.msra.mxu0 %v2236
    %3030 = vmatpush.bf16.msra.mxu0 %v2233
    %3031 = vmatpush.bf16.msra.mxu0 %v2230
    %3032 = vmatpush.bf16.msra.mxu0 %v2227
    %3033 = vmatmul.bf16.gmra.mxu0 %v2656
    %v3034 = vpop.f32.mrf.mxu0
    %v3035 = vadd.f32 %v2986, %v3034
    %v3036 = vpop.f32.mrf.mxu0
    %v3037 = vadd.f32 %v2988, %v3036
    %3038 = vmatmul.bf16.gmra.mxu0 %v2663
    %v3039 = vpop.f32.mrf.mxu0
    %v3040 = vadd.f32 %v2991, %v3039
    %v3041 = vpop.f32.mrf.mxu0
    %v3042 = vadd.f32 %v2993, %v3041
    %3043 = vmatmul.bf16.gmra.mxu0 %v2670
    %v3044 = vpop.f32.mrf.mxu0
    %v3045 = vadd.f32 %v2996, %v3044
    %v3046 = vpop.f32.mrf.mxu0
    %v3047 = vadd.f32 %v2998, %v3046
    %3048 = vmatmul.bf16.gmra.mxu0 %v2677
    %v3049 = vpop.f32.mrf.mxu0
    %v3050 = vadd.f32 %v3001, %v3049
    %v3051 = vpop.f32.mrf.mxu0
    %v3052 = vadd.f32 %v3003, %v3051
    %3053 = vmatmul.bf16.gmra.mxu0 %v2684
    %v3054 = vpop.f32.mrf.mxu0
    %v3055 = vadd.f32 %v3006, %v3054
    %v3056 = vpop.f32.mrf.mxu0
    %v3057 = vadd.f32 %v3008, %v3056
    %3058 = vmatmul.bf16.gmra.mxu0 %v2691
    %v3059 = vpop.f32.mrf.mxu0
    %v3060 = vadd.f32 %v3011, %v3059
    %v3061 = vpop.f32.mrf.mxu0
    %v3062 = vadd.f32 %v3013, %v3061
    %3063 = vmatmul.bf16.gmra.mxu0 %v2698
    %v3064 = vpop.f32.mrf.mxu0
    %v3065 = vadd.f32 %v3016, %v3064
    %v3066 = vpop.f32.mrf.mxu0
    %v3067 = vadd.f32 %v3018, %v3066
    %3068 = vmatmul.bf16.gmra.mxu0 %v2705
    %v3069 = vpop.f32.mrf.mxu0
    %v3070 = vadd.f32 %v3021, %v3069
    %v3071 = vpop.f32.mrf.mxu0
    %v3072 = vadd.f32 %v3023, %v3071
    %3073 = vdwg.mxu0
    %3074 = vmatpush.bf16.msra.mxu0 0
    %3075 = vmatpush.bf16.msra.mxu0 0
    %3076 = vmatpush.bf16.msra.mxu0 0
    %3077 = vmatpush.bf16.msra.mxu0 0
    %3078 = vmatpush.bf16.msra.mxu0 %v2260
    %3079 = vmatpush.bf16.msra.mxu0 %v2257
    %3080 = vmatpush.bf16.msra.mxu0 %v2254
    %3081 = vmatpush.bf16.msra.mxu0 %v2251
    %3082 = vmatmul.bf16.gmra.mxu0 %v2757
    %v3083 = vpop.f32.mrf.mxu0
    %v3084 = vadd.f32 %v3035, %v3083
    %v3085 = vpop.f32.mrf.mxu0
    %v3086 = vadd.f32 %v3037, %v3085
    %3087 = vmatmul.bf16.gmra.mxu0 %v2760
    %v3088 = vpop.f32.mrf.mxu0
    %v3089 = vadd.f32 %v3040, %v3088
    %v3090 = vpop.f32.mrf.mxu0
    %v3091 = vadd.f32 %v3042, %v3090
    %3092 = vmatmul.bf16.gmra.mxu0 %v2763
    %v3093 = vpop.f32.mrf.mxu0
    %v3094 = vadd.f32 %v3045, %v3093
    %v3095 = vpop.f32.mrf.mxu0
    %v3096 = vadd.f32 %v3047, %v3095
    %3097 = vmatmul.bf16.gmra.mxu0 %v2766
    %v3098 = vpop.f32.mrf.mxu0
    %v3099 = vadd.f32 %v3050, %v3098
    %v3100 = vpop.f32.mrf.mxu0
    %v3101 = vadd.f32 %v3052, %v3100
    %3102 = vmatmul.bf16.gmra.mxu0 %v2769
    %v3103 = vpop.f32.mrf.mxu0
    %v3104 = vadd.f32 %v3055, %v3103
    %v3105 = vpop.f32.mrf.mxu0
    %v3106 = vadd.f32 %v3057, %v3105
    %3107 = vmatmul.bf16.gmra.mxu0 %v2772
    %v3108 = vpop.f32.mrf.mxu0
    %v3109 = vadd.f32 %v3060, %v3108
    %v3110 = vpop.f32.mrf.mxu0
    %v3111 = vadd.f32 %v3062, %v3110
    %3112 = vmatmul.bf16.gmra.mxu0 %v2775
    %v3113 = vpop.f32.mrf.mxu0
    %v3114 = vadd.f32 %v3065, %v3113
    %v3115 = vpop.f32.mrf.mxu0
    %v3116 = vadd.f32 %v3067, %v3115
    %3117 = vmatmul.bf16.gmra.mxu0 %v2778
    %v3118 = vpop.f32.mrf.mxu0
    %v3119 = vadd.f32 %v3070, %v3118
    %v3120 = vpop.f32.mrf.mxu0
    %v3121 = vadd.f32 %v3072, %v3120
    %3122 = vdwg.mxu0
    %3123 = vmatpush.bf16.msra.mxu0 %v1560
    %3124 = vmatpush.bf16.msra.mxu0 %v1558
    %3125 = vmatpush.bf16.msra.mxu0 %v1556
    %3126 = vmatpush.bf16.msra.mxu0 %v1554
    %3127 = vmatpush.bf16.msra.mxu0 %v1552
    %3128 = vmatpush.bf16.msra.mxu0 %v1550
    %3129 = vmatpush.bf16.msra.mxu0 %v1548
    %3130 = vmatpush.bf16.msra.mxu0 %v1546
    %3131 = vmatmul.bf16.gmra.mxu0 %v2651
    %v3132 = vpop.f32.mrf.mxu0
    %v3133 = vadd.f32 %v2398, %v3132
    %v3134 = vpop.f32.mrf.mxu0
    %v3135 = vadd.f32 %v2403, %v3134
    %3136 = vmatmul.bf16.gmra.mxu0 %v2658
    %v3137 = vpop.f32.mrf.mxu0
    %v3138 = vadd.f32 %v2408, %v3137
    %v3139 = vpop.f32.mrf.mxu0
    %v3140 = vadd.f32 %v2413, %v3139
    %3141 = vmatmul.bf16.gmra.mxu0 %v2665
    %v3142 = vpop.f32.mrf.mxu0
    %v3143 = vadd.f32 %v2418, %v3142
    %v3144 = vpop.f32.mrf.mxu0
    %v3145 = vadd.f32 %v2423, %v3144
    %3146 = vmatmul.bf16.gmra.mxu0 %v2672
    %v3147 = vpop.f32.mrf.mxu0
    %v3148 = vadd.f32 %v2428, %v3147
    %v3149 = vpop.f32.mrf.mxu0
    %v3150 = vadd.f32 %v2433, %v3149
    %3151 = vmatmul.bf16.gmra.mxu0 %v2679
    %v3152 = vpop.f32.mrf.mxu0
    %v3153 = vadd.f32 %v2438, %v3152
    %v3154 = vpop.f32.mrf.mxu0
    %v3155 = vadd.f32 %v2443, %v3154
    %3156 = vmatmul.bf16.gmra.mxu0 %v2686
    %v3157 = vpop.f32.mrf.mxu0
    %v3158 = vadd.f32 %v2448, %v3157
    %v3159 = vpop.f32.mrf.mxu0
    %v3160 = vadd.f32 %v2453, %v3159
    %3161 = vmatmul.bf16.gmra.mxu0 %v2693
    %v3162 = vpop.f32.mrf.mxu0
    %v3163 = vadd.f32 %v2458, %v3162
    %v3164 = vpop.f32.mrf.mxu0
    %v3165 = vadd.f32 %v2463, %v3164
    %3166 = vmatmul.bf16.gmra.mxu0 %v2700
    %v3167 = vpop.f32.mrf.mxu0
    %v3168 = vadd.f32 %v2468, %v3167
    %v3169 = vpop.f32.mrf.mxu0
    %v3170 = vadd.f32 %v2473, %v3169
    %3171 = vdwg.mxu0
    %3172 = vmatpush.bf16.msra.mxu0 %v1832
    %3173 = vmatpush.bf16.msra.mxu0 %v1829
    %3174 = vmatpush.bf16.msra.mxu0 %v1826
    %3175 = vmatpush.bf16.msra.mxu0 %v1823
    %3176 = vmatpush.bf16.msra.mxu0 %v1820
    %3177 = vmatpush.bf16.msra.mxu0 %v1817
    %3178 = vmatpush.bf16.msra.mxu0 %v1814
    %3179 = vmatpush.bf16.msra.mxu0 %v1811
    %3180 = vmatmul.bf16.gmra.mxu0 %v2652
    %v3181 = vpop.f32.mrf.mxu0
    %v3182 = vadd.f32 %v3133, %v3181
    %v3183 = vpop.f32.mrf.mxu0
    %v3184 = vadd.f32 %v3135, %v3183
    %3185 = vmatmul.bf16.gmra.mxu0 %v2659
    %v3186 = vpop.f32.mrf.mxu0
    %v3187 = vadd.f32 %v3138, %v3186
    %v3188 = vpop.f32.mrf.mxu0
    %v3189 = vadd.f32 %v3140, %v3188
    %3190 = vmatmul.bf16.gmra.mxu0 %v2666
    %v3191 = vpop.f32.mrf.mxu0
    %v3192 = vadd.f32 %v3143, %v3191
    %v3193 = vpop.f32.mrf.mxu0
    %v3194 = vadd.f32 %v3145, %v3193
    %3195 = vmatmul.bf16.gmra.mxu0 %v2673
    %v3196 = vpop.f32.mrf.mxu0
    %v3197 = vadd.f32 %v3148, %v3196
    %v3198 = vpop.f32.mrf.mxu0
    %v3199 = vadd.f32 %v3150, %v3198
    %3200 = vmatmul.bf16.gmra.mxu0 %v2680
    %v3201 = vpop.f32.mrf.mxu0
    %v3202 = vadd.f32 %v3153, %v3201
    %v3203 = vpop.f32.mrf.mxu0
    %v3204 = vadd.f32 %v3155, %v3203
    %3205 = vmatmul.bf16.gmra.mxu0 %v2687
    %v3206 = vpop.f32.mrf.mxu0
    %v3207 = vadd.f32 %v3158, %v3206
    %v3208 = vpop.f32.mrf.mxu0
    %v3209 = vadd.f32 %v3160, %v3208
    %3210 = vmatmul.bf16.gmra.mxu0 %v2694
    %v3211 = vpop.f32.mrf.mxu0
    %v3212 = vadd.f32 %v3163, %v3211
    %v3213 = vpop.f32.mrf.mxu0
    %v3214 = vadd.f32 %v3165, %v3213
    %3215 = vmatmul.bf16.gmra.mxu0 %v2701
    %v3216 = vpop.f32.mrf.mxu0
    %v3217 = vadd.f32 %v3168, %v3216
    %v3218 = vpop.f32.mrf.mxu0
    %v3219 = vadd.f32 %v3170, %v3218
    %3220 = vdwg.mxu0
    %3221 = vmatpush.bf16.msra.mxu0 %v1856
    %3222 = vmatpush.bf16.msra.mxu0 %v1853
    %3223 = vmatpush.bf16.msra.mxu0 %v1850
    %3224 = vmatpush.bf16.msra.mxu0 %v1847
    %3225 = vmatpush.bf16.msra.mxu0 %v1844
    %3226 = vmatpush.bf16.msra.mxu0 %v1841
    %3227 = vmatpush.bf16.msra.mxu0 %v1838
    %3228 = vmatpush.bf16.msra.mxu0 %v1835
    %3229 = vmatmul.bf16.gmra.mxu0 %v2653
    %v3230 = vpop.f32.mrf.mxu0
    %v3231 = vadd.f32 %v3182, %v3230
    %v3232 = vpop.f32.mrf.mxu0
    %v3233 = vadd.f32 %v3184, %v3232
    %3234 = vmatmul.bf16.gmra.mxu0 %v2660
    %v3235 = vpop.f32.mrf.mxu0
    %v3236 = vadd.f32 %v3187, %v3235
    %v3237 = vpop.f32.mrf.mxu0
    %v3238 = vadd.f32 %v3189, %v3237
    %3239 = vmatmul.bf16.gmra.mxu0 %v2667
    %v3240 = vpop.f32.mrf.mxu0
    %v3241 = vadd.f32 %v3192, %v3240
    %v3242 = vpop.f32.mrf.mxu0
    %v3243 = vadd.f32 %v3194, %v3242
    %3244 = vmatmul.bf16.gmra.mxu0 %v2674
    %v3245 = vpop.f32.mrf.mxu0
    %v3246 = vadd.f32 %v3197, %v3245
    %v3247 = vpop.f32.mrf.mxu0
    %v3248 = vadd.f32 %v3199, %v3247
    %3249 = vmatmul.bf16.gmra.mxu0 %v2681
    %v3250 = vpop.f32.mrf.mxu0
    %v3251 = vadd.f32 %v3202, %v3250
    %v3252 = vpop.f32.mrf.mxu0
    %v3253 = vadd.f32 %v3204, %v3252
    %3254 = vmatmul.bf16.gmra.mxu0 %v2688
    %v3255 = vpop.f32.mrf.mxu0
    %v3256 = vadd.f32 %v3207, %v3255
    %v3257 = vpop.f32.mrf.mxu0
    %v3258 = vadd.f32 %v3209, %v3257
    %3259 = vmatmul.bf16.gmra.mxu0 %v2695
    %v3260 = vpop.f32.mrf.mxu0
    %v3261 = vadd.f32 %v3212, %v3260
    %v3262 = vpop.f32.mrf.mxu0
    %v3263 = vadd.f32 %v3214, %v3262
    %3264 = vmatmul.bf16.gmra.mxu0 %v2702
    %v3265 = vpop.f32.mrf.mxu0
    %v3266 = vadd.f32 %v3217, %v3265
    %v3267 = vpop.f32.mrf.mxu0
    %v3268 = vadd.f32 %v3219, %v3267
    %3269 = vdwg.mxu0
    %3270 = vmatpush.bf16.msra.mxu0 %v2056
    %3271 = vmatpush.bf16.msra.mxu0 %v2053
    %3272 = vmatpush.bf16.msra.mxu0 %v2050
    %3273 = vmatpush.bf16.msra.mxu0 %v2047
    %3274 = vmatpush.bf16.msra.mxu0 %v2044
    %3275 = vmatpush.bf16.msra.mxu0 %v2041
    %3276 = vmatpush.bf16.msra.mxu0 %v2038
    %3277 = vmatpush.bf16.msra.mxu0 %v2035
    %3278 = vmatmul.bf16.gmra.mxu0 %v2654
    %v3279 = vpop.f32.mrf.mxu0
    %v3280 = vadd.f32 %v3231, %v3279
    %v3281 = vpop.f32.mrf.mxu0
    %v3282 = vadd.f32 %v3233, %v3281
    %3283 = vmatmul.bf16.gmra.mxu0 %v2661
    %v3284 = vpop.f32.mrf.mxu0
    %v3285 = vadd.f32 %v3236, %v3284
    %v3286 = vpop.f32.mrf.mxu0
    %v3287 = vadd.f32 %v3238, %v3286
    %3288 = vmatmul.bf16.gmra.mxu0 %v2668
    %v3289 = vpop.f32.mrf.mxu0
    %v3290 = vadd.f32 %v3241, %v3289
    %v3291 = vpop.f32.mrf.mxu0
    %v3292 = vadd.f32 %v3243, %v3291
    %3293 = vmatmul.bf16.gmra.mxu0 %v2675
    %v3294 = vpop.f32.mrf.mxu0
    %v3295 = vadd.f32 %v3246, %v3294
    %v3296 = vpop.f32.mrf.mxu0
    %v3297 = vadd.f32 %v3248, %v3296
    %3298 = vmatmul.bf16.gmra.mxu0 %v2682
    %v3299 = vpop.f32.mrf.mxu0
    %v3300 = vadd.f32 %v3251, %v3299
    %v3301 = vpop.f32.mrf.mxu0
    %v3302 = vadd.f32 %v3253, %v3301
    %3303 = vmatmul.bf16.gmra.mxu0 %v2689
    %v3304 = vpop.f32.mrf.mxu0
    %v3305 = vadd.f32 %v3256, %v3304
    %v3306 = vpop.f32.mrf.mxu0
    %v3307 = vadd.f32 %v3258, %v3306
    %3308 = vmatmul.bf16.gmra.mxu0 %v2696
    %v3309 = vpop.f32.mrf.mxu0
    %v3310 = vadd.f32 %v3261, %v3309
    %v3311 = vpop.f32.mrf.mxu0
    %v3312 = vadd.f32 %v3263, %v3311
    %3313 = vmatmul.bf16.gmra.mxu0 %v2703
    %v3314 = vpop.f32.mrf.mxu0
    %v3315 = vadd.f32 %v3266, %v3314
    %v3316 = vpop.f32.mrf.mxu0
    %v3317 = vadd.f32 %v3268, %v3316
    %3318 = vdwg.mxu0
    %3319 = vmatpush.bf16.msra.mxu0 %v2080
    %3320 = vmatpush.bf16.msra.mxu0 %v2077
    %3321 = vmatpush.bf16.msra.mxu0 %v2074
    %3322 = vmatpush.bf16.msra.mxu0 %v2071
    %3323 = vmatpush.bf16.msra.mxu0 %v2068
    %3324 = vmatpush.bf16.msra.mxu0 %v2065
    %3325 = vmatpush.bf16.msra.mxu0 %v2062
    %3326 = vmatpush.bf16.msra.mxu0 %v2059
    %3327 = vmatmul.bf16.gmra.mxu0 %v2655
    %v3328 = vpop.f32.mrf.mxu0
    %v3329 = vadd.f32 %v3280, %v3328
    %v3330 = vpop.f32.mrf.mxu0
    %v3331 = vadd.f32 %v3282, %v3330
    %3332 = vmatmul.bf16.gmra.mxu0 %v2662
    %v3333 = vpop.f32.mrf.mxu0
    %v3334 = vadd.f32 %v3285, %v3333
    %v3335 = vpop.f32.mrf.mxu0
    %v3336 = vadd.f32 %v3287, %v3335
    %3337 = vmatmul.bf16.gmra.mxu0 %v2669
    %v3338 = vpop.f32.mrf.mxu0
    %v3339 = vadd.f32 %v3290, %v3338
    %v3340 = vpop.f32.mrf.mxu0
    %v3341 = vadd.f32 %v3292, %v3340
    %3342 = vmatmul.bf16.gmra.mxu0 %v2676
    %v3343 = vpop.f32.mrf.mxu0
    %v3344 = vadd.f32 %v3295, %v3343
    %v3345 = vpop.f32.mrf.mxu0
    %v3346 = vadd.f32 %v3297, %v3345
    %3347 = vmatmul.bf16.gmra.mxu0 %v2683
    %v3348 = vpop.f32.mrf.mxu0
    %v3349 = vadd.f32 %v3300, %v3348
    %v3350 = vpop.f32.mrf.mxu0
    %v3351 = vadd.f32 %v3302, %v3350
    %3352 = vmatmul.bf16.gmra.mxu0 %v2690
    %v3353 = vpop.f32.mrf.mxu0
    %v3354 = vadd.f32 %v3305, %v3353
    %v3355 = vpop.f32.mrf.mxu0
    %v3356 = vadd.f32 %v3307, %v3355
    %3357 = vmatmul.bf16.gmra.mxu0 %v2697
    %v3358 = vpop.f32.mrf.mxu0
    %v3359 = vadd.f32 %v3310, %v3358
    %v3360 = vpop.f32.mrf.mxu0
    %v3361 = vadd.f32 %v3312, %v3360
    %3362 = vmatmul.bf16.gmra.mxu0 %v2704
    %v3363 = vpop.f32.mrf.mxu0
    %v3364 = vadd.f32 %v3315, %v3363
    %v3365 = vpop.f32.mrf.mxu0
    %v3366 = vadd.f32 %v3317, %v3365
    %3367 = vdwg.mxu0
    %3368 = vmatpush.bf16.msra.mxu0 %v2249
    %3369 = vmatpush.bf16.msra.mxu0 %v2246
    %3370 = vmatpush.bf16.msra.mxu0 %v2243
    %3371 = vmatpush.bf16.msra.mxu0 %v2240
    %3372 = vmatpush.bf16.msra.mxu0 %v2237
    %3373 = vmatpush.bf16.msra.mxu0 %v2234
    %3374 = vmatpush.bf16.msra.mxu0 %v2231
    %3375 = vmatpush.bf16.msra.mxu0 %v2228
    %3376 = vmatmul.bf16.gmra.mxu0 %v2656
    %v3377 = vpop.f32.mrf.mxu0
    %v3378 = vadd.f32 %v3329, %v3377
    %v3379 = vpop.f32.mrf.mxu0
    %v3380 = vadd.f32 %v3331, %v3379
    %3381 = vmatmul.bf16.gmra.mxu0 %v2663
    %v3382 = vpop.f32.mrf.mxu0
    %v3383 = vadd.f32 %v3334, %v3382
    %v3384 = vpop.f32.mrf.mxu0
    %v3385 = vadd.f32 %v3336, %v3384
    %3386 = vmatmul.bf16.gmra.mxu0 %v2670
    %v3387 = vpop.f32.mrf.mxu0
    %v3388 = vadd.f32 %v3339, %v3387
    %v3389 = vpop.f32.mrf.mxu0
    %v3390 = vadd.f32 %v3341, %v3389
    %3391 = vmatmul.bf16.gmra.mxu0 %v2677
    %v3392 = vpop.f32.mrf.mxu0
    %v3393 = vadd.f32 %v3344, %v3392
    %v3394 = vpop.f32.mrf.mxu0
    %v3395 = vadd.f32 %v3346, %v3394
    %3396 = vmatmul.bf16.gmra.mxu0 %v2684
    %v3397 = vpop.f32.mrf.mxu0
    %v3398 = vadd.f32 %v3349, %v3397
    %v3399 = vpop.f32.mrf.mxu0
    %v3400 = vadd.f32 %v3351, %v3399
    %3401 = vmatmul.bf16.gmra.mxu0 %v2691
    %v3402 = vpop.f32.mrf.mxu0
    %v3403 = vadd.f32 %v3354, %v3402
    %v3404 = vpop.f32.mrf.mxu0
    %v3405 = vadd.f32 %v3356, %v3404
    %3406 = vmatmul.bf16.gmra.mxu0 %v2698
    %v3407 = vpop.f32.mrf.mxu0
    %v3408 = vadd.f32 %v3359, %v3407
    %v3409 = vpop.f32.mrf.mxu0
    %v3410 = vadd.f32 %v3361, %v3409
    %3411 = vmatmul.bf16.gmra.mxu0 %v2705
    %v3412 = vpop.f32.mrf.mxu0
    %v3413 = vadd.f32 %v3364, %v3412
    %v3414 = vpop.f32.mrf.mxu0
    %v3415 = vadd.f32 %v3366, %v3414
    %3416 = vdwg.mxu0
    %3417 = vmatpush.bf16.msra.mxu0 0
    %3418 = vmatpush.bf16.msra.mxu0 0
    %3419 = vmatpush.bf16.msra.mxu0 0
    %3420 = vmatpush.bf16.msra.mxu0 0
    %3421 = vmatpush.bf16.msra.mxu0 %v2261
    %3422 = vmatpush.bf16.msra.mxu0 %v2258
    %3423 = vmatpush.bf16.msra.mxu0 %v2255
    %3424 = vmatpush.bf16.msra.mxu0 %v2252
    %3425 = vmatmul.bf16.gmra.mxu0 %v2757
    %v3426 = vpop.f32.mrf.mxu0
    %v3427 = vadd.f32 %v3378, %v3426
    %v3428 = vpop.f32.mrf.mxu0
    %v3429 = vadd.f32 %v3380, %v3428
    %3430 = vmatmul.bf16.gmra.mxu0 %v2760
    %v3431 = vpop.f32.mrf.mxu0
    %v3432 = vadd.f32 %v3383, %v3431
    %v3433 = vpop.f32.mrf.mxu0
    %v3434 = vadd.f32 %v3385, %v3433
    %3435 = vmatmul.bf16.gmra.mxu0 %v2763
    %v3436 = vpop.f32.mrf.mxu0
    %v3437 = vadd.f32 %v3388, %v3436
    %v3438 = vpop.f32.mrf.mxu0
    %v3439 = vadd.f32 %v3390, %v3438
    %3440 = vmatmul.bf16.gmra.mxu0 %v2766
    %v3441 = vpop.f32.mrf.mxu0
    %v3442 = vadd.f32 %v3393, %v3441
    %v3443 = vpop.f32.mrf.mxu0
    %v3444 = vadd.f32 %v3395, %v3443
    %3445 = vmatmul.bf16.gmra.mxu0 %v2769
    %v3446 = vpop.f32.mrf.mxu0
    %v3447 = vadd.f32 %v3398, %v3446
    %v3448 = vpop.f32.mrf.mxu0
    %v3449 = vadd.f32 %v3400, %v3448
    %3450 = vmatmul.bf16.gmra.mxu0 %v2772
    %v3451 = vpop.f32.mrf.mxu0
    %v3452 = vadd.f32 %v3403, %v3451
    %v3453 = vpop.f32.mrf.mxu0
    %v3454 = vadd.f32 %v3405, %v3453
    %3455 = vmatmul.bf16.gmra.mxu0 %v2775
    %v3456 = vpop.f32.mrf.mxu0
    %v3457 = vadd.f32 %v3408, %v3456
    %v3458 = vpop.f32.mrf.mxu0
    %v3459 = vadd.f32 %v3410, %v3458
    %3460 = vmatmul.bf16.gmra.mxu0 %v2778
    %v3461 = vpop.f32.mrf.mxu0
    %v3462 = vadd.f32 %v3413, %v3461
    %v3463 = vpop.f32.mrf.mxu0
    %v3464 = vadd.f32 %v3415, %v3463
    %3465 = vdwg.mxu0
    %3466 = vmatpush.bf16.msra.mxu0 %v1561
    %3467 = vmatpush.bf16.msra.mxu0 %v1559
    %3468 = vmatpush.bf16.msra.mxu0 %v1557
    %3469 = vmatpush.bf16.msra.mxu0 %v1555
    %3470 = vmatpush.bf16.msra.mxu0 %v1553
    %3471 = vmatpush.bf16.msra.mxu0 %v1551
    %3472 = vmatpush.bf16.msra.mxu0 %v1549
    %3473 = vmatpush.bf16.msra.mxu0 %v1547
    %3474 = vmatmul.bf16.gmra.mxu0 %v2651
    %v3475 = vpop.f32.mrf.mxu0
    %v3476 = vadd.f32 %v2398, %v3475
    %v3477 = vpop.f32.mrf.mxu0
    %v3478 = vadd.f32 %v2403, %v3477
    %3479 = vmatmul.bf16.gmra.mxu0 %v2658
    %v3480 = vpop.f32.mrf.mxu0
    %v3481 = vadd.f32 %v2408, %v3480
    %v3482 = vpop.f32.mrf.mxu0
    %v3483 = vadd.f32 %v2413, %v3482
    %3484 = vmatmul.bf16.gmra.mxu0 %v2665
    %v3485 = vpop.f32.mrf.mxu0
    %v3486 = vadd.f32 %v2418, %v3485
    %v3487 = vpop.f32.mrf.mxu0
    %v3488 = vadd.f32 %v2423, %v3487
    %3489 = vmatmul.bf16.gmra.mxu0 %v2672
    %v3490 = vpop.f32.mrf.mxu0
    %v3491 = vadd.f32 %v2428, %v3490
    %v3492 = vpop.f32.mrf.mxu0
    %v3493 = vadd.f32 %v2433, %v3492
    %3494 = vmatmul.bf16.gmra.mxu0 %v2679
    %v3495 = vpop.f32.mrf.mxu0
    %v3496 = vadd.f32 %v2438, %v3495
    %v3497 = vpop.f32.mrf.mxu0
    %v3498 = vadd.f32 %v2443, %v3497
    %3499 = vmatmul.bf16.gmra.mxu0 %v2686
    %v3500 = vpop.f32.mrf.mxu0
    %v3501 = vadd.f32 %v2448, %v3500
    %v3502 = vpop.f32.mrf.mxu0
    %v3503 = vadd.f32 %v2453, %v3502
    %3504 = vmatmul.bf16.gmra.mxu0 %v2693
    %v3505 = vpop.f32.mrf.mxu0
    %v3506 = vadd.f32 %v2458, %v3505
    %v3507 = vpop.f32.mrf.mxu0
    %v3508 = vadd.f32 %v2463, %v3507
    %3509 = vmatmul.bf16.gmra.mxu0 %v2700
    %v3510 = vpop.f32.mrf.mxu0
    %v3511 = vadd.f32 %v2468, %v3510
    %v3512 = vpop.f32.mrf.mxu0
    %v3513 = vadd.f32 %v2473, %v3512
    %3514 = vdwg.mxu0
    %3515 = vmatpush.bf16.msra.mxu0 %v1833
    %3516 = vmatpush.bf16.msra.mxu0 %v1830
    %3517 = vmatpush.bf16.msra.mxu0 %v1827
    %3518 = vmatpush.bf16.msra.mxu0 %v1824
    %3519 = vmatpush.bf16.msra.mxu0 %v1821
    %3520 = vmatpush.bf16.msra.mxu0 %v1818
    %3521 = vmatpush.bf16.msra.mxu0 %v1815
    %3522 = vmatpush.bf16.msra.mxu0 %v1812
    %3523 = vmatmul.bf16.gmra.mxu0 %v2652
    %v3524 = vpop.f32.mrf.mxu0
    %v3525 = vadd.f32 %v3476, %v3524
    %v3526 = vpop.f32.mrf.mxu0
    %v3527 = vadd.f32 %v3478, %v3526
    %3528 = vmatmul.bf16.gmra.mxu0 %v2659
    %v3529 = vpop.f32.mrf.mxu0
    %v3530 = vadd.f32 %v3481, %v3529
    %v3531 = vpop.f32.mrf.mxu0
    %v3532 = vadd.f32 %v3483, %v3531
    %3533 = vmatmul.bf16.gmra.mxu0 %v2666
    %v3534 = vpop.f32.mrf.mxu0
    %v3535 = vadd.f32 %v3486, %v3534
    %v3536 = vpop.f32.mrf.mxu0
    %v3537 = vadd.f32 %v3488, %v3536
    %3538 = vmatmul.bf16.gmra.mxu0 %v2673
    %v3539 = vpop.f32.mrf.mxu0
    %v3540 = vadd.f32 %v3491, %v3539
    %v3541 = vpop.f32.mrf.mxu0
    %v3542 = vadd.f32 %v3493, %v3541
    %3543 = vmatmul.bf16.gmra.mxu0 %v2680
    %v3544 = vpop.f32.mrf.mxu0
    %v3545 = vadd.f32 %v3496, %v3544
    %v3546 = vpop.f32.mrf.mxu0
    %v3547 = vadd.f32 %v3498, %v3546
    %3548 = vmatmul.bf16.gmra.mxu0 %v2687
    %v3549 = vpop.f32.mrf.mxu0
    %v3550 = vadd.f32 %v3501, %v3549
    %v3551 = vpop.f32.mrf.mxu0
    %v3552 = vadd.f32 %v3503, %v3551
    %3553 = vmatmul.bf16.gmra.mxu0 %v2694
    %v3554 = vpop.f32.mrf.mxu0
    %v3555 = vadd.f32 %v3506, %v3554
    %v3556 = vpop.f32.mrf.mxu0
    %v3557 = vadd.f32 %v3508, %v3556
    %3558 = vmatmul.bf16.gmra.mxu0 %v2701
    %v3559 = vpop.f32.mrf.mxu0
    %v3560 = vadd.f32 %v3511, %v3559
    %v3561 = vpop.f32.mrf.mxu0
    %v3562 = vadd.f32 %v3513, %v3561
    %3563 = vdwg.mxu0
    %3564 = vmatpush.bf16.msra.mxu0 %v1857
    %3565 = vmatpush.bf16.msra.mxu0 %v1854
    %3566 = vmatpush.bf16.msra.mxu0 %v1851
    %3567 = vmatpush.bf16.msra.mxu0 %v1848
    %3568 = vmatpush.bf16.msra.mxu0 %v1845
    %3569 = vmatpush.bf16.msra.mxu0 %v1842
    %3570 = vmatpush.bf16.msra.mxu0 %v1839
    %3571 = vmatpush.bf16.msra.mxu0 %v1836
    %3572 = vmatmul.bf16.gmra.mxu0 %v2653
    %v3573 = vpop.f32.mrf.mxu0
    %v3574 = vadd.f32 %v3525, %v3573
    %v3575 = vpop.f32.mrf.mxu0
    %v3576 = vadd.f32 %v3527, %v3575
    %3577 = vmatmul.bf16.gmra.mxu0 %v2660
    %v3578 = vpop.f32.mrf.mxu0
    %v3579 = vadd.f32 %v3530, %v3578
    %v3580 = vpop.f32.mrf.mxu0
    %v3581 = vadd.f32 %v3532, %v3580
    %3582 = vmatmul.bf16.gmra.mxu0 %v2667
    %v3583 = vpop.f32.mrf.mxu0
    %v3584 = vadd.f32 %v3535, %v3583
    %v3585 = vpop.f32.mrf.mxu0
    %v3586 = vadd.f32 %v3537, %v3585
    %3587 = vmatmul.bf16.gmra.mxu0 %v2674
    %v3588 = vpop.f32.mrf.mxu0
    %v3589 = vadd.f32 %v3540, %v3588
    %v3590 = vpop.f32.mrf.mxu0
    %v3591 = vadd.f32 %v3542, %v3590
    %3592 = vmatmul.bf16.gmra.mxu0 %v2681
    %v3593 = vpop.f32.mrf.mxu0
    %v3594 = vadd.f32 %v3545, %v3593
    %v3595 = vpop.f32.mrf.mxu0
    %v3596 = vadd.f32 %v3547, %v3595
    %3597 = vmatmul.bf16.gmra.mxu0 %v2688
    %v3598 = vpop.f32.mrf.mxu0
    %v3599 = vadd.f32 %v3550, %v3598
    %v3600 = vpop.f32.mrf.mxu0
    %v3601 = vadd.f32 %v3552, %v3600
    %3602 = vmatmul.bf16.gmra.mxu0 %v2695
    %v3603 = vpop.f32.mrf.mxu0
    %v3604 = vadd.f32 %v3555, %v3603
    %v3605 = vpop.f32.mrf.mxu0
    %v3606 = vadd.f32 %v3557, %v3605
    %3607 = vmatmul.bf16.gmra.mxu0 %v2702
    %v3608 = vpop.f32.mrf.mxu0
    %v3609 = vadd.f32 %v3560, %v3608
    %v3610 = vpop.f32.mrf.mxu0
    %v3611 = vadd.f32 %v3562, %v3610
    %3612 = vdwg.mxu0
    %3613 = vmatpush.bf16.msra.mxu0 %v2057
    %3614 = vmatpush.bf16.msra.mxu0 %v2054
    %3615 = vmatpush.bf16.msra.mxu0 %v2051
    %3616 = vmatpush.bf16.msra.mxu0 %v2048
    %3617 = vmatpush.bf16.msra.mxu0 %v2045
    %3618 = vmatpush.bf16.msra.mxu0 %v2042
    %3619 = vmatpush.bf16.msra.mxu0 %v2039
    %3620 = vmatpush.bf16.msra.mxu0 %v2036
    %3621 = vmatmul.bf16.gmra.mxu0 %v2654
    %v3622 = vpop.f32.mrf.mxu0
    %v3623 = vadd.f32 %v3574, %v3622
    %v3624 = vpop.f32.mrf.mxu0
    %v3625 = vadd.f32 %v3576, %v3624
    %3626 = vmatmul.bf16.gmra.mxu0 %v2661
    %v3627 = vpop.f32.mrf.mxu0
    %v3628 = vadd.f32 %v3579, %v3627
    %v3629 = vpop.f32.mrf.mxu0
    %v3630 = vadd.f32 %v3581, %v3629
    %3631 = vmatmul.bf16.gmra.mxu0 %v2668
    %v3632 = vpop.f32.mrf.mxu0
    %v3633 = vadd.f32 %v3584, %v3632
    %v3634 = vpop.f32.mrf.mxu0
    %v3635 = vadd.f32 %v3586, %v3634
    %3636 = vmatmul.bf16.gmra.mxu0 %v2675
    %v3637 = vpop.f32.mrf.mxu0
    %v3638 = vadd.f32 %v3589, %v3637
    %v3639 = vpop.f32.mrf.mxu0
    %v3640 = vadd.f32 %v3591, %v3639
    %3641 = vmatmul.bf16.gmra.mxu0 %v2682
    %v3642 = vpop.f32.mrf.mxu0
    %v3643 = vadd.f32 %v3594, %v3642
    %v3644 = vpop.f32.mrf.mxu0
    %v3645 = vadd.f32 %v3596, %v3644
    %3646 = vmatmul.bf16.gmra.mxu0 %v2689
    %v3647 = vpop.f32.mrf.mxu0
    %v3648 = vadd.f32 %v3599, %v3647
    %v3649 = vpop.f32.mrf.mxu0
    %v3650 = vadd.f32 %v3601, %v3649
    %3651 = vmatmul.bf16.gmra.mxu0 %v2696
    %v3652 = vpop.f32.mrf.mxu0
    %v3653 = vadd.f32 %v3604, %v3652
    %v3654 = vpop.f32.mrf.mxu0
    %v3655 = vadd.f32 %v3606, %v3654
    %3656 = vmatmul.bf16.gmra.mxu0 %v2703
    %v3657 = vpop.f32.mrf.mxu0
    %v3658 = vadd.f32 %v3609, %v3657
    %v3659 = vpop.f32.mrf.mxu0
    %v3660 = vadd.f32 %v3611, %v3659
    %3661 = vdwg.mxu0
    %3662 = vmatpush.bf16.msra.mxu0 %v2081
    %3663 = vmatpush.bf16.msra.mxu0 %v2078
    %3664 = vmatpush.bf16.msra.mxu0 %v2075
    %3665 = vmatpush.bf16.msra.mxu0 %v2072
    %3666 = vmatpush.bf16.msra.mxu0 %v2069
    %3667 = vmatpush.bf16.msra.mxu0 %v2066
    %3668 = vmatpush.bf16.msra.mxu0 %v2063
    %3669 = vmatpush.bf16.msra.mxu0 %v2060
    %3670 = vmatmul.bf16.gmra.mxu0 %v2655
    %v3671 = vpop.f32.mrf.mxu0
    %v3672 = vadd.f32 %v3623, %v3671
    %v3673 = vpop.f32.mrf.mxu0
    %v3674 = vadd.f32 %v3625, %v3673
    %3675 = vmatmul.bf16.gmra.mxu0 %v2662
    %v3676 = vpop.f32.mrf.mxu0
    %v3677 = vadd.f32 %v3628, %v3676
    %v3678 = vpop.f32.mrf.mxu0
    %v3679 = vadd.f32 %v3630, %v3678
    %3680 = vmatmul.bf16.gmra.mxu0 %v2669
    %v3681 = vpop.f32.mrf.mxu0
    %v3682 = vadd.f32 %v3633, %v3681
    %v3683 = vpop.f32.mrf.mxu0
    %v3684 = vadd.f32 %v3635, %v3683
    %3685 = vmatmul.bf16.gmra.mxu0 %v2676
    %v3686 = vpop.f32.mrf.mxu0
    %v3687 = vadd.f32 %v3638, %v3686
    %v3688 = vpop.f32.mrf.mxu0
    %v3689 = vadd.f32 %v3640, %v3688
    %3690 = vmatmul.bf16.gmra.mxu0 %v2683
    %v3691 = vpop.f32.mrf.mxu0
    %v3692 = vadd.f32 %v3643, %v3691
    %v3693 = vpop.f32.mrf.mxu0
    %v3694 = vadd.f32 %v3645, %v3693
    %3695 = vmatmul.bf16.gmra.mxu0 %v2690
    %v3696 = vpop.f32.mrf.mxu0
    %v3697 = vadd.f32 %v3648, %v3696
    %v3698 = vpop.f32.mrf.mxu0
    %v3699 = vadd.f32 %v3650, %v3698
    %3700 = vmatmul.bf16.gmra.mxu0 %v2697
    %v3701 = vpop.f32.mrf.mxu0
    %v3702 = vadd.f32 %v3653, %v3701
    %v3703 = vpop.f32.mrf.mxu0
    %v3704 = vadd.f32 %v3655, %v3703
    %3705 = vmatmul.bf16.gmra.mxu0 %v2704
    %v3706 = vpop.f32.mrf.mxu0
    %v3707 = vadd.f32 %v3658, %v3706
    %v3708 = vpop.f32.mrf.mxu0
    %v3709 = vadd.f32 %v3660, %v3708
    %3710 = vdwg.mxu0
    %3711 = vmatpush.bf16.msra.mxu0 %v2250
    %3712 = vmatpush.bf16.msra.mxu0 %v2247
    %3713 = vmatpush.bf16.msra.mxu0 %v2244
    %3714 = vmatpush.bf16.msra.mxu0 %v2241
    %3715 = vmatpush.bf16.msra.mxu0 %v2238
    %3716 = vmatpush.bf16.msra.mxu0 %v2235
    %3717 = vmatpush.bf16.msra.mxu0 %v2232
    %3718 = vmatpush.bf16.msra.mxu0 %v2229
    %3719 = vmatmul.bf16.gmra.mxu0 %v2656
    %v3720 = vpop.f32.mrf.mxu0
    %v3721 = vadd.f32 %v3672, %v3720
    %v3722 = vpop.f32.mrf.mxu0
    %v3723 = vadd.f32 %v3674, %v3722
    %3724 = vmatmul.bf16.gmra.mxu0 %v2663
    %v3725 = vpop.f32.mrf.mxu0
    %v3726 = vadd.f32 %v3677, %v3725
    %v3727 = vpop.f32.mrf.mxu0
    %v3728 = vadd.f32 %v3679, %v3727
    %3729 = vmatmul.bf16.gmra.mxu0 %v2670
    %v3730 = vpop.f32.mrf.mxu0
    %v3731 = vadd.f32 %v3682, %v3730
    %v3732 = vpop.f32.mrf.mxu0
    %v3733 = vadd.f32 %v3684, %v3732
    %3734 = vmatmul.bf16.gmra.mxu0 %v2677
    %v3735 = vpop.f32.mrf.mxu0
    %v3736 = vadd.f32 %v3687, %v3735
    %v3737 = vpop.f32.mrf.mxu0
    %v3738 = vadd.f32 %v3689, %v3737
    %3739 = vmatmul.bf16.gmra.mxu0 %v2684
    %v3740 = vpop.f32.mrf.mxu0
    %v3741 = vadd.f32 %v3692, %v3740
    %v3742 = vpop.f32.mrf.mxu0
    %v3743 = vadd.f32 %v3694, %v3742
    %3744 = vmatmul.bf16.gmra.mxu0 %v2691
    %v3745 = vpop.f32.mrf.mxu0
    %v3746 = vadd.f32 %v3697, %v3745
    %v3747 = vpop.f32.mrf.mxu0
    %v3748 = vadd.f32 %v3699, %v3747
    %3749 = vmatmul.bf16.gmra.mxu0 %v2698
    %v3750 = vpop.f32.mrf.mxu0
    %v3751 = vadd.f32 %v3702, %v3750
    %v3752 = vpop.f32.mrf.mxu0
    %v3753 = vadd.f32 %v3704, %v3752
    %3754 = vmatmul.bf16.gmra.mxu0 %v2705
    %v3755 = vpop.f32.mrf.mxu0
    %v3756 = vadd.f32 %v3707, %v3755
    %v3757 = vpop.f32.mrf.mxu0
    %v3758 = vadd.f32 %v3709, %v3757
    %3759 = vdwg.mxu0
    %3760 = vmatpush.bf16.msra.mxu0 0
    %3761 = vmatpush.bf16.msra.mxu0 0
    %3762 = vmatpush.bf16.msra.mxu0 0
    %3763 = vmatpush.bf16.msra.mxu0 0
    %3764 = vmatpush.bf16.msra.mxu0 %v2262
    %3765 = vmatpush.bf16.msra.mxu0 %v2259
    %3766 = vmatpush.bf16.msra.mxu0 %v2256
    %3767 = vmatpush.bf16.msra.mxu0 %v2253
    %3768 = vmatmul.bf16.gmra.mxu0 %v2757
    %v3769 = vpop.f32.mrf.mxu0
    %v3770 = vadd.f32 %v3721, %v3769
    %v3771 = vpop.f32.mrf.mxu0
    %v3772 = vadd.f32 %v3723, %v3771
    %3773 = vmatmul.bf16.gmra.mxu0 %v2760
    %v3774 = vpop.f32.mrf.mxu0
    %v3775 = vadd.f32 %v3726, %v3774
    %v3776 = vpop.f32.mrf.mxu0
    %v3777 = vadd.f32 %v3728, %v3776
    %3778 = vmatmul.bf16.gmra.mxu0 %v2763
    %v3779 = vpop.f32.mrf.mxu0
    %v3780 = vadd.f32 %v3731, %v3779
    %v3781 = vpop.f32.mrf.mxu0
    %v3782 = vadd.f32 %v3733, %v3781
    %3783 = vmatmul.bf16.gmra.mxu0 %v2766
    %v3784 = vpop.f32.mrf.mxu0
    %v3785 = vadd.f32 %v3736, %v3784
    %v3786 = vpop.f32.mrf.mxu0
    %v3787 = vadd.f32 %v3738, %v3786
    %3788 = vmatmul.bf16.gmra.mxu0 %v2769
    %v3789 = vpop.f32.mrf.mxu0
    %v3790 = vadd.f32 %v3741, %v3789
    %v3791 = vpop.f32.mrf.mxu0
    %v3792 = vadd.f32 %v3743, %v3791
    %3793 = vmatmul.bf16.gmra.mxu0 %v2772
    %v3794 = vpop.f32.mrf.mxu0
    %v3795 = vadd.f32 %v3746, %v3794
    %v3796 = vpop.f32.mrf.mxu0
    %v3797 = vadd.f32 %v3748, %v3796
    %3798 = vmatmul.bf16.gmra.mxu0 %v2775
    %v3799 = vpop.f32.mrf.mxu0
    %v3800 = vadd.f32 %v3751, %v3799
    %v3801 = vpop.f32.mrf.mxu0
    %v3802 = vadd.f32 %v3753, %v3801
    %3803 = vmatmul.bf16.gmra.mxu0 %v2778
    %v3804 = vpop.f32.mrf.mxu0
    %v3805 = vadd.f32 %v3756, %v3804
    %v3806 = vpop.f32.mrf.mxu0
    %v3807 = vadd.f32 %v3758, %v3806
    %3808 = vdwg.mxu0
    %v3809 = vmax.f32 %v3084, 0.0
    %v3810 = vmax.f32 %v3427, 0.0
    %v3811 = vmax.f32 %v3770, 0.0
    %v3812 = vmax.f32 %v3086, 0.0
    %v3813 = vmax.f32 %v3429, 0.0
    %v3814 = vmax.f32 %v3772, 0.0
    %v3815 = vmax.f32 %v3089, 0.0
    %v3816 = vmax.f32 %v3432, 0.0
    %v3817 = vmax.f32 %v3775, 0.0
    %v3818 = vmax.f32 %v3091, 0.0
    %v3819 = vmax.f32 %v3434, 0.0
    %v3820 = vmax.f32 %v3777, 0.0
    %v3821 = vmax.f32 %v3094, 0.0
    %v3822 = vmax.f32 %v3437, 0.0
    %v3823 = vmax.f32 %v3780, 0.0
    %v3824 = vmax.f32 %v3096, 0.0
    %v3825 = vmax.f32 %v3439, 0.0
    %v3826 = vmax.f32 %v3782, 0.0
    %v3827 = vmax.f32 %v3099, 0.0
    %v3828 = vmax.f32 %v3442, 0.0
    %v3829 = vmax.f32 %v3785, 0.0
    %v3830 = vmax.f32 %v3101, 0.0
    %v3831 = vmax.f32 %v3444, 0.0
    %v3832 = vmax.f32 %v3787, 0.0
    %v3833 = vmax.f32 %v3104, 0.0
    %v3834 = vmax.f32 %v3447, 0.0
    %v3835 = vmax.f32 %v3790, 0.0
    %v3836 = vmax.f32 %v3106, 0.0
    %v3837 = vmax.f32 %v3449, 0.0
    %v3838 = vmax.f32 %v3792, 0.0
    %v3839 = vmax.f32 %v3109, 0.0
    %v3840 = vmax.f32 %v3452, 0.0
    %v3841 = vmax.f32 %v3795, 0.0
    %v3842 = vmax.f32 %v3111, 0.0
    %v3843 = vmax.f32 %v3454, 0.0
    %v3844 = vmax.f32 %v3797, 0.0
    %v3845 = vmax.f32 %v3114, 0.0
    %v3846 = vmax.f32 %v3457, 0.0
    %v3847 = vmax.f32 %v3800, 0.0
    %v3848 = vmax.f32 %v3116, 0.0
    %v3849 = vmax.f32 %v3459, 0.0
    %v3850 = vmax.f32 %v3802, 0.0
    %v3851 = vmax.f32 %v3119, 0.0
    %v3852 = vmax.f32 %v3462, 0.0
    %v3853 = vmax.f32 %v3805, 0.0
    %v3854 = vmax.f32 %v3121, 0.0
    %v3855 = vmax.f32 %v3464, 0.0
    %v3856 = vmax.f32 %v3807, 0.0
    %3857 = vset.pattern.permute.xlu0 0
    %3858 = vperm.xlu0 %3857, %v2379
    %v3859 = vpop.permute.xlu0 %3858
    %3860 = vset.pattern.permute.xlu0 0
    %3861 = vperm.xlu0 %3860, %v2380
    %v3862 = vpop.permute.xlu0 %3861
    %3863 = vset.pattern.permute.xlu0 0
    %3864 = vperm.xlu0 %3863, %v2381
    %v3865 = vpop.permute.xlu0 %3864
    %3866 = vset.pattern.permute.xlu0 0
    %3867 = vperm.xlu0 %3866, %v2382
    %v3868 = vpop.permute.xlu0 %3867
    %3869 = vset.pattern.permute.xlu0 0
    %3870 = vperm.xlu0 %3869, %v2383
    %v3871 = vpop.permute.xlu0 %3870
    %3872 = vset.pattern.permute.xlu0 0
    %3873 = vperm.xlu0 %3872, %v2384
    %v3874 = vpop.permute.xlu0 %3873
    %3875 = vset.pattern.permute.xlu0 0
    %3876 = vperm.xlu0 %3875, %v2385
    %v3877 = vpop.permute.xlu0 %3876
    %3878 = vset.pattern.permute.xlu0 0
    %3879 = vperm.xlu0 %3878, %v2386
    %v3880 = vpop.permute.xlu0 %3879
    %3881 = vset.pattern.permute.xlu0 0
    %3882 = vperm.xlu0 %3881, %v2387
    %v3883 = vpop.permute.xlu0 %3882
    %3884 = vset.pattern.permute.xlu0 0
    %3885 = vperm.xlu0 %3884, %v2388
    %v3886 = vpop.permute.xlu0 %3885
    %3887 = vset.pattern.permute.xlu0 0
    %3888 = vperm.xlu0 %3887, %v2389
    %v3889 = vpop.permute.xlu0 %3888
    %3890 = vset.pattern.permute.xlu0 0
    %3891 = vperm.xlu0 %3890, %v2390
    %v3892 = vpop.permute.xlu0 %3891
    %3893 = vset.pattern.permute.xlu0 0
    %3894 = vperm.xlu0 %3893, %v2391
    %v3895 = vpop.permute.xlu0 %3894
    %3896 = vset.pattern.permute.xlu0 0
    %3897 = vperm.xlu0 %3896, %v2392
    %v3898 = vpop.permute.xlu0 %3897
    %3899 = vset.pattern.permute.xlu0 0
    %3900 = vperm.xlu0 %3899, %v2393
    %v3901 = vpop.permute.xlu0 %3900
    %3902 = vset.pattern.permute.xlu0 0
    %3903 = vperm.xlu0 %3902, %v2394
    %v3904 = vpop.permute.xlu0 %3903
    %vm3905 = vcmp.lt.s32.totalorder %v871, %v3859
    %vm3906 = vcmp.lt.s32.totalorder %v872, %v3859
    %vm3907 = vcmp.lt.s32.totalorder %v873, %v3859
    %vm3908 = vcmp.lt.s32.totalorder %v871, %v3862
    %vm3909 = vcmp.lt.s32.totalorder %v872, %v3862
    %vm3910 = vcmp.lt.s32.totalorder %v873, %v3862
    %vm3911 = vcmp.lt.s32.totalorder %v871, %v3865
    %vm3912 = vcmp.lt.s32.totalorder %v872, %v3865
    %vm3913 = vcmp.lt.s32.totalorder %v873, %v3865
    %vm3914 = vcmp.lt.s32.totalorder %v871, %v3868
    %vm3915 = vcmp.lt.s32.totalorder %v872, %v3868
    %vm3916 = vcmp.lt.s32.totalorder %v873, %v3868
    %vm3917 = vcmp.lt.s32.totalorder %v871, %v3871
    %vm3918 = vcmp.lt.s32.totalorder %v872, %v3871
    %vm3919 = vcmp.lt.s32.totalorder %v873, %v3871
    %vm3920 = vcmp.lt.s32.totalorder %v871, %v3874
    %vm3921 = vcmp.lt.s32.totalorder %v872, %v3874
    %vm3922 = vcmp.lt.s32.totalorder %v873, %v3874
    %vm3923 = vcmp.lt.s32.totalorder %v871, %v3877
    %vm3924 = vcmp.lt.s32.totalorder %v872, %v3877
    %vm3925 = vcmp.lt.s32.totalorder %v873, %v3877
    %vm3926 = vcmp.lt.s32.totalorder %v871, %v3880
    %vm3927 = vcmp.lt.s32.totalorder %v872, %v3880
    %vm3928 = vcmp.lt.s32.totalorder %v873, %v3880
    %vm3929 = vcmp.lt.s32.totalorder %v871, %v3883
    %vm3930 = vcmp.lt.s32.totalorder %v872, %v3883
    %vm3931 = vcmp.lt.s32.totalorder %v873, %v3883
    %vm3932 = vcmp.lt.s32.totalorder %v871, %v3886
    %vm3933 = vcmp.lt.s32.totalorder %v872, %v3886
    %vm3934 = vcmp.lt.s32.totalorder %v873, %v3886
    %vm3935 = vcmp.lt.s32.totalorder %v871, %v3889
    %vm3936 = vcmp.lt.s32.totalorder %v872, %v3889
    %vm3937 = vcmp.lt.s32.totalorder %v873, %v3889
    %vm3938 = vcmp.lt.s32.totalorder %v871, %v3892
    %vm3939 = vcmp.lt.s32.totalorder %v872, %v3892
    %vm3940 = vcmp.lt.s32.totalorder %v873, %v3892
    %vm3941 = vcmp.lt.s32.totalorder %v871, %v3895
    %vm3942 = vcmp.lt.s32.totalorder %v872, %v3895
    %vm3943 = vcmp.lt.s32.totalorder %v873, %v3895
    %vm3944 = vcmp.lt.s32.totalorder %v871, %v3898
    %vm3945 = vcmp.lt.s32.totalorder %v872, %v3898
    %vm3946 = vcmp.lt.s32.totalorder %v873, %v3898
    %vm3947 = vcmp.lt.s32.totalorder %v871, %v3901
    %vm3948 = vcmp.lt.s32.totalorder %v872, %v3901
    %vm3949 = vcmp.lt.s32.totalorder %v873, %v3901
    %vm3950 = vcmp.lt.s32.totalorder %v871, %v3904
    %vm3951 = vcmp.lt.s32.totalorder %v872, %v3904
    %vm3952 = vcmp.lt.s32.totalorder %v873, %v3904
    %v3953 = vsel %vm3905, %v3809, 0.0
    %v3954 = vsel %vm3906, %v3810, 0.0
    %v3955 = vsel %vm3907, %v3811, 0.0
    %v3956 = vsel %vm3908, %v3812, 0.0
    %v3957 = vsel %vm3909, %v3813, 0.0
    %v3958 = vsel %vm3910, %v3814, 0.0
    %v3959 = vsel %vm3911, %v3815, 0.0
    %v3960 = vsel %vm3912, %v3816, 0.0
    %v3961 = vsel %vm3913, %v3817, 0.0
    %v3962 = vsel %vm3914, %v3818, 0.0
    %v3963 = vsel %vm3915, %v3819, 0.0
    %v3964 = vsel %vm3916, %v3820, 0.0
    %v3965 = vsel %vm3917, %v3821, 0.0
    %v3966 = vsel %vm3918, %v3822, 0.0
    %v3967 = vsel %vm3919, %v3823, 0.0
    %v3968 = vsel %vm3920, %v3824, 0.0
    %v3969 = vsel %vm3921, %v3825, 0.0
    %v3970 = vsel %vm3922, %v3826, 0.0
    %v3971 = vsel %vm3923, %v3827, 0.0
    %v3972 = vsel %vm3924, %v3828, 0.0
    %v3973 = vsel %vm3925, %v3829, 0.0
    %v3974 = vsel %vm3926, %v3830, 0.0
    %v3975 = vsel %vm3927, %v3831, 0.0
    %v3976 = vsel %vm3928, %v3832, 0.0
    %v3977 = vsel %vm3929, %v3833, 0.0
    %v3978 = vsel %vm3930, %v3834, 0.0
    %v3979 = vsel %vm3931, %v3835, 0.0
    %v3980 = vsel %vm3932, %v3836, 0.0
    %v3981 = vsel %vm3933, %v3837, 0.0
    %v3982 = vsel %vm3934, %v3838, 0.0
    %v3983 = vsel %vm3935, %v3839, 0.0
    %v3984 = vsel %vm3936, %v3840, 0.0
    %v3985 = vsel %vm3937, %v3841, 0.0
    %v3986 = vsel %vm3938, %v3842, 0.0
    %v3987 = vsel %vm3939, %v3843, 0.0
    %v3988 = vsel %vm3940, %v3844, 0.0
    %v3989 = vsel %vm3941, %v3845, 0.0
    %v3990 = vsel %vm3942, %v3846, 0.0
    %v3991 = vsel %vm3943, %v3847, 0.0
    %v3992 = vsel %vm3944, %v3848, 0.0
    %v3993 = vsel %vm3945, %v3849, 0.0
    %v3994 = vsel %vm3946, %v3850, 0.0
    %v3995 = vsel %vm3947, %v3851, 0.0
    %v3996 = vsel %vm3948, %v3852, 0.0
    %v3997 = vsel %vm3949, %v3853, 0.0
    %v3998 = vsel %vm3950, %v3854, 0.0
    %v3999 = vsel %vm3951, %v3855, 0.0
    %v4000 = vsel %vm3952, %v3856, 0.0
    %v4001 = vpack.c.bf16 %v3954, %v3953
    %v4002 = vpack.c.bf16 %v3955, %v3955
    %v4003 = vpack.c.bf16 %v3957, %v3956
    %v4004 = vpack.c.bf16 %v3958, %v3958
    %v4005 = vpack.c.bf16 %v3960, %v3959
    %v4006 = vpack.c.bf16 %v3961, %v3961
    %v4007 = vpack.c.bf16 %v3963, %v3962
    %v4008 = vpack.c.bf16 %v3964, %v3964
    %v4009 = vpack.c.bf16 %v3966, %v3965
    %v4010 = vpack.c.bf16 %v3967, %v3967
    %v4011 = vpack.c.bf16 %v3969, %v3968
    %v4012 = vpack.c.bf16 %v3970, %v3970
    %v4013 = vpack.c.bf16 %v3972, %v3971
    %v4014 = vpack.c.bf16 %v3973, %v3973
    %v4015 = vpack.c.bf16 %v3975, %v3974
    %v4016 = vpack.c.bf16 %v3976, %v3976
    %v4017 = vpack.c.bf16 %v3978, %v3977
    %v4018 = vpack.c.bf16 %v3979, %v3979
    %v4019 = vpack.c.bf16 %v3981, %v3980
    %v4020 = vpack.c.bf16 %v3982, %v3982
    %v4021 = vpack.c.bf16 %v3984, %v3983
    %v4022 = vpack.c.bf16 %v3985, %v3985
    %v4023 = vpack.c.bf16 %v3987, %v3986
    %v4024 = vpack.c.bf16 %v3988, %v3988
    %v4025 = vpack.c.bf16 %v3990, %v3989
    %v4026 = vpack.c.bf16 %v3991, %v3991
    %v4027 = vpack.c.bf16 %v3993, %v3992
    %v4028 = vpack.c.bf16 %v3994, %v3994
    %v4029 = vpack.c.bf16 %v3996, %v3995
    %v4030 = vpack.c.bf16 %v3997, %v3997
    %v4031 = vpack.c.bf16 %v3999, %v3998
    %v4032 = vpack.c.bf16 %v4000, %v4000
    %v4065 = vunpack.c.l.b16 %v4001
    %v4066 = vunpack.c.h.b16 %v4001
    %v4067 = vunpack.c.l.b16 %v4002
    %v4068 = vunpack.c.l.b16 %v4003
    %v4069 = vunpack.c.h.b16 %v4003
    %v4070 = vunpack.c.l.b16 %v4004
    %v4071 = vunpack.c.l.b16 %v4005
    %v4072 = vunpack.c.h.b16 %v4005
    %v4073 = vunpack.c.l.b16 %v4006
    %v4074 = vunpack.c.l.b16 %v4007
    %v4075 = vunpack.c.h.b16 %v4007
    %v4076 = vunpack.c.l.b16 %v4008
    %v4077 = vunpack.c.l.b16 %v4009
    %v4078 = vunpack.c.h.b16 %v4009
    %v4079 = vunpack.c.l.b16 %v4010
    %v4080 = vunpack.c.l.b16 %v4011
    %v4081 = vunpack.c.h.b16 %v4011
    %v4082 = vunpack.c.l.b16 %v4012
    %v4083 = vunpack.c.l.b16 %v4013
    %v4084 = vunpack.c.h.b16 %v4013
    %v4085 = vunpack.c.l.b16 %v4014
    %v4086 = vunpack.c.l.b16 %v4015
    %v4087 = vunpack.c.h.b16 %v4015
    %v4088 = vunpack.c.l.b16 %v4016
    %v4089 = vunpack.c.l.b16 %v4017
    %v4090 = vunpack.c.h.b16 %v4017
    %v4091 = vunpack.c.l.b16 %v4018
    %v4092 = vunpack.c.l.b16 %v4019
    %v4093 = vunpack.c.h.b16 %v4019
    %v4094 = vunpack.c.l.b16 %v4020
    %v4095 = vunpack.c.l.b16 %v4021
    %v4096 = vunpack.c.h.b16 %v4021
    %v4097 = vunpack.c.l.b16 %v4022
    %v4098 = vunpack.c.l.b16 %v4023
    %v4099 = vunpack.c.h.b16 %v4023
    %v4100 = vunpack.c.l.b16 %v4024
    %v4101 = vunpack.c.l.b16 %v4025
    %v4102 = vunpack.c.h.b16 %v4025
    %v4103 = vunpack.c.l.b16 %v4026
    %v4104 = vunpack.c.l.b16 %v4027
    %v4105 = vunpack.c.h.b16 %v4027
    %v4106 = vunpack.c.l.b16 %v4028
    %v4107 = vunpack.c.l.b16 %v4029
    %v4108 = vunpack.c.h.b16 %v4029
    %v4109 = vunpack.c.l.b16 %v4030
    %v4110 = vunpack.c.l.b16 %v4031
    %v4111 = vunpack.c.h.b16 %v4031
    %v4112 = vunpack.c.l.b16 %v4032
    %v4113 = vpack.c.b16 %v4068, %v4065
    %v4114 = vpack.c.b16 %v4069, %v4066
    %v4115 = vpack.c.b16 %v4070, %v4067
    %v4116 = vpack.c.b16 %v4074, %v4071
    %v4117 = vpack.c.b16 %v4075, %v4072
    %v4118 = vpack.c.b16 %v4076, %v4073
    %v4119 = vpack.c.b16 %v4080, %v4077
    %v4120 = vpack.c.b16 %v4081, %v4078
    %v4121 = vpack.c.b16 %v4082, %v4079
    %v4122 = vpack.c.b16 %v4086, %v4083
    %v4123 = vpack.c.b16 %v4087, %v4084
    %v4124 = vpack.c.b16 %v4088, %v4085
    %v4125 = vpack.c.b16 %v4092, %v4089
    %v4126 = vpack.c.b16 %v4093, %v4090
    %v4127 = vpack.c.b16 %v4094, %v4091
    %v4128 = vpack.c.b16 %v4098, %v4095
    %v4129 = vpack.c.b16 %v4099, %v4096
    %v4130 = vpack.c.b16 %v4100, %v4097
    %v4131 = vpack.c.b16 %v4104, %v4101
    %v4132 = vpack.c.b16 %v4105, %v4102
    %v4133 = vpack.c.b16 %v4106, %v4103
    %v4134 = vpack.c.b16 %v4110, %v4107
    %v4135 = vpack.c.b16 %v4111, %v4108
    %v4136 = vpack.c.b16 %v4112, %v4109
    %4137 = vrot.lane.b32.xlu0 %v4113, 1
    %v4138 = vpop.permute.xlu0 %4137
    %4139 = vrot.lane.b32.xlu0 %v4114, 1
    %v4140 = vpop.permute.xlu0 %4139
    %4141 = vrot.lane.b32.xlu0 %v4115, 1
    %v4142 = vpop.permute.xlu0 %4141
    %4143 = vrot.lane.b32.xlu0 %v4116, 1
    %v4144 = vpop.permute.xlu0 %4143
    %4145 = vrot.lane.b32.xlu0 %v4117, 1
    %v4146 = vpop.permute.xlu0 %4145
    %4147 = vrot.lane.b32.xlu0 %v4118, 1
    %v4148 = vpop.permute.xlu0 %4147
    %4149 = vrot.lane.b32.xlu0 %v4119, 1
    %v4150 = vpop.permute.xlu0 %4149
    %4151 = vrot.lane.b32.xlu0 %v4120, 1
    %v4152 = vpop.permute.xlu0 %4151
    %4153 = vrot.lane.b32.xlu0 %v4121, 1
    %v4154 = vpop.permute.xlu0 %4153
    %4155 = vrot.lane.b32.xlu0 %v4122, 1
    %v4156 = vpop.permute.xlu0 %4155
    %4157 = vrot.lane.b32.xlu0 %v4123, 1
    %v4158 = vpop.permute.xlu0 %4157
    %4159 = vrot.lane.b32.xlu0 %v4124, 1
    %v4160 = vpop.permute.xlu0 %4159
    %4161 = vrot.lane.b32.xlu0 %v4125, 1
    %v4162 = vpop.permute.xlu0 %4161
    %4163 = vrot.lane.b32.xlu0 %v4126, 1
    %v4164 = vpop.permute.xlu0 %4163
    %4165 = vrot.lane.b32.xlu0 %v4127, 1
    %v4166 = vpop.permute.xlu0 %4165
    %4167 = vrot.lane.b32.xlu0 %v4128, 1
    %v4168 = vpop.permute.xlu0 %4167
    %4169 = vrot.lane.b32.xlu0 %v4129, 1
    %v4170 = vpop.permute.xlu0 %4169
    %4171 = vrot.lane.b32.xlu0 %v4130, 1
    %v4172 = vpop.permute.xlu0 %4171
    %4173 = vrot.lane.b32.xlu0 %v4131, 1
    %v4174 = vpop.permute.xlu0 %4173
    %4175 = vrot.lane.b32.xlu0 %v4132, 1
    %v4176 = vpop.permute.xlu0 %4175
    %4177 = vrot.lane.b32.xlu0 %v4133, 1
    %v4178 = vpop.permute.xlu0 %4177
    %4179 = vrot.lane.b32.xlu0 %v4134, 1
    %v4180 = vpop.permute.xlu0 %4179
    %4181 = vrot.lane.b32.xlu0 %v4135, 1
    %v4182 = vpop.permute.xlu0 %4181
    %4183 = vrot.lane.b32.xlu0 %v4136, 1
    %v4184 = vpop.permute.xlu0 %4183
    %v4185 = vsel %vm54, %v4138, %v4140
    %v4186 = vsel %vm54, %v4140, %v4142
    %v4187 = vsel %vm54, %v4144, %v4146
    %v4188 = vsel %vm54, %v4146, %v4148
    %v4189 = vsel %vm54, %v4150, %v4152
    %v4190 = vsel %vm54, %v4152, %v4154
    %v4191 = vsel %vm54, %v4156, %v4158
    %v4192 = vsel %vm54, %v4158, %v4160
    %v4193 = vsel %vm54, %v4162, %v4164
    %v4194 = vsel %vm54, %v4164, %v4166
    %v4195 = vsel %vm54, %v4168, %v4170
    %v4196 = vsel %vm54, %v4170, %v4172
    %v4197 = vsel %vm54, %v4174, %v4176
    %v4198 = vsel %vm54, %v4176, %v4178
    %v4199 = vsel %vm54, %v4180, %v4182
    %v4200 = vsel %vm54, %v4182, %v4184
    %v4218 = vsel %vm57, 0, %v4138
    %v4221 = vsel %vm57, 0, %v4144
    %v4224 = vsel %vm57, 0, %v4150
    %v4227 = vsel %vm57, 0, %v4156
    %v4230 = vsel %vm57, 0, %v4162
    %v4233 = vsel %vm57, 0, %v4168
    %v4236 = vsel %vm57, 0, %v4174
    %v4239 = vsel %vm57, 0, %v4180
    %v4242 = vsel %vm57, %v4142, 0
    %v4244 = vsel %vm57, %v4148, 0
    %v4246 = vsel %vm57, %v4154, 0
    %v4248 = vsel %vm57, %v4160, 0
    %v4250 = vsel %vm57, %v4166, 0
    %v4252 = vsel %vm57, %v4172, 0
    %v4254 = vsel %vm57, %v4178, 0
    %v4256 = vsel %vm57, %v4184, 0
    %4273 = vrot.lane.b32.xlu0 %v4218, 127
    %v4274 = vpop.permute.xlu0 %4273
    %4275 = vrot.lane.b32.xlu0 %v4185, 127
    %v4276 = vpop.permute.xlu0 %4275
    %4277 = vrot.lane.b32.xlu0 %v4186, 127
    %v4278 = vpop.permute.xlu0 %4277
    %4279 = vrot.lane.b32.xlu0 %v4242, 127
    %v4280 = vpop.permute.xlu0 %4279
    %4281 = vrot.lane.b32.xlu0 %v4221, 127
    %v4282 = vpop.permute.xlu0 %4281
    %4283 = vrot.lane.b32.xlu0 %v4187, 127
    %v4284 = vpop.permute.xlu0 %4283
    %4285 = vrot.lane.b32.xlu0 %v4188, 127
    %v4286 = vpop.permute.xlu0 %4285
    %4287 = vrot.lane.b32.xlu0 %v4244, 127
    %v4288 = vpop.permute.xlu0 %4287
    %4289 = vrot.lane.b32.xlu0 %v4224, 127
    %v4290 = vpop.permute.xlu0 %4289
    %4291 = vrot.lane.b32.xlu0 %v4189, 127
    %v4292 = vpop.permute.xlu0 %4291
    %4293 = vrot.lane.b32.xlu0 %v4190, 127
    %v4294 = vpop.permute.xlu0 %4293
    %4295 = vrot.lane.b32.xlu0 %v4246, 127
    %v4296 = vpop.permute.xlu0 %4295
    %4297 = vrot.lane.b32.xlu0 %v4227, 127
    %v4298 = vpop.permute.xlu0 %4297
    %4299 = vrot.lane.b32.xlu0 %v4191, 127
    %v4300 = vpop.permute.xlu0 %4299
    %4301 = vrot.lane.b32.xlu0 %v4192, 127
    %v4302 = vpop.permute.xlu0 %4301
    %4303 = vrot.lane.b32.xlu0 %v4248, 127
    %v4304 = vpop.permute.xlu0 %4303
    %4305 = vrot.lane.b32.xlu0 %v4230, 127
    %v4306 = vpop.permute.xlu0 %4305
    %4307 = vrot.lane.b32.xlu0 %v4193, 127
    %v4308 = vpop.permute.xlu0 %4307
    %4309 = vrot.lane.b32.xlu0 %v4194, 127
    %v4310 = vpop.permute.xlu0 %4309
    %4311 = vrot.lane.b32.xlu0 %v4250, 127
    %v4312 = vpop.permute.xlu0 %4311
    %4313 = vrot.lane.b32.xlu0 %v4233, 127
    %v4314 = vpop.permute.xlu0 %4313
    %4315 = vrot.lane.b32.xlu0 %v4195, 127
    %v4316 = vpop.permute.xlu0 %4315
    %4317 = vrot.lane.b32.xlu0 %v4196, 127
    %v4318 = vpop.permute.xlu0 %4317
    %4319 = vrot.lane.b32.xlu0 %v4252, 127
    %v4320 = vpop.permute.xlu0 %4319
    %4321 = vrot.lane.b32.xlu0 %v4236, 127
    %v4322 = vpop.permute.xlu0 %4321
    %4323 = vrot.lane.b32.xlu0 %v4197, 127
    %v4324 = vpop.permute.xlu0 %4323
    %4325 = vrot.lane.b32.xlu0 %v4198, 127
    %v4326 = vpop.permute.xlu0 %4325
    %4327 = vrot.lane.b32.xlu0 %v4254, 127
    %v4328 = vpop.permute.xlu0 %4327
    %4329 = vrot.lane.b32.xlu0 %v4239, 127
    %v4330 = vpop.permute.xlu0 %4329
    %4331 = vrot.lane.b32.xlu0 %v4199, 127
    %v4332 = vpop.permute.xlu0 %4331
    %4333 = vrot.lane.b32.xlu0 %v4200, 127
    %v4334 = vpop.permute.xlu0 %4333
    %4335 = vrot.lane.b32.xlu0 %v4256, 127
    %v4336 = vpop.permute.xlu0 %4335
    %v4337 = vsel %vm80, %v4274, %v4276
    %v4338 = vsel %vm80, %v4276, %v4278
    %v4339 = vsel %vm80, %v4278, %v4280
    %v4340 = vsel %vm80, %v4282, %v4284
    %v4341 = vsel %vm80, %v4284, %v4286
    %v4342 = vsel %vm80, %v4286, %v4288
    %v4343 = vsel %vm80, %v4290, %v4292
    %v4344 = vsel %vm80, %v4292, %v4294
    %v4345 = vsel %vm80, %v4294, %v4296
    %v4346 = vsel %vm80, %v4298, %v4300
    %v4347 = vsel %vm80, %v4300, %v4302
    %v4348 = vsel %vm80, %v4302, %v4304
    %v4349 = vsel %vm80, %v4306, %v4308
    %v4350 = vsel %vm80, %v4308, %v4310
    %v4351 = vsel %vm80, %v4310, %v4312
    %v4352 = vsel %vm80, %v4314, %v4316
    %v4353 = vsel %vm80, %v4316, %v4318
    %v4354 = vsel %vm80, %v4318, %v4320
    %v4355 = vsel %vm80, %v4322, %v4324
    %v4356 = vsel %vm80, %v4324, %v4326
    %v4357 = vsel %vm80, %v4326, %v4328
    %v4358 = vsel %vm80, %v4330, %v4332
    %v4359 = vsel %vm80, %v4332, %v4334
    %v4360 = vsel %vm80, %v4334, %v4336
    %4385 = vrot.lane.b32.xlu0 %v4218, 126
    %v4386 = vpop.permute.xlu0 %4385
    %4387 = vrot.lane.b32.xlu0 %v4185, 126
    %v4388 = vpop.permute.xlu0 %4387
    %4389 = vrot.lane.b32.xlu0 %v4186, 126
    %v4390 = vpop.permute.xlu0 %4389
    %4391 = vrot.lane.b32.xlu0 %v4242, 126
    %v4392 = vpop.permute.xlu0 %4391
    %4393 = vrot.lane.b32.xlu0 %v4221, 126
    %v4394 = vpop.permute.xlu0 %4393
    %4395 = vrot.lane.b32.xlu0 %v4187, 126
    %v4396 = vpop.permute.xlu0 %4395
    %4397 = vrot.lane.b32.xlu0 %v4188, 126
    %v4398 = vpop.permute.xlu0 %4397
    %4399 = vrot.lane.b32.xlu0 %v4244, 126
    %v4400 = vpop.permute.xlu0 %4399
    %4401 = vrot.lane.b32.xlu0 %v4224, 126
    %v4402 = vpop.permute.xlu0 %4401
    %4403 = vrot.lane.b32.xlu0 %v4189, 126
    %v4404 = vpop.permute.xlu0 %4403
    %4405 = vrot.lane.b32.xlu0 %v4190, 126
    %v4406 = vpop.permute.xlu0 %4405
    %4407 = vrot.lane.b32.xlu0 %v4246, 126
    %v4408 = vpop.permute.xlu0 %4407
    %4409 = vrot.lane.b32.xlu0 %v4227, 126
    %v4410 = vpop.permute.xlu0 %4409
    %4411 = vrot.lane.b32.xlu0 %v4191, 126
    %v4412 = vpop.permute.xlu0 %4411
    %4413 = vrot.lane.b32.xlu0 %v4192, 126
    %v4414 = vpop.permute.xlu0 %4413
    %4415 = vrot.lane.b32.xlu0 %v4248, 126
    %v4416 = vpop.permute.xlu0 %4415
    %4417 = vrot.lane.b32.xlu0 %v4230, 126
    %v4418 = vpop.permute.xlu0 %4417
    %4419 = vrot.lane.b32.xlu0 %v4193, 126
    %v4420 = vpop.permute.xlu0 %4419
    %4421 = vrot.lane.b32.xlu0 %v4194, 126
    %v4422 = vpop.permute.xlu0 %4421
    %4423 = vrot.lane.b32.xlu0 %v4250, 126
    %v4424 = vpop.permute.xlu0 %4423
    %4425 = vrot.lane.b32.xlu0 %v4233, 126
    %v4426 = vpop.permute.xlu0 %4425
    %4427 = vrot.lane.b32.xlu0 %v4195, 126
    %v4428 = vpop.permute.xlu0 %4427
    %4429 = vrot.lane.b32.xlu0 %v4196, 126
    %v4430 = vpop.permute.xlu0 %4429
    %4431 = vrot.lane.b32.xlu0 %v4252, 126
    %v4432 = vpop.permute.xlu0 %4431
    %4433 = vrot.lane.b32.xlu0 %v4236, 126
    %v4434 = vpop.permute.xlu0 %4433
    %4435 = vrot.lane.b32.xlu0 %v4197, 126
    %v4436 = vpop.permute.xlu0 %4435
    %4437 = vrot.lane.b32.xlu0 %v4198, 126
    %v4438 = vpop.permute.xlu0 %4437
    %4439 = vrot.lane.b32.xlu0 %v4254, 126
    %v4440 = vpop.permute.xlu0 %4439
    %4441 = vrot.lane.b32.xlu0 %v4239, 126
    %v4442 = vpop.permute.xlu0 %4441
    %4443 = vrot.lane.b32.xlu0 %v4199, 126
    %v4444 = vpop.permute.xlu0 %4443
    %4445 = vrot.lane.b32.xlu0 %v4200, 126
    %v4446 = vpop.permute.xlu0 %4445
    %4447 = vrot.lane.b32.xlu0 %v4256, 126
    %v4448 = vpop.permute.xlu0 %4447
    %v4449 = vsel %vm93, %v4386, %v4388
    %v4450 = vsel %vm93, %v4388, %v4390
    %v4451 = vsel %vm93, %v4390, %v4392
    %v4452 = vsel %vm93, %v4394, %v4396
    %v4453 = vsel %vm93, %v4396, %v4398
    %v4454 = vsel %vm93, %v4398, %v4400
    %v4455 = vsel %vm93, %v4402, %v4404
    %v4456 = vsel %vm93, %v4404, %v4406
    %v4457 = vsel %vm93, %v4406, %v4408
    %v4458 = vsel %vm93, %v4410, %v4412
    %v4459 = vsel %vm93, %v4412, %v4414
    %v4460 = vsel %vm93, %v4414, %v4416
    %v4461 = vsel %vm93, %v4418, %v4420
    %v4462 = vsel %vm93, %v4420, %v4422
    %v4463 = vsel %vm93, %v4422, %v4424
    %v4464 = vsel %vm93, %v4426, %v4428
    %v4465 = vsel %vm93, %v4428, %v4430
    %v4466 = vsel %vm93, %v4430, %v4432
    %v4467 = vsel %vm93, %v4434, %v4436
    %v4468 = vsel %vm93, %v4436, %v4438
    %v4469 = vsel %vm93, %v4438, %v4440
    %v4470 = vsel %vm93, %v4442, %v4444
    %v4471 = vsel %vm93, %v4444, %v4446
    %v4472 = vsel %vm93, %v4446, %v4448
    %4497 = vrot.lane.b32.xlu0 %v4218, 125
    %v4498 = vpop.permute.xlu0 %4497
    %4499 = vrot.lane.b32.xlu0 %v4185, 125
    %v4500 = vpop.permute.xlu0 %4499
    %4501 = vrot.lane.b32.xlu0 %v4186, 125
    %v4502 = vpop.permute.xlu0 %4501
    %4503 = vrot.lane.b32.xlu0 %v4242, 125
    %v4504 = vpop.permute.xlu0 %4503
    %4505 = vrot.lane.b32.xlu0 %v4221, 125
    %v4506 = vpop.permute.xlu0 %4505
    %4507 = vrot.lane.b32.xlu0 %v4187, 125
    %v4508 = vpop.permute.xlu0 %4507
    %4509 = vrot.lane.b32.xlu0 %v4188, 125
    %v4510 = vpop.permute.xlu0 %4509
    %4511 = vrot.lane.b32.xlu0 %v4244, 125
    %v4512 = vpop.permute.xlu0 %4511
    %4513 = vrot.lane.b32.xlu0 %v4224, 125
    %v4514 = vpop.permute.xlu0 %4513
    %4515 = vrot.lane.b32.xlu0 %v4189, 125
    %v4516 = vpop.permute.xlu0 %4515
    %4517 = vrot.lane.b32.xlu0 %v4190, 125
    %v4518 = vpop.permute.xlu0 %4517
    %4519 = vrot.lane.b32.xlu0 %v4246, 125
    %v4520 = vpop.permute.xlu0 %4519
    %4521 = vrot.lane.b32.xlu0 %v4227, 125
    %v4522 = vpop.permute.xlu0 %4521
    %4523 = vrot.lane.b32.xlu0 %v4191, 125
    %v4524 = vpop.permute.xlu0 %4523
    %4525 = vrot.lane.b32.xlu0 %v4192, 125
    %v4526 = vpop.permute.xlu0 %4525
    %4527 = vrot.lane.b32.xlu0 %v4248, 125
    %v4528 = vpop.permute.xlu0 %4527
    %4529 = vrot.lane.b32.xlu0 %v4230, 125
    %v4530 = vpop.permute.xlu0 %4529
    %4531 = vrot.lane.b32.xlu0 %v4193, 125
    %v4532 = vpop.permute.xlu0 %4531
    %4533 = vrot.lane.b32.xlu0 %v4194, 125
    %v4534 = vpop.permute.xlu0 %4533
    %4535 = vrot.lane.b32.xlu0 %v4250, 125
    %v4536 = vpop.permute.xlu0 %4535
    %4537 = vrot.lane.b32.xlu0 %v4233, 125
    %v4538 = vpop.permute.xlu0 %4537
    %4539 = vrot.lane.b32.xlu0 %v4195, 125
    %v4540 = vpop.permute.xlu0 %4539
    %4541 = vrot.lane.b32.xlu0 %v4196, 125
    %v4542 = vpop.permute.xlu0 %4541
    %4543 = vrot.lane.b32.xlu0 %v4252, 125
    %v4544 = vpop.permute.xlu0 %4543
    %4545 = vrot.lane.b32.xlu0 %v4236, 125
    %v4546 = vpop.permute.xlu0 %4545
    %4547 = vrot.lane.b32.xlu0 %v4197, 125
    %v4548 = vpop.permute.xlu0 %4547
    %4549 = vrot.lane.b32.xlu0 %v4198, 125
    %v4550 = vpop.permute.xlu0 %4549
    %4551 = vrot.lane.b32.xlu0 %v4254, 125
    %v4552 = vpop.permute.xlu0 %4551
    %4553 = vrot.lane.b32.xlu0 %v4239, 125
    %v4554 = vpop.permute.xlu0 %4553
    %4555 = vrot.lane.b32.xlu0 %v4199, 125
    %v4556 = vpop.permute.xlu0 %4555
    %4557 = vrot.lane.b32.xlu0 %v4200, 125
    %v4558 = vpop.permute.xlu0 %4557
    %4559 = vrot.lane.b32.xlu0 %v4256, 125
    %v4560 = vpop.permute.xlu0 %4559
    %v4561 = vsel %vm2226, %v4498, %v4500
    %v4562 = vsel %vm2226, %v4500, %v4502
    %v4563 = vsel %vm2226, %v4502, %v4504
    %v4564 = vsel %vm2226, %v4506, %v4508
    %v4565 = vsel %vm2226, %v4508, %v4510
    %v4566 = vsel %vm2226, %v4510, %v4512
    %v4567 = vsel %vm2226, %v4514, %v4516
    %v4568 = vsel %vm2226, %v4516, %v4518
    %v4569 = vsel %vm2226, %v4518, %v4520
    %v4570 = vsel %vm2226, %v4522, %v4524
    %v4571 = vsel %vm2226, %v4524, %v4526
    %v4572 = vsel %vm2226, %v4526, %v4528
    %v4573 = vsel %vm2226, %v4530, %v4532
    %v4574 = vsel %vm2226, %v4532, %v4534
    %v4575 = vsel %vm2226, %v4534, %v4536
    %v4576 = vsel %vm2226, %v4538, %v4540
    %v4577 = vsel %vm2226, %v4540, %v4542
    %v4578 = vsel %vm2226, %v4542, %v4544
    %v4579 = vsel %vm2226, %v4546, %v4548
    %v4580 = vsel %vm2226, %v4548, %v4550
    %v4581 = vsel %vm2226, %v4550, %v4552
    %v4582 = vsel %vm2226, %v4554, %v4556
    %v4583 = vsel %vm2226, %v4556, %v4558
    %v4584 = vsel %vm2226, %v4558, %v4560
    %4609 = vrot.lane.b32.xlu0 %v4218, 124
    %v4610 = vpop.permute.xlu0 %4609
    %4611 = vrot.lane.b32.xlu0 %v4185, 124
    %v4612 = vpop.permute.xlu0 %4611
    %4613 = vrot.lane.b32.xlu0 %v4186, 124
    %v4614 = vpop.permute.xlu0 %4613
    %4615 = vrot.lane.b32.xlu0 %v4242, 124
    %v4616 = vpop.permute.xlu0 %4615
    %4617 = vrot.lane.b32.xlu0 %v4221, 124
    %v4618 = vpop.permute.xlu0 %4617
    %4619 = vrot.lane.b32.xlu0 %v4187, 124
    %v4620 = vpop.permute.xlu0 %4619
    %4621 = vrot.lane.b32.xlu0 %v4188, 124
    %v4622 = vpop.permute.xlu0 %4621
    %4623 = vrot.lane.b32.xlu0 %v4244, 124
    %v4624 = vpop.permute.xlu0 %4623
    %4625 = vrot.lane.b32.xlu0 %v4224, 124
    %v4626 = vpop.permute.xlu0 %4625
    %4627 = vrot.lane.b32.xlu0 %v4189, 124
    %v4628 = vpop.permute.xlu0 %4627
    %4629 = vrot.lane.b32.xlu0 %v4190, 124
    %v4630 = vpop.permute.xlu0 %4629
    %4631 = vrot.lane.b32.xlu0 %v4246, 124
    %v4632 = vpop.permute.xlu0 %4631
    %4633 = vrot.lane.b32.xlu0 %v4227, 124
    %v4634 = vpop.permute.xlu0 %4633
    %4635 = vrot.lane.b32.xlu0 %v4191, 124
    %v4636 = vpop.permute.xlu0 %4635
    %4637 = vrot.lane.b32.xlu0 %v4192, 124
    %v4638 = vpop.permute.xlu0 %4637
    %4639 = vrot.lane.b32.xlu0 %v4248, 124
    %v4640 = vpop.permute.xlu0 %4639
    %4641 = vrot.lane.b32.xlu0 %v4230, 124
    %v4642 = vpop.permute.xlu0 %4641
    %4643 = vrot.lane.b32.xlu0 %v4193, 124
    %v4644 = vpop.permute.xlu0 %4643
    %4645 = vrot.lane.b32.xlu0 %v4194, 124
    %v4646 = vpop.permute.xlu0 %4645
    %4647 = vrot.lane.b32.xlu0 %v4250, 124
    %v4648 = vpop.permute.xlu0 %4647
    %4649 = vrot.lane.b32.xlu0 %v4233, 124
    %v4650 = vpop.permute.xlu0 %4649
    %4651 = vrot.lane.b32.xlu0 %v4195, 124
    %v4652 = vpop.permute.xlu0 %4651
    %4653 = vrot.lane.b32.xlu0 %v4196, 124
    %v4654 = vpop.permute.xlu0 %4653
    %4655 = vrot.lane.b32.xlu0 %v4252, 124
    %v4656 = vpop.permute.xlu0 %4655
    %4657 = vrot.lane.b32.xlu0 %v4236, 124
    %v4658 = vpop.permute.xlu0 %4657
    %4659 = vrot.lane.b32.xlu0 %v4197, 124
    %v4660 = vpop.permute.xlu0 %4659
    %4661 = vrot.lane.b32.xlu0 %v4198, 124
    %v4662 = vpop.permute.xlu0 %4661
    %4663 = vrot.lane.b32.xlu0 %v4254, 124
    %v4664 = vpop.permute.xlu0 %4663
    %4665 = vrot.lane.b32.xlu0 %v4239, 124
    %v4666 = vpop.permute.xlu0 %4665
    %4667 = vrot.lane.b32.xlu0 %v4199, 124
    %v4668 = vpop.permute.xlu0 %4667
    %4669 = vrot.lane.b32.xlu0 %v4200, 124
    %v4670 = vpop.permute.xlu0 %4669
    %4671 = vrot.lane.b32.xlu0 %v4256, 124
    %v4672 = vpop.permute.xlu0 %4671
    %vm4673 = vcmask 1014784
    %v4674 = vsel %vm4673, %v4610, %v4612
    %v4675 = vsel %vm4673, %v4612, %v4614
    %v4676 = vsel %vm4673, %v4614, %v4616
    %v4677 = vsel %vm4673, %v4618, %v4620
    %v4678 = vsel %vm4673, %v4620, %v4622
    %v4679 = vsel %vm4673, %v4622, %v4624
    %v4680 = vsel %vm4673, %v4626, %v4628
    %v4681 = vsel %vm4673, %v4628, %v4630
    %v4682 = vsel %vm4673, %v4630, %v4632
    %v4683 = vsel %vm4673, %v4634, %v4636
    %v4684 = vsel %vm4673, %v4636, %v4638
    %v4685 = vsel %vm4673, %v4638, %v4640
    %v4686 = vsel %vm4673, %v4642, %v4644
    %v4687 = vsel %vm4673, %v4644, %v4646
    %v4688 = vsel %vm4673, %v4646, %v4648
    %v4689 = vsel %vm4673, %v4650, %v4652
    %v4690 = vsel %vm4673, %v4652, %v4654
    %v4691 = vsel %vm4673, %v4654, %v4656
    %v4692 = vsel %vm4673, %v4658, %v4660
    %v4693 = vsel %vm4673, %v4660, %v4662
    %v4694 = vsel %vm4673, %v4662, %v4664
    %v4695 = vsel %vm4673, %v4666, %v4668
    %v4696 = vsel %vm4673, %v4668, %v4670
    %v4697 = vsel %vm4673, %v4670, %v4672
    %4722 = vrot.lane.b32.xlu0 %v4218, 123
    %v4723 = vpop.permute.xlu0 %4722
    %4724 = vrot.lane.b32.xlu0 %v4185, 123
    %v4725 = vpop.permute.xlu0 %4724
    %4726 = vrot.lane.b32.xlu0 %v4186, 123
    %v4727 = vpop.permute.xlu0 %4726
    %4728 = vrot.lane.b32.xlu0 %v4242, 123
    %v4729 = vpop.permute.xlu0 %4728
    %4730 = vrot.lane.b32.xlu0 %v4221, 123
    %v4731 = vpop.permute.xlu0 %4730
    %4732 = vrot.lane.b32.xlu0 %v4187, 123
    %v4733 = vpop.permute.xlu0 %4732
    %4734 = vrot.lane.b32.xlu0 %v4188, 123
    %v4735 = vpop.permute.xlu0 %4734
    %4736 = vrot.lane.b32.xlu0 %v4244, 123
    %v4737 = vpop.permute.xlu0 %4736
    %4738 = vrot.lane.b32.xlu0 %v4224, 123
    %v4739 = vpop.permute.xlu0 %4738
    %4740 = vrot.lane.b32.xlu0 %v4189, 123
    %v4741 = vpop.permute.xlu0 %4740
    %4742 = vrot.lane.b32.xlu0 %v4190, 123
    %v4743 = vpop.permute.xlu0 %4742
    %4744 = vrot.lane.b32.xlu0 %v4246, 123
    %v4745 = vpop.permute.xlu0 %4744
    %4746 = vrot.lane.b32.xlu0 %v4227, 123
    %v4747 = vpop.permute.xlu0 %4746
    %4748 = vrot.lane.b32.xlu0 %v4191, 123
    %v4749 = vpop.permute.xlu0 %4748
    %4750 = vrot.lane.b32.xlu0 %v4192, 123
    %v4751 = vpop.permute.xlu0 %4750
    %4752 = vrot.lane.b32.xlu0 %v4248, 123
    %v4753 = vpop.permute.xlu0 %4752
    %vm4754 = vcmask 1006592
    %v4755 = vsel %vm4754, %v4723, %v4725
    %v4756 = vsel %vm4754, %v4725, %v4727
    %v4757 = vsel %vm4754, %v4727, %v4729
    %v4758 = vsel %vm4754, %v4731, %v4733
    %v4759 = vsel %vm4754, %v4733, %v4735
    %v4760 = vsel %vm4754, %v4735, %v4737
    %v4761 = vsel %vm4754, %v4739, %v4741
    %v4762 = vsel %vm4754, %v4741, %v4743
    %v4763 = vsel %vm4754, %v4743, %v4745
    %v4764 = vsel %vm4754, %v4747, %v4749
    %v4765 = vsel %vm4754, %v4749, %v4751
    %v4766 = vsel %vm4754, %v4751, %v4753
    %v4779 = vld [vmem:[%s6] sm:$0xff]
    %v4780 = vld [vmem:[%s6 + $0x8] sm:$0xff]
    %v4781 = vld [vmem:[%s6 + $0x10] sm:$0xff]
    %v4782 = vld [vmem:[%s6 + $0x18] sm:$0xff]
    %v4783 = vld [vmem:[%s6 + $0x20] sm:$0xff]
    %v4784 = vld [vmem:[%s6 + $0x28] sm:$0xff]
    %v4785 = vld [vmem:[%s6 + $0x30] sm:$0xff]
    %v4786 = vld [vmem:[%s6 + $0x38] sm:$0xff]
    %v4787 = vld [vmem:[%s6 + $0x40] sm:$0xff]
    %v4788 = vld [vmem:[%s6 + $0x48] sm:$0xff]
    %v4789 = vld [vmem:[%s6 + $0x50] sm:$0xff]
    %v4790 = vld [vmem:[%s6 + $0x58] sm:$0xff]
    %v4791 = vld [vmem:[%s6 + $0x60] sm:$0xff]
    %v4792 = vld [vmem:[%s6 + $0x68] sm:$0xff]
    %v4793 = vld [vmem:[%s6 + $0x70] sm:$0xff]
    %v4794 = vld [vmem:[%s6 + $0x78] sm:$0xff]
    %v4795 = vld [vmem:[%s6 + $0x80] sm:$0xff]
    %v4796 = vld [vmem:[%s6 + $0x88] sm:$0xff]
    %v4797 = vld [vmem:[%s6 + $0x90] sm:$0xff]
    %v4798 = vld [vmem:[%s6 + $0x98] sm:$0xff]
    %v4799 = vld [vmem:[%s6 + $0xa0] sm:$0xff]
    %v4800 = vld [vmem:[%s6 + $0xa8] sm:$0xff]
    %v4801 = vld [vmem:[%s6 + $0xb0] sm:$0xff]
    %v4802 = vld [vmem:[%s6 + $0xb8] sm:$0xff]
    %v4803 = vld [vmem:[%s9] sm:$0xff]
    %v4804 = vld [vmem:[%s9 + $0x8] sm:$0xff]
    %v4805 = vld [vmem:[%s9 + $0x10] sm:$0xff]
    %v4806 = vld [vmem:[%s9 + $0x18] sm:$0xff]
    %v4807 = vld [vmem:[%s9 + $0x20] sm:$0xff]
    %v4808 = vld [vmem:[%s9 + $0x28] sm:$0xff]
    %v4809 = vld [vmem:[%s9 + $0x30] sm:$0xff]
    %v4810 = vld [vmem:[%s9 + $0x38] sm:$0xff]
    %4812 = vset.pattern.permute.xlu0 0
    %4813 = vperm.xlu0 %4812, %v4803
    %v4814 = vpop.permute.xlu0 %4813
    %4817 = vset.pattern.permute.xlu0 0
    %4818 = vperm.xlu0 %4817, %v4804
    %v4819 = vpop.permute.xlu0 %4818
    %4822 = vset.pattern.permute.xlu0 0
    %4823 = vperm.xlu0 %4822, %v4805
    %v4824 = vpop.permute.xlu0 %4823
    %4827 = vset.pattern.permute.xlu0 0
    %4828 = vperm.xlu0 %4827, %v4806
    %v4829 = vpop.permute.xlu0 %4828
    %4832 = vset.pattern.permute.xlu0 0
    %4833 = vperm.xlu0 %4832, %v4807
    %v4834 = vpop.permute.xlu0 %4833
    %4837 = vset.pattern.permute.xlu0 0
    %4838 = vperm.xlu0 %4837, %v4808
    %v4839 = vpop.permute.xlu0 %4838
    %4842 = vset.pattern.permute.xlu0 0
    %4843 = vperm.xlu0 %4842, %v4809
    %v4844 = vpop.permute.xlu0 %4843
    %4847 = vset.pattern.permute.xlu0 0
    %4848 = vperm.xlu0 %4847, %v4810
    %v4849 = vpop.permute.xlu0 %4848
    %v4875 = vunpack.c.l.b16 %v4779
    %v4876 = vunpack.c.h.b16 %v4779
    %v4877 = vunpack.c.l.b16 %v4780
    %v4878 = vunpack.c.h.b16 %v4780
    %v4879 = vunpack.c.l.b16 %v4781
    %v4880 = vunpack.c.h.b16 %v4781
    %v4881 = vunpack.c.l.b16 %v4782
    %v4882 = vunpack.c.h.b16 %v4782
    %v4883 = vunpack.c.l.b16 %v4783
    %v4884 = vunpack.c.h.b16 %v4783
    %v4885 = vunpack.c.l.b16 %v4784
    %v4886 = vunpack.c.h.b16 %v4784
    %v4887 = vunpack.c.l.b16 %v4785
    %v4888 = vunpack.c.h.b16 %v4785
    %v4889 = vunpack.c.l.b16 %v4786
    %v4890 = vunpack.c.h.b16 %v4786
    %v4891 = vunpack.c.l.b16 %v4787
    %v4892 = vunpack.c.h.b16 %v4787
    %v4893 = vunpack.c.l.b16 %v4788
    %v4894 = vunpack.c.h.b16 %v4788
    %v4895 = vunpack.c.l.b16 %v4789
    %v4896 = vunpack.c.h.b16 %v4789
    %v4897 = vunpack.c.l.b16 %v4790
    %v4898 = vunpack.c.h.b16 %v4790
    %v4899 = vunpack.c.l.b16 %v4791
    %v4900 = vunpack.c.h.b16 %v4791
    %v4901 = vunpack.c.l.b16 %v4792
    %v4902 = vunpack.c.h.b16 %v4792
    %v4903 = vunpack.c.l.b16 %v4793
    %v4904 = vunpack.c.h.b16 %v4793
    %v4905 = vunpack.c.l.b16 %v4794
    %v4906 = vunpack.c.h.b16 %v4794
    %v4907 = vunpack.c.l.b16 %v4795
    %v4908 = vunpack.c.h.b16 %v4795
    %v4909 = vunpack.c.l.b16 %v4796
    %v4910 = vunpack.c.h.b16 %v4796
    %v4911 = vunpack.c.l.b16 %v4797
    %v4912 = vunpack.c.h.b16 %v4797
    %v4913 = vunpack.c.l.b16 %v4798
    %v4914 = vunpack.c.h.b16 %v4798
    %v4915 = vunpack.c.l.b16 %v4799
    %v4916 = vunpack.c.h.b16 %v4799
    %v4917 = vunpack.c.l.b16 %v4800
    %v4918 = vunpack.c.h.b16 %v4800
    %v4919 = vunpack.c.l.b16 %v4801
    %v4920 = vunpack.c.h.b16 %v4801
    %v4921 = vunpack.c.l.b16 %v4802
    %v4922 = vunpack.c.h.b16 %v4802
    %v4923 = vpack.c.b16 %v4881, %v4875
    %v4924 = vpack.c.b16 %v4882, %v4876
    %v4925 = vpack.c.b16 %v4883, %v4877
    %v4926 = vpack.c.b16 %v4884, %v4878
    %v4927 = vpack.c.b16 %v4885, %v4879
    %v4928 = vpack.c.b16 %v4886, %v4880
    %v4929 = vpack.c.b16 %v4893, %v4887
    %v4930 = vpack.c.b16 %v4894, %v4888
    %v4931 = vpack.c.b16 %v4895, %v4889
    %v4932 = vpack.c.b16 %v4896, %v4890
    %v4933 = vpack.c.b16 %v4897, %v4891
    %v4934 = vpack.c.b16 %v4898, %v4892
    %v4935 = vpack.c.b16 %v4905, %v4899
    %v4936 = vpack.c.b16 %v4906, %v4900
    %v4937 = vpack.c.b16 %v4907, %v4901
    %v4938 = vpack.c.b16 %v4908, %v4902
    %v4939 = vpack.c.b16 %v4909, %v4903
    %v4940 = vpack.c.b16 %v4910, %v4904
    %v4941 = vpack.c.b16 %v4917, %v4911
    %v4942 = vpack.c.b16 %v4918, %v4912
    %v4943 = vpack.c.b16 %v4919, %v4913
    %v4944 = vpack.c.b16 %v4920, %v4914
    %v4945 = vpack.c.b16 %v4921, %v4915
    %v4946 = vpack.c.b16 %v4922, %v4916
    %v4968 = vsel %vm2755, %v4928, 0
    %v4971 = vsel %vm2755, %v4934, 0
    %v4974 = vsel %vm2755, %v4940, 0
    %v4977 = vsel %vm2755, %v4946, 0
    %4979 = vmatpush.bf16.msra.mxu0 %v4239
    %4980 = vmatpush.bf16.msra.mxu0 %v4236
    %4981 = vmatpush.bf16.msra.mxu0 %v4233
    %4982 = vmatpush.bf16.msra.mxu0 %v4230
    %4983 = vmatpush.bf16.msra.mxu0 %v4227
    %4984 = vmatpush.bf16.msra.mxu0 %v4224
    %4985 = vmatpush.bf16.msra.mxu0 %v4221
    %4986 = vmatpush.bf16.msra.mxu0 %v4218
    %4987 = vmatmul.bf16.gmra.mxu0 %v4923
    %v4988 = vpop.f32.mrf.mxu0
    %v4989 = vadd.f32 %v4814, %v4988
    %v4990 = vpop.f32.mrf.mxu0
    %v4991 = vadd.f32 %v4819, %v4990
    %4992 = vmatmul.bf16.gmra.mxu0 %v4929
    %v4993 = vpop.f32.mrf.mxu0
    %v4994 = vadd.f32 %v4824, %v4993
    %v4995 = vpop.f32.mrf.mxu0
    %v4996 = vadd.f32 %v4829, %v4995
    %4997 = vmatmul.bf16.gmra.mxu0 %v4935
    %v4998 = vpop.f32.mrf.mxu0
    %v4999 = vadd.f32 %v4834, %v4998
    %v5000 = vpop.f32.mrf.mxu0
    %v5001 = vadd.f32 %v4839, %v5000
    %5002 = vmatmul.bf16.gmra.mxu0 %v4941
    %v5003 = vpop.f32.mrf.mxu0
    %v5004 = vadd.f32 %v4844, %v5003
    %v5005 = vpop.f32.mrf.mxu0
    %v5006 = vadd.f32 %v4849, %v5005
    %5007 = vdwg.mxu0
    %5008 = vmatpush.bf16.msra.mxu0 %v4358
    %5009 = vmatpush.bf16.msra.mxu0 %v4355
    %5010 = vmatpush.bf16.msra.mxu0 %v4352
    %5011 = vmatpush.bf16.msra.mxu0 %v4349
    %5012 = vmatpush.bf16.msra.mxu0 %v4346
    %5013 = vmatpush.bf16.msra.mxu0 %v4343
    %5014 = vmatpush.bf16.msra.mxu0 %v4340
    %5015 = vmatpush.bf16.msra.mxu0 %v4337
    %5016 = vmatmul.bf16.gmra.mxu0 %v4924
    %v5017 = vpop.f32.mrf.mxu0
    %v5018 = vadd.f32 %v4989, %v5017
    %v5019 = vpop.f32.mrf.mxu0
    %v5020 = vadd.f32 %v4991, %v5019
    %5021 = vmatmul.bf16.gmra.mxu0 %v4930
    %v5022 = vpop.f32.mrf.mxu0
    %v5023 = vadd.f32 %v4994, %v5022
    %v5024 = vpop.f32.mrf.mxu0
    %v5025 = vadd.f32 %v4996, %v5024
    %5026 = vmatmul.bf16.gmra.mxu0 %v4936
    %v5027 = vpop.f32.mrf.mxu0
    %v5028 = vadd.f32 %v4999, %v5027
    %v5029 = vpop.f32.mrf.mxu0
    %v5030 = vadd.f32 %v5001, %v5029
    %5031 = vmatmul.bf16.gmra.mxu0 %v4942
    %v5032 = vpop.f32.mrf.mxu0
    %v5033 = vadd.f32 %v5004, %v5032
    %v5034 = vpop.f32.mrf.mxu0
    %v5035 = vadd.f32 %v5006, %v5034
    %5036 = vdwg.mxu0
    %5037 = vmatpush.bf16.msra.mxu0 %v4470
    %5038 = vmatpush.bf16.msra.mxu0 %v4467
    %5039 = vmatpush.bf16.msra.mxu0 %v4464
    %5040 = vmatpush.bf16.msra.mxu0 %v4461
    %5041 = vmatpush.bf16.msra.mxu0 %v4458
    %5042 = vmatpush.bf16.msra.mxu0 %v4455
    %5043 = vmatpush.bf16.msra.mxu0 %v4452
    %5044 = vmatpush.bf16.msra.mxu0 %v4449
    %5045 = vmatmul.bf16.gmra.mxu0 %v4925
    %v5046 = vpop.f32.mrf.mxu0
    %v5047 = vadd.f32 %v5018, %v5046
    %v5048 = vpop.f32.mrf.mxu0
    %v5049 = vadd.f32 %v5020, %v5048
    %5050 = vmatmul.bf16.gmra.mxu0 %v4931
    %v5051 = vpop.f32.mrf.mxu0
    %v5052 = vadd.f32 %v5023, %v5051
    %v5053 = vpop.f32.mrf.mxu0
    %v5054 = vadd.f32 %v5025, %v5053
    %5055 = vmatmul.bf16.gmra.mxu0 %v4937
    %v5056 = vpop.f32.mrf.mxu0
    %v5057 = vadd.f32 %v5028, %v5056
    %v5058 = vpop.f32.mrf.mxu0
    %v5059 = vadd.f32 %v5030, %v5058
    %5060 = vmatmul.bf16.gmra.mxu0 %v4943
    %v5061 = vpop.f32.mrf.mxu0
    %v5062 = vadd.f32 %v5033, %v5061
    %v5063 = vpop.f32.mrf.mxu0
    %v5064 = vadd.f32 %v5035, %v5063
    %5065 = vdwg.mxu0
    %5066 = vmatpush.bf16.msra.mxu0 %v4582
    %5067 = vmatpush.bf16.msra.mxu0 %v4579
    %5068 = vmatpush.bf16.msra.mxu0 %v4576
    %5069 = vmatpush.bf16.msra.mxu0 %v4573
    %5070 = vmatpush.bf16.msra.mxu0 %v4570
    %5071 = vmatpush.bf16.msra.mxu0 %v4567
    %5072 = vmatpush.bf16.msra.mxu0 %v4564
    %5073 = vmatpush.bf16.msra.mxu0 %v4561
    %5074 = vmatmul.bf16.gmra.mxu0 %v4926
    %v5075 = vpop.f32.mrf.mxu0
    %v5076 = vadd.f32 %v5047, %v5075
    %v5077 = vpop.f32.mrf.mxu0
    %v5078 = vadd.f32 %v5049, %v5077
    %5079 = vmatmul.bf16.gmra.mxu0 %v4932
    %v5080 = vpop.f32.mrf.mxu0
    %v5081 = vadd.f32 %v5052, %v5080
    %v5082 = vpop.f32.mrf.mxu0
    %v5083 = vadd.f32 %v5054, %v5082
    %5084 = vmatmul.bf16.gmra.mxu0 %v4938
    %v5085 = vpop.f32.mrf.mxu0
    %v5086 = vadd.f32 %v5057, %v5085
    %v5087 = vpop.f32.mrf.mxu0
    %v5088 = vadd.f32 %v5059, %v5087
    %5089 = vmatmul.bf16.gmra.mxu0 %v4944
    %v5090 = vpop.f32.mrf.mxu0
    %v5091 = vadd.f32 %v5062, %v5090
    %v5092 = vpop.f32.mrf.mxu0
    %v5093 = vadd.f32 %v5064, %v5092
    %5094 = vdwg.mxu0
    %5095 = vmatpush.bf16.msra.mxu0 %v4695
    %5096 = vmatpush.bf16.msra.mxu0 %v4692
    %5097 = vmatpush.bf16.msra.mxu0 %v4689
    %5098 = vmatpush.bf16.msra.mxu0 %v4686
    %5099 = vmatpush.bf16.msra.mxu0 %v4683
    %5100 = vmatpush.bf16.msra.mxu0 %v4680
    %5101 = vmatpush.bf16.msra.mxu0 %v4677
    %5102 = vmatpush.bf16.msra.mxu0 %v4674
    %5103 = vmatmul.bf16.gmra.mxu0 %v4927
    %v5104 = vpop.f32.mrf.mxu0
    %v5105 = vadd.f32 %v5076, %v5104
    %v5106 = vpop.f32.mrf.mxu0
    %v5107 = vadd.f32 %v5078, %v5106
    %5108 = vmatmul.bf16.gmra.mxu0 %v4933
    %v5109 = vpop.f32.mrf.mxu0
    %v5110 = vadd.f32 %v5081, %v5109
    %v5111 = vpop.f32.mrf.mxu0
    %v5112 = vadd.f32 %v5083, %v5111
    %5113 = vmatmul.bf16.gmra.mxu0 %v4939
    %v5114 = vpop.f32.mrf.mxu0
    %v5115 = vadd.f32 %v5086, %v5114
    %v5116 = vpop.f32.mrf.mxu0
    %v5117 = vadd.f32 %v5088, %v5116
    %5118 = vmatmul.bf16.gmra.mxu0 %v4945
    %v5119 = vpop.f32.mrf.mxu0
    %v5120 = vadd.f32 %v5091, %v5119
    %v5121 = vpop.f32.mrf.mxu0
    %v5122 = vadd.f32 %v5093, %v5121
    %5123 = vdwg.mxu0
    %5124 = vmatpush.bf16.msra.mxu0 0
    %5125 = vmatpush.bf16.msra.mxu0 0
    %5126 = vmatpush.bf16.msra.mxu0 0
    %5127 = vmatpush.bf16.msra.mxu0 0
    %5128 = vmatpush.bf16.msra.mxu0 %v4764
    %5129 = vmatpush.bf16.msra.mxu0 %v4761
    %5130 = vmatpush.bf16.msra.mxu0 %v4758
    %5131 = vmatpush.bf16.msra.mxu0 %v4755
    %5132 = vmatmul.bf16.gmra.mxu0 %v4968
    %v5133 = vpop.f32.mrf.mxu0
    %v5134 = vadd.f32 %v5105, %v5133
    %v5135 = vpop.f32.mrf.mxu0
    %v5136 = vadd.f32 %v5107, %v5135
    %5137 = vmatmul.bf16.gmra.mxu0 %v4971
    %v5138 = vpop.f32.mrf.mxu0
    %v5139 = vadd.f32 %v5110, %v5138
    %v5140 = vpop.f32.mrf.mxu0
    %v5141 = vadd.f32 %v5112, %v5140
    %5142 = vmatmul.bf16.gmra.mxu0 %v4974
    %v5143 = vpop.f32.mrf.mxu0
    %v5144 = vadd.f32 %v5115, %v5143
    %v5145 = vpop.f32.mrf.mxu0
    %v5146 = vadd.f32 %v5117, %v5145
    %5147 = vmatmul.bf16.gmra.mxu0 %v4977
    %v5148 = vpop.f32.mrf.mxu0
    %v5149 = vadd.f32 %v5120, %v5148
    %v5150 = vpop.f32.mrf.mxu0
    %v5151 = vadd.f32 %v5122, %v5150
    %5152 = vdwg.mxu0
    %5153 = vmatpush.bf16.msra.mxu0 %v4199
    %5154 = vmatpush.bf16.msra.mxu0 %v4197
    %5155 = vmatpush.bf16.msra.mxu0 %v4195
    %5156 = vmatpush.bf16.msra.mxu0 %v4193
    %5157 = vmatpush.bf16.msra.mxu0 %v4191
    %5158 = vmatpush.bf16.msra.mxu0 %v4189
    %5159 = vmatpush.bf16.msra.mxu0 %v4187
    %5160 = vmatpush.bf16.msra.mxu0 %v4185
    %5161 = vmatmul.bf16.gmra.mxu0 %v4923
    %v5162 = vpop.f32.mrf.mxu0
    %v5163 = vadd.f32 %v4814, %v5162
    %v5164 = vpop.f32.mrf.mxu0
    %v5165 = vadd.f32 %v4819, %v5164
    %5166 = vmatmul.bf16.gmra.mxu0 %v4929
    %v5167 = vpop.f32.mrf.mxu0
    %v5168 = vadd.f32 %v4824, %v5167
    %v5169 = vpop.f32.mrf.mxu0
    %v5170 = vadd.f32 %v4829, %v5169
    %5171 = vmatmul.bf16.gmra.mxu0 %v4935
    %v5172 = vpop.f32.mrf.mxu0
    %v5173 = vadd.f32 %v4834, %v5172
    %v5174 = vpop.f32.mrf.mxu0
    %v5175 = vadd.f32 %v4839, %v5174
    %5176 = vmatmul.bf16.gmra.mxu0 %v4941
    %v5177 = vpop.f32.mrf.mxu0
    %v5178 = vadd.f32 %v4844, %v5177
    %v5179 = vpop.f32.mrf.mxu0
    %v5180 = vadd.f32 %v4849, %v5179
    %5181 = vdwg.mxu0
    %5182 = vmatpush.bf16.msra.mxu0 %v4359
    %5183 = vmatpush.bf16.msra.mxu0 %v4356
    %5184 = vmatpush.bf16.msra.mxu0 %v4353
    %5185 = vmatpush.bf16.msra.mxu0 %v4350
    %5186 = vmatpush.bf16.msra.mxu0 %v4347
    %5187 = vmatpush.bf16.msra.mxu0 %v4344
    %5188 = vmatpush.bf16.msra.mxu0 %v4341
    %5189 = vmatpush.bf16.msra.mxu0 %v4338
    %5190 = vmatmul.bf16.gmra.mxu0 %v4924
    %v5191 = vpop.f32.mrf.mxu0
    %v5192 = vadd.f32 %v5163, %v5191
    %v5193 = vpop.f32.mrf.mxu0
    %v5194 = vadd.f32 %v5165, %v5193
    %5195 = vmatmul.bf16.gmra.mxu0 %v4930
    %v5196 = vpop.f32.mrf.mxu0
    %v5197 = vadd.f32 %v5168, %v5196
    %v5198 = vpop.f32.mrf.mxu0
    %v5199 = vadd.f32 %v5170, %v5198
    %5200 = vmatmul.bf16.gmra.mxu0 %v4936
    %v5201 = vpop.f32.mrf.mxu0
    %v5202 = vadd.f32 %v5173, %v5201
    %v5203 = vpop.f32.mrf.mxu0
    %v5204 = vadd.f32 %v5175, %v5203
    %5205 = vmatmul.bf16.gmra.mxu0 %v4942
    %v5206 = vpop.f32.mrf.mxu0
    %v5207 = vadd.f32 %v5178, %v5206
    %v5208 = vpop.f32.mrf.mxu0
    %v5209 = vadd.f32 %v5180, %v5208
    %5210 = vdwg.mxu0
    %5211 = vmatpush.bf16.msra.mxu0 %v4471
    %5212 = vmatpush.bf16.msra.mxu0 %v4468
    %5213 = vmatpush.bf16.msra.mxu0 %v4465
    %5214 = vmatpush.bf16.msra.mxu0 %v4462
    %5215 = vmatpush.bf16.msra.mxu0 %v4459
    %5216 = vmatpush.bf16.msra.mxu0 %v4456
    %5217 = vmatpush.bf16.msra.mxu0 %v4453
    %5218 = vmatpush.bf16.msra.mxu0 %v4450
    %5219 = vmatmul.bf16.gmra.mxu0 %v4925
    %v5220 = vpop.f32.mrf.mxu0
    %v5221 = vadd.f32 %v5192, %v5220
    %v5222 = vpop.f32.mrf.mxu0
    %v5223 = vadd.f32 %v5194, %v5222
    %5224 = vmatmul.bf16.gmra.mxu0 %v4931
    %v5225 = vpop.f32.mrf.mxu0
    %v5226 = vadd.f32 %v5197, %v5225
    %v5227 = vpop.f32.mrf.mxu0
    %v5228 = vadd.f32 %v5199, %v5227
    %5229 = vmatmul.bf16.gmra.mxu0 %v4937
    %v5230 = vpop.f32.mrf.mxu0
    %v5231 = vadd.f32 %v5202, %v5230
    %v5232 = vpop.f32.mrf.mxu0
    %v5233 = vadd.f32 %v5204, %v5232
    %5234 = vmatmul.bf16.gmra.mxu0 %v4943
    %v5235 = vpop.f32.mrf.mxu0
    %v5236 = vadd.f32 %v5207, %v5235
    %v5237 = vpop.f32.mrf.mxu0
    %v5238 = vadd.f32 %v5209, %v5237
    %5239 = vdwg.mxu0
    %5240 = vmatpush.bf16.msra.mxu0 %v4583
    %5241 = vmatpush.bf16.msra.mxu0 %v4580
    %5242 = vmatpush.bf16.msra.mxu0 %v4577
    %5243 = vmatpush.bf16.msra.mxu0 %v4574
    %5244 = vmatpush.bf16.msra.mxu0 %v4571
    %5245 = vmatpush.bf16.msra.mxu0 %v4568
    %5246 = vmatpush.bf16.msra.mxu0 %v4565
    %5247 = vmatpush.bf16.msra.mxu0 %v4562
    %5248 = vmatmul.bf16.gmra.mxu0 %v4926
    %v5249 = vpop.f32.mrf.mxu0
    %v5250 = vadd.f32 %v5221, %v5249
    %v5251 = vpop.f32.mrf.mxu0
    %v5252 = vadd.f32 %v5223, %v5251
    %5253 = vmatmul.bf16.gmra.mxu0 %v4932
    %v5254 = vpop.f32.mrf.mxu0
    %v5255 = vadd.f32 %v5226, %v5254
    %v5256 = vpop.f32.mrf.mxu0
    %v5257 = vadd.f32 %v5228, %v5256
    %5258 = vmatmul.bf16.gmra.mxu0 %v4938
    %v5259 = vpop.f32.mrf.mxu0
    %v5260 = vadd.f32 %v5231, %v5259
    %v5261 = vpop.f32.mrf.mxu0
    %v5262 = vadd.f32 %v5233, %v5261
    %5263 = vmatmul.bf16.gmra.mxu0 %v4944
    %v5264 = vpop.f32.mrf.mxu0
    %v5265 = vadd.f32 %v5236, %v5264
    %v5266 = vpop.f32.mrf.mxu0
    %v5267 = vadd.f32 %v5238, %v5266
    %5268 = vdwg.mxu0
    %5269 = vmatpush.bf16.msra.mxu0 %v4696
    %5270 = vmatpush.bf16.msra.mxu0 %v4693
    %5271 = vmatpush.bf16.msra.mxu0 %v4690
    %5272 = vmatpush.bf16.msra.mxu0 %v4687
    %5273 = vmatpush.bf16.msra.mxu0 %v4684
    %5274 = vmatpush.bf16.msra.mxu0 %v4681
    %5275 = vmatpush.bf16.msra.mxu0 %v4678
    %5276 = vmatpush.bf16.msra.mxu0 %v4675
    %5277 = vmatmul.bf16.gmra.mxu0 %v4927
    %v5278 = vpop.f32.mrf.mxu0
    %v5279 = vadd.f32 %v5250, %v5278
    %v5280 = vpop.f32.mrf.mxu0
    %v5281 = vadd.f32 %v5252, %v5280
    %5282 = vmatmul.bf16.gmra.mxu0 %v4933
    %v5283 = vpop.f32.mrf.mxu0
    %v5284 = vadd.f32 %v5255, %v5283
    %v5285 = vpop.f32.mrf.mxu0
    %v5286 = vadd.f32 %v5257, %v5285
    %5287 = vmatmul.bf16.gmra.mxu0 %v4939
    %v5288 = vpop.f32.mrf.mxu0
    %v5289 = vadd.f32 %v5260, %v5288
    %v5290 = vpop.f32.mrf.mxu0
    %v5291 = vadd.f32 %v5262, %v5290
    %5292 = vmatmul.bf16.gmra.mxu0 %v4945
    %v5293 = vpop.f32.mrf.mxu0
    %v5294 = vadd.f32 %v5265, %v5293
    %v5295 = vpop.f32.mrf.mxu0
    %v5296 = vadd.f32 %v5267, %v5295
    %5297 = vdwg.mxu0
    %5298 = vmatpush.bf16.msra.mxu0 0
    %5299 = vmatpush.bf16.msra.mxu0 0
    %5300 = vmatpush.bf16.msra.mxu0 0
    %5301 = vmatpush.bf16.msra.mxu0 0
    %5302 = vmatpush.bf16.msra.mxu0 %v4765
    %5303 = vmatpush.bf16.msra.mxu0 %v4762
    %5304 = vmatpush.bf16.msra.mxu0 %v4759
    %5305 = vmatpush.bf16.msra.mxu0 %v4756
    %5306 = vmatmul.bf16.gmra.mxu0 %v4968
    %v5307 = vpop.f32.mrf.mxu0
    %v5308 = vadd.f32 %v5279, %v5307
    %v5309 = vpop.f32.mrf.mxu0
    %v5310 = vadd.f32 %v5281, %v5309
    %5311 = vmatmul.bf16.gmra.mxu0 %v4971
    %v5312 = vpop.f32.mrf.mxu0
    %v5313 = vadd.f32 %v5284, %v5312
    %v5314 = vpop.f32.mrf.mxu0
    %v5315 = vadd.f32 %v5286, %v5314
    %5316 = vmatmul.bf16.gmra.mxu0 %v4974
    %v5317 = vpop.f32.mrf.mxu0
    %v5318 = vadd.f32 %v5289, %v5317
    %v5319 = vpop.f32.mrf.mxu0
    %v5320 = vadd.f32 %v5291, %v5319
    %5321 = vmatmul.bf16.gmra.mxu0 %v4977
    %v5322 = vpop.f32.mrf.mxu0
    %v5323 = vadd.f32 %v5294, %v5322
    %v5324 = vpop.f32.mrf.mxu0
    %v5325 = vadd.f32 %v5296, %v5324
    %5326 = vdwg.mxu0
    %5327 = vmatpush.bf16.msra.mxu0 %v4200
    %5328 = vmatpush.bf16.msra.mxu0 %v4198
    %5329 = vmatpush.bf16.msra.mxu0 %v4196
    %5330 = vmatpush.bf16.msra.mxu0 %v4194
    %5331 = vmatpush.bf16.msra.mxu0 %v4192
    %5332 = vmatpush.bf16.msra.mxu0 %v4190
    %5333 = vmatpush.bf16.msra.mxu0 %v4188
    %5334 = vmatpush.bf16.msra.mxu0 %v4186
    %5335 = vmatmul.bf16.gmra.mxu0 %v4923
    %v5336 = vpop.f32.mrf.mxu0
    %v5337 = vadd.f32 %v4814, %v5336
    %v5338 = vpop.f32.mrf.mxu0
    %v5339 = vadd.f32 %v4819, %v5338
    %5340 = vmatmul.bf16.gmra.mxu0 %v4929
    %v5341 = vpop.f32.mrf.mxu0
    %v5342 = vadd.f32 %v4824, %v5341
    %v5343 = vpop.f32.mrf.mxu0
    %v5344 = vadd.f32 %v4829, %v5343
    %5345 = vmatmul.bf16.gmra.mxu0 %v4935
    %v5346 = vpop.f32.mrf.mxu0
    %v5347 = vadd.f32 %v4834, %v5346
    %v5348 = vpop.f32.mrf.mxu0
    %v5349 = vadd.f32 %v4839, %v5348
    %5350 = vmatmul.bf16.gmra.mxu0 %v4941
    %v5351 = vpop.f32.mrf.mxu0
    %v5352 = vadd.f32 %v4844, %v5351
    %v5353 = vpop.f32.mrf.mxu0
    %v5354 = vadd.f32 %v4849, %v5353
    %5355 = vdwg.mxu0
    %5356 = vmatpush.bf16.msra.mxu0 %v4360
    %5357 = vmatpush.bf16.msra.mxu0 %v4357
    %5358 = vmatpush.bf16.msra.mxu0 %v4354
    %5359 = vmatpush.bf16.msra.mxu0 %v4351
    %5360 = vmatpush.bf16.msra.mxu0 %v4348
    %5361 = vmatpush.bf16.msra.mxu0 %v4345
    %5362 = vmatpush.bf16.msra.mxu0 %v4342
    %5363 = vmatpush.bf16.msra.mxu0 %v4339
    %5364 = vmatmul.bf16.gmra.mxu0 %v4924
    %v5365 = vpop.f32.mrf.mxu0
    %v5366 = vadd.f32 %v5337, %v5365
    %v5367 = vpop.f32.mrf.mxu0
    %v5368 = vadd.f32 %v5339, %v5367
    %5369 = vmatmul.bf16.gmra.mxu0 %v4930
    %v5370 = vpop.f32.mrf.mxu0
    %v5371 = vadd.f32 %v5342, %v5370
    %v5372 = vpop.f32.mrf.mxu0
    %v5373 = vadd.f32 %v5344, %v5372
    %5374 = vmatmul.bf16.gmra.mxu0 %v4936
    %v5375 = vpop.f32.mrf.mxu0
    %v5376 = vadd.f32 %v5347, %v5375
    %v5377 = vpop.f32.mrf.mxu0
    %v5378 = vadd.f32 %v5349, %v5377
    %5379 = vmatmul.bf16.gmra.mxu0 %v4942
    %v5380 = vpop.f32.mrf.mxu0
    %v5381 = vadd.f32 %v5352, %v5380
    %v5382 = vpop.f32.mrf.mxu0
    %v5383 = vadd.f32 %v5354, %v5382
    %5384 = vdwg.mxu0
    %5385 = vmatpush.bf16.msra.mxu0 %v4472
    %5386 = vmatpush.bf16.msra.mxu0 %v4469
    %5387 = vmatpush.bf16.msra.mxu0 %v4466
    %5388 = vmatpush.bf16.msra.mxu0 %v4463
    %5389 = vmatpush.bf16.msra.mxu0 %v4460
    %5390 = vmatpush.bf16.msra.mxu0 %v4457
    %5391 = vmatpush.bf16.msra.mxu0 %v4454
    %5392 = vmatpush.bf16.msra.mxu0 %v4451
    %5393 = vmatmul.bf16.gmra.mxu0 %v4925
    %v5394 = vpop.f32.mrf.mxu0
    %v5395 = vadd.f32 %v5366, %v5394
    %v5396 = vpop.f32.mrf.mxu0
    %v5397 = vadd.f32 %v5368, %v5396
    %5398 = vmatmul.bf16.gmra.mxu0 %v4931
    %v5399 = vpop.f32.mrf.mxu0
    %v5400 = vadd.f32 %v5371, %v5399
    %v5401 = vpop.f32.mrf.mxu0
    %v5402 = vadd.f32 %v5373, %v5401
    %5403 = vmatmul.bf16.gmra.mxu0 %v4937
    %v5404 = vpop.f32.mrf.mxu0
    %v5405 = vadd.f32 %v5376, %v5404
    %v5406 = vpop.f32.mrf.mxu0
    %v5407 = vadd.f32 %v5378, %v5406
    %5408 = vmatmul.bf16.gmra.mxu0 %v4943
    %v5409 = vpop.f32.mrf.mxu0
    %v5410 = vadd.f32 %v5381, %v5409
    %v5411 = vpop.f32.mrf.mxu0
    %v5412 = vadd.f32 %v5383, %v5411
    %5413 = vdwg.mxu0
    %5414 = vmatpush.bf16.msra.mxu0 %v4584
    %5415 = vmatpush.bf16.msra.mxu0 %v4581
    %5416 = vmatpush.bf16.msra.mxu0 %v4578
    %5417 = vmatpush.bf16.msra.mxu0 %v4575
    %5418 = vmatpush.bf16.msra.mxu0 %v4572
    %5419 = vmatpush.bf16.msra.mxu0 %v4569
    %5420 = vmatpush.bf16.msra.mxu0 %v4566
    %5421 = vmatpush.bf16.msra.mxu0 %v4563
    %5422 = vmatmul.bf16.gmra.mxu0 %v4926
    %v5423 = vpop.f32.mrf.mxu0
    %v5424 = vadd.f32 %v5395, %v5423
    %v5425 = vpop.f32.mrf.mxu0
    %v5426 = vadd.f32 %v5397, %v5425
    %5427 = vmatmul.bf16.gmra.mxu0 %v4932
    %v5428 = vpop.f32.mrf.mxu0
    %v5429 = vadd.f32 %v5400, %v5428
    %v5430 = vpop.f32.mrf.mxu0
    %v5431 = vadd.f32 %v5402, %v5430
    %5432 = vmatmul.bf16.gmra.mxu0 %v4938
    %v5433 = vpop.f32.mrf.mxu0
    %v5434 = vadd.f32 %v5405, %v5433
    %v5435 = vpop.f32.mrf.mxu0
    %v5436 = vadd.f32 %v5407, %v5435
    %5437 = vmatmul.bf16.gmra.mxu0 %v4944
    %v5438 = vpop.f32.mrf.mxu0
    %v5439 = vadd.f32 %v5410, %v5438
    %v5440 = vpop.f32.mrf.mxu0
    %v5441 = vadd.f32 %v5412, %v5440
    %5442 = vdwg.mxu0
    %5443 = vmatpush.bf16.msra.mxu0 %v4697
    %5444 = vmatpush.bf16.msra.mxu0 %v4694
    %5445 = vmatpush.bf16.msra.mxu0 %v4691
    %5446 = vmatpush.bf16.msra.mxu0 %v4688
    %5447 = vmatpush.bf16.msra.mxu0 %v4685
    %5448 = vmatpush.bf16.msra.mxu0 %v4682
    %5449 = vmatpush.bf16.msra.mxu0 %v4679
    %5450 = vmatpush.bf16.msra.mxu0 %v4676
    %5451 = vmatmul.bf16.gmra.mxu0 %v4927
    %v5452 = vpop.f32.mrf.mxu0
    %v5453 = vadd.f32 %v5424, %v5452
    %v5454 = vpop.f32.mrf.mxu0
    %v5455 = vadd.f32 %v5426, %v5454
    %5456 = vmatmul.bf16.gmra.mxu0 %v4933
    %v5457 = vpop.f32.mrf.mxu0
    %v5458 = vadd.f32 %v5429, %v5457
    %v5459 = vpop.f32.mrf.mxu0
    %v5460 = vadd.f32 %v5431, %v5459
    %5461 = vmatmul.bf16.gmra.mxu0 %v4939
    %v5462 = vpop.f32.mrf.mxu0
    %v5463 = vadd.f32 %v5434, %v5462
    %v5464 = vpop.f32.mrf.mxu0
    %v5465 = vadd.f32 %v5436, %v5464
    %5466 = vmatmul.bf16.gmra.mxu0 %v4945
    %v5467 = vpop.f32.mrf.mxu0
    %v5468 = vadd.f32 %v5439, %v5467
    %v5469 = vpop.f32.mrf.mxu0
    %v5470 = vadd.f32 %v5441, %v5469
    %5471 = vdwg.mxu0
    %5472 = vmatpush.bf16.msra.mxu0 0
    %5473 = vmatpush.bf16.msra.mxu0 0
    %5474 = vmatpush.bf16.msra.mxu0 0
    %5475 = vmatpush.bf16.msra.mxu0 0
    %5476 = vmatpush.bf16.msra.mxu0 %v4766
    %5477 = vmatpush.bf16.msra.mxu0 %v4763
    %5478 = vmatpush.bf16.msra.mxu0 %v4760
    %5479 = vmatpush.bf16.msra.mxu0 %v4757
    %5480 = vmatmul.bf16.gmra.mxu0 %v4968
    %v5481 = vpop.f32.mrf.mxu0
    %v5482 = vadd.f32 %v5453, %v5481
    %v5483 = vpop.f32.mrf.mxu0
    %v5484 = vadd.f32 %v5455, %v5483
    %5485 = vmatmul.bf16.gmra.mxu0 %v4971
    %v5486 = vpop.f32.mrf.mxu0
    %v5487 = vadd.f32 %v5458, %v5486
    %v5488 = vpop.f32.mrf.mxu0
    %v5489 = vadd.f32 %v5460, %v5488
    %5490 = vmatmul.bf16.gmra.mxu0 %v4974
    %v5491 = vpop.f32.mrf.mxu0
    %v5492 = vadd.f32 %v5463, %v5491
    %v5493 = vpop.f32.mrf.mxu0
    %v5494 = vadd.f32 %v5465, %v5493
    %5495 = vmatmul.bf16.gmra.mxu0 %v4977
    %v5496 = vpop.f32.mrf.mxu0
    %v5497 = vadd.f32 %v5468, %v5496
    %v5498 = vpop.f32.mrf.mxu0
    %v5499 = vadd.f32 %v5470, %v5498
    %5500 = vdwg.mxu0
    %v5501 = vmax.f32 %v5134, 0.0
    %v5502 = vmax.f32 %v5308, 0.0
    %v5503 = vmax.f32 %v5482, 0.0
    %v5504 = vmax.f32 %v5136, 0.0
    %v5505 = vmax.f32 %v5310, 0.0
    %v5506 = vmax.f32 %v5484, 0.0
    %v5507 = vmax.f32 %v5139, 0.0
    %v5508 = vmax.f32 %v5313, 0.0
    %v5509 = vmax.f32 %v5487, 0.0
    %v5510 = vmax.f32 %v5141, 0.0
    %v5511 = vmax.f32 %v5315, 0.0
    %v5512 = vmax.f32 %v5489, 0.0
    %v5513 = vmax.f32 %v5144, 0.0
    %v5514 = vmax.f32 %v5318, 0.0
    %v5515 = vmax.f32 %v5492, 0.0
    %v5516 = vmax.f32 %v5146, 0.0
    %v5517 = vmax.f32 %v5320, 0.0
    %v5518 = vmax.f32 %v5494, 0.0
    %v5519 = vmax.f32 %v5149, 0.0
    %v5520 = vmax.f32 %v5323, 0.0
    %v5521 = vmax.f32 %v5497, 0.0
    %v5522 = vmax.f32 %v5151, 0.0
    %v5523 = vmax.f32 %v5325, 0.0
    %v5524 = vmax.f32 %v5499, 0.0
    %v5525 = vpack.c.bf16 %v5502, %v5501
    %v5526 = vpack.c.bf16 %v5503, %v5503
    %v5527 = vpack.c.bf16 %v5505, %v5504
    %v5528 = vpack.c.bf16 %v5506, %v5506
    %v5529 = vpack.c.bf16 %v5508, %v5507
    %v5530 = vpack.c.bf16 %v5509, %v5509
    %v5531 = vpack.c.bf16 %v5511, %v5510
    %v5532 = vpack.c.bf16 %v5512, %v5512
    %v5533 = vpack.c.bf16 %v5514, %v5513
    %v5534 = vpack.c.bf16 %v5515, %v5515
    %v5535 = vpack.c.bf16 %v5517, %v5516
    %v5536 = vpack.c.bf16 %v5518, %v5518
    %v5537 = vpack.c.bf16 %v5520, %v5519
    %v5538 = vpack.c.bf16 %v5521, %v5521
    %v5539 = vpack.c.bf16 %v5523, %v5522
    %v5540 = vpack.c.bf16 %v5524, %v5524
    %5541 = vst [vmem:[#allocation2] sm:$0xff] %v5525
    %5542 = vst [vmem:[#allocation2 + $0x8] sm:$0xf] %v5526
    %5543 = vst [vmem:[#allocation2 + $0xc] sm:$0xff] %v5527
    %5544 = vst [vmem:[#allocation2 + $0x14] sm:$0xf] %v5528
    %5545 = vst [vmem:[#allocation2 + $0x18] sm:$0xff] %v5529
    %5546 = vst [vmem:[#allocation2 + $0x20] sm:$0xf] %v5530
    %5547 = vst [vmem:[#allocation2 + $0x24] sm:$0xff] %v5531
    %5548 = vst [vmem:[#allocation2 + $0x2c] sm:$0xf] %v5532
    %5549 = vst [vmem:[#allocation2 + $0x30] sm:$0xff] %v5533
    %5550 = vst [vmem:[#allocation2 + $0x38] sm:$0xf] %v5534
    %5551 = vst [vmem:[#allocation2 + $0x3c] sm:$0xff] %v5535
    %5552 = vst [vmem:[#allocation2 + $0x44] sm:$0xf] %v5536
    %5553 = vst [vmem:[#allocation2 + $0x48] sm:$0xff] %v5537
    %5554 = vst [vmem:[#allocation2 + $0x50] sm:$0xf] %v5538
    %5555 = vst [vmem:[#allocation2 + $0x54] sm:$0xff] %v5539
    %5556 = vst [vmem:[#allocation2 + $0x5c] sm:$0xf] %v5540
    // Predicated region
    $region42: #{tpu_custom_call.1} parent=1 // pred_check
      _
    $region43: #{tpu_custom_call.1} parent=1 // pred_check_branch
      %5558 = sbr.rel (0) target = $region45
    $region44: #{tpu_custom_call.1} parent=1 // pred_region
      %5560 = vsyncadd [#allocation3], 0
      %s5561 = sshll.u32 [#allocation2], 4
      %s5562 = int_to_ptr.vmem [resolvable:$true] %s5561
      %s5563 = sshll.u32 %s10, 4
      %s5564 = int_to_ptr.hbm [resolvable:$true] %s5563
      %5569 = dma.vmem_to_hbm [thread:$0]  %s5562, 1536, %s5564, [#allocation3], 192, 192, 12
    $region45: #{tpu_custom_call.1} parent=1 // pred_fallthru
      _
    // Predicated region
    $region46: #{tpu_custom_call.1} parent=1 // pred_check
      _
    $region47: #{tpu_custom_call.1} parent=1 // pred_check_branch
      %5571 = sbr.rel (0) target = $region49
    $region48: #{tpu_custom_call.1} parent=1 // pred_region
      %5573 = dma.done [#allocation3], 1536
    $region49: #{tpu_custom_call.1} parent=1 // pred_fallthru
      _
    %5574 = vsyncpa [#allocation3], 1

</llo_original>
